<compile_context>
chip_gen: v5e
topology: v5e:2x2
jax: 0.10.0
libtpu: 0.0.40
codegen_flags: <defaults>
</compile_context>

<pallas_src>
import numpy as np
import jax
import jax.numpy as jnp
from jax import lax
from jax.experimental import pallas as pl
from jax.experimental.pallas import tpu as pltpu


def _phase_taps(factor, ksize, pad0):
    """Per output phase r in [0, factor): list of (kernel_tap_index, input_offset)."""
    taps = []
    for r in range(factor):
        lst = []
        for kk in range(ksize):
            if (r + kk - pad0) % factor == 0:
                lst.append((kk, (r + kk - pad0) // factor))
        taps.append(lst)
    return taps


def _vmem_capacity_bytes():
    try:
        cap = int(pltpu.get_tpu_info().vmem_capacity_bytes)
        if cap > 0:
            return cap
    except Exception:
        pass
    return 64 * 1024 * 1024  # conservative fallback (v7x per-core size)


def _io_bytes(cb, hs, W, f, itemsize):
    return (cb * hs * W + cb * hs * f * W * f) * itemsize


def _footprint_bytes(cb, hs, W, f, itemsize):
    in_e = cb * hs * W
    out_e = cb * hs * f * W * f
    io = (in_e + out_e) * itemsize        # one input block + one output block
    interm = (2 * in_e + 3 * out_e) * 4   # in-kernel f32 temporaries (generous estimate)
    return 2 * io + interm                # x2: Pallas double-buffers both specs


def _choose_tiles(NC, H, W, f, itemsize, vmem_cap, io_budget=None, target_steps=4):
    """Pick (channel block cb, H-strip Hs)."""
    if io_budget is None:
        io_budget = 16 * 1024 * 1024
    total_budget = max(int(0.45 * vmem_cap), 4 * 1024 * 1024)

    def ok(cb, hs):
        return (_io_bytes(cb, hs, W, f, itemsize) <= io_budget and
                _footprint_bytes(cb, hs, W, f, itemsize) <= total_budget)

    # H strip: second-to-last block dim must be a multiple of 8 or the full H.
    hs_cands = [H] + sorted((d for d in range(8, H, 8) if H % d == 0), reverse=True)
    Hs = hs_cands[-1]
    for hs in hs_cands:
        if ok(1, hs):
            Hs = hs
            break
    nH = H // Hs

    # Channel block: as large as the budgets allow ...
    per_io = _io_bytes(1, Hs, W, f, itemsize)
    per_tot = _footprint_bytes(1, Hs, W, f, itemsize)
    cb_max = max(1, min(NC, io_budget // per_io, total_budget // per_tot))
    # ... but keep >= target_steps grid steps (megacore sharding + pipeline overlap).
    need_nI = max(1, -(-target_steps // nH))
    cb = max(1, min(cb_max, -(-NC // need_nI)))
    # Prefer an exact divisor of NC when one is reasonably close (no partial tail block);
    # otherwise keep cb and let the last grid step be a partial block.
    best_div = max(d for d in range(1, cb + 1) if NC % d == 0)
    if best_div * 2 >= cb:
        cb = best_div
    return cb, Hs


def _build_kernel(cb, Hs, W, f, wf1, taps, ho_lo, ho_hi, flat_out):
    Wf = W * f

    def kernel(*refs):
        it = list(refs)
        x_ref = it.pop(0)
        top_ref = it.pop(0) if ho_lo > 0 else None
        bot_ref = it.pop(0) if ho_hi > 0 else None
        o_ref = it.pop(0)

        x = x_ref[...].astype(jnp.float32)                      # (cb, Hs, W)

        # Extend the strip vertically with its halo rows (zeros at the plane border
        # are already baked into the halo arrays by the wrapper).
        pieces = []
        if top_ref is not None:
            pieces.append(top_ref[...][:, 0].astype(jnp.float32))   # (cb, ho_lo, W)
        pieces.append(x)
        if bot_ref is not None:
            pieces.append(bot_ref[...][:, 0].astype(jnp.float32))   # (cb, ho_hi, W)
        x_ext = jnp.concatenate(pieces, axis=1) if len(pieces) > 1 else x

        def vtap(off):   # rows h+off of the strip, halo-filled
            return lax.slice_in_dim(x_ext, ho_lo + off, ho_lo + off + Hs, axis=1)

        rows = []
        for ry in range(f):
            # Vertical (sublane-axis) polyphase pass for row phase ry.
            tl = taps[ry]
            if tl:
                k0, o0 = tl[0]
                vy = wf1[k0] * vtap(o0)
                for (k, o) in tl[1:]:
                    vy = vy + wf1[k] * vtap(o)
            else:
                vy = jnp.zeros((cb, Hs, W), jnp.float32)

            # Horizontal (lane-axis) pass: pad once with the zero halo, then static slices.
            if ho_lo + ho_hi > 0:
                pads = []
                if ho_lo:
                    pads.append(jnp.zeros((cb, Hs, ho_lo), jnp.float32))
                pads.append(vy)
                if ho_hi:
                    pads.append(jnp.zeros((cb, Hs, ho_hi), jnp.float32))
                vy_p = jnp.concatenate(pads, axis=2)
            else:
                vy_p = vy

            def htap(off):
                return lax.slice_in_dim(vy_p, ho_lo + off, ho_lo + off + W, axis=2)

            parts = []
            for rx in range(f):
                tlx = taps[rx]
                if tlx:
                    k0, o0 = tlx[0]
                    h = wf1[k0] * htap(o0)
                    for (k, o) in tlx[1:]:
                        h = h + wf1[k] * htap(o)
                else:
                    h = jnp.zeros((cb, Hs, W), jnp.float32)
                parts.append(h)

            # Interleave the f column phases along W -> (cb, Hs, W*f).
            rows.append(jnp.stack(parts, axis=-1).reshape(cb, Hs, Wf))

        if flat_out:
            # Lane-dense layout: the f row phases of one input row sit contiguously on
            # the lane axis -> (cb, Hs, f*W*f).  Pure lane concat, no relayout reshape.
            out = jnp.concatenate(rows, axis=2)
        else:
            # Standard layout: interleave row phases along H -> (cb, Hs*f, W*f).
            out = jnp.stack(rows, axis=2).reshape(cb, Hs * f, Wf)
        o_ref[...] = out.astype(o_ref.dtype)

    return kernel


def make_upsample(kernel_1d=(1, 3, 3, 1), factor=2, io_budget_bytes=None, target_steps=4):
    """Builds upsample(x) for NCHW inputs with the semantics of the torch Upsample module."""
    k1 = np.asarray(kernel_1d, dtype=np.float64).ravel()
    # TODO(synk): only separable (outer product of a 1-D kernel) FIR kernels are handled,
    # which is what the torch module builds from its 1-D `kernel` argument.
    assert k1.ndim == 1 and k1.size >= 1

    f = int(factor)
    kh = k1.shape[0]
    p = kh - f
    pad0 = (p + 1) // 2 + f - 1
    pad1 = p // 2
    assert pad0 + pad1 == kh - 1           # => output spatial size is exactly H*f

    # make_kernel(k) * factor^2 == outer(a, a) with a = factor * k / sum(k);
    # upfirdn2d is a true convolution, hence the flipped taps.
    a = f * k1 / k1.sum()
    wf1 = [float(v) for v in a[::-1]]
    wf2d = np.outer(a[::-1], a[::-1])

    taps = _phase_taps(f, kh, pad0)
    offs = [o for lst in taps for (_, o) in lst]
    ho_lo = max(0, -min(offs)) if offs else 0   # halo rows needed above a strip
    ho_hi = max(0, max(offs)) if offs else 0    # halo rows needed below a strip

    def upsample(x):
        N, C, H, W = x.shape
        NC = N * C
        itemsize = x.dtype.itemsize
        Wf = W * f
        vmem_cap = _vmem_capacity_bytes()
        cb, Hs = _choose_tiles(NC, H, W, f, itemsize, vmem_cap,
                               io_budget=io_budget_bytes, target_steps=target_steps)
        nH = H // Hs
        nI = -(-NC // cb)

        xr = x.reshape(NC, H, W)

        inputs = [xr]
        in_specs = [pl.BlockSpec((cb, Hs, W), lambda i, j: (i, j, 0))]

        # Vertical halos as small side inputs (neighbouring strip rows, zeros at the
        # plane boundary), so the main input blocks never overlap.
        strips = xr.reshape(NC, nH, Hs, W) if nH > 1 else None
        if ho_lo > 0:
            if nH > 1:
                top = jnp.concatenate(
                    [jnp.zeros((NC, 1, ho_lo, W), x.dtype),
                     strips[:, :-1, Hs - ho_lo:, :]], axis=1)
            else:
                top = jnp.zeros((NC, 1, ho_lo, W), x.dtype)
            inputs.append(top)
            in_specs.append(pl.BlockSpec((cb, 1, ho_lo, W), lambda i, j: (i, j, 0, 0)))
        if ho_hi > 0:
            if nH > 1:
                bot = jnp.concatenate(
                    [strips[:, 1:, :ho_hi, :],
                     jnp.zeros((NC, 1, ho_hi, W), x.dtype)], axis=1)
            else:
                bot = jnp.zeros((NC, 1, ho_hi, W), x.dtype)
            inputs.append(bot)
            in_specs.append(pl.BlockSpec((cb, 1, ho_hi, W), lambda i, j: (i, j, 0, 0)))

        flat_out = Wf < 128   # pack the f*f phases of an input row contiguously on lanes
        if flat_out:
            # TODO(synk): feature maps with f*f*W still < 128 (<=8 px) could additionally
            # pack several input rows per lane-row for full density; skipped (negligible work).
            out_shape = jax.ShapeDtypeStruct((NC, H, f * Wf), x.dtype)
            out_spec = pl.BlockSpec((cb, Hs, f * Wf), lambda i, j: (i, j, 0))
        else:
            out_shape = jax.ShapeDtypeStruct((NC, H * f, Wf), x.dtype)
            out_spec = pl.BlockSpec((cb, Hs * f, Wf), lambda i, j: (i, j, 0))

        flops = 2 * NC * H * W * kh * (1 + f)                 # separable-pass MACs (rough)
        bytes_accessed = (NC * H * W + NC * H * f * W * f) * itemsize
        vmem_limit = int(min(int(0.85 * vmem_cap),
                             max(48 * 1024 * 1024,
                                 2 * _footprint_bytes(cb, Hs, W, f, itemsize))))
        vmem_limit = max(vmem_limit, 32 * 1024 * 1024)

        out = pl.pallas_call(
            _build_kernel(cb, Hs, W, f, wf1, taps, ho_lo, ho_hi, flat_out),
            out_shape=out_shape,
            grid_spec=pltpu.PrefetchScalarGridSpec(
                num_scalar_prefetch=0,
                grid=(nI, nH),
                in_specs=in_specs,
                out_specs=out_spec),
            compiler_params=pltpu.CompilerParams(
                dimension_semantics=("parallel", "parallel"),
                vmem_limit_bytes=vmem_limit),
            cost_estimate=pl.CostEstimate(
                flops=int(flops), transcendentals=0,
                bytes_accessed=int(bytes_accessed)),
        )(*inputs)

        # Row-major contiguous regrouping back to NCHW (free reshape).
        return out.reshape(N, C, H * f, W * f)

    # Pure-JAX reference (upfirdn2d via dilated convolution) for verification.
    def reference(x):
        N, C, H, W = x.shape
        xr = x.reshape(N * C, 1, H, W).astype(jnp.float32)
        w = jnp.asarray(wf2d, jnp.float32)[None, None]
        out = lax.conv_general_dilated(
            xr, w,
            window_strides=(1, 1),
            padding=[(pad0, pad1 + f - 1), (pad0, pad1 + f - 1)],
            lhs_dilation=(f, f),
            dimension_numbers=("NCHW", "OIHW", "NCHW"),
        )
        return out.reshape(N, C, H * f, W * f).astype(x.dtype)

    return upsample, reference


if __name__ == "__main__":
    key = jax.random.PRNGKey(0)
    k1, k2 = jax.random.split(key)

    # Test 1: module-default small shape (single strip, lane-dense output path).
    x = jax.random.normal(k1, (2, 4, 16, 16), dtype=jnp.float32)
    upsample, reference = make_upsample(kernel_1d=(1, 3, 3, 1), factor=2)
    out = jax.block_until_ready(upsample(x))
    ref = jax.block_until_ready(reference(x))
    assert out.shape == (2, 4, 32, 32), out.shape
    np.testing.assert_allclose(np.asarray(out), np.asarray(ref), rtol=1e-5, atol=1e-5)

    # Test 2: force H-strip tiling (halo side-inputs exercised) with a tiny per-step budget.
    up_s, ref_s = make_upsample(kernel_1d=(1, 3, 3, 1), factor=2, io_budget_bytes=8 * 1024)
    x2 = jax.random.normal(k2, (2, 3, 32, 32), dtype=jnp.float32)
    out2 = jax.block_until_ready(up_s(x2))
    ref2 = jax.block_until_ready(ref_s(x2))
    assert out2.shape == (2, 3, 64, 64), out2.shape
    np.testing.assert_allclose(np.asarray(out2), np.asarray(ref2), rtol=1e-5, atol=1e-5)

    print("KERNEL_OK")
</pallas_src>

<mosaic_0001>
module attributes {stable_mosaic.version = 11 : i64} {
  func.func @kernel(%arg0: i32, %arg1: i32, %arg2: memref<2x16x16xf32, #tpu.memory_space<vmem>>, %arg3: memref<2x1x1x16xf32, #tpu.memory_space<vmem>>, %arg4: memref<2x1x1x16xf32, #tpu.memory_space<vmem>>, %arg5: memref<2x16x64xf32, #tpu.memory_space<vmem>>) attributes {dimension_semantics = [#tpu.dimension_semantics<parallel>, #tpu.dimension_semantics<parallel>], iteration_bounds = array<i64: 4, 1>, scalar_prefetch = 0 : i64, scratch_operands = 0 : i64, tpu.core_type = #tpu.core_type<tc>, window_params = [{transform_indices = @transform_0, window_bounds = array<i64: 2, 16, 16>}, {transform_indices = @transform_1, window_bounds = array<i64: 2, 1, 1, 16>}, {transform_indices = @transform_2, window_bounds = array<i64: 2, 1, 1, 16>}, {transform_indices = @transform_3, window_bounds = array<i64: 2, 16, 64>}]} {
    %c0 = arith.constant 0 : index
    %c0_0 = arith.constant 0 : index
    %c0_1 = arith.constant 0 : index
    %0 = vector.load %arg2[%c0, %c0_0, %c0_1] : memref<2x16x16xf32, #tpu.memory_space<vmem>>, vector<2x16x16xf32>
    %c0_2 = arith.constant 0 : index
    %c0_3 = arith.constant 0 : index
    %c0_4 = arith.constant 0 : index
    %c0_5 = arith.constant 0 : index
    %1 = vector.load %arg3[%c0_2, %c0_3, %c0_4, %c0_5] : memref<2x1x1x16xf32, #tpu.memory_space<vmem>>, vector<2x1x1x16xf32>
    %2 = vector.shape_cast %1 : vector<2x1x1x16xf32> to vector<2x1x16xf32>
    %c0_6 = arith.constant 0 : index
    %c0_7 = arith.constant 0 : index
    %c0_8 = arith.constant 0 : index
    %c0_9 = arith.constant 0 : index
    %3 = vector.load %arg4[%c0_6, %c0_7, %c0_8, %c0_9] : memref<2x1x1x16xf32, #tpu.memory_space<vmem>>, vector<2x1x1x16xf32>
    %4 = vector.shape_cast %3 : vector<2x1x1x16xf32> to vector<2x1x16xf32>
    %5 = tpu.concatenate %2, %0, %4 in 1 : vector<2x1x16xf32>, vector<2x16x16xf32>, vector<2x1x16xf32> -> vector<2x18x16xf32>
    %6 = vector.extract_strided_slice %5 {offsets = [0, 0, 0], sizes = [2, 16, 16], strides = [1, 1, 1]} : vector<2x18x16xf32> to vector<2x16x16xf32>
    %cst = arith.constant 2.500000e-01 : f32
    %7 = vector.broadcast %cst : f32 to vector<2x16x16xf32>
    %8 = arith.mulf %7, %6 : vector<2x16x16xf32>
    %9 = vector.extract_strided_slice %5 {offsets = [0, 1, 0], sizes = [2, 16, 16], strides = [1, 1, 1]} : vector<2x18x16xf32> to vector<2x16x16xf32>
    %cst_10 = arith.constant 7.500000e-01 : f32
    %10 = vector.broadcast %cst_10 : f32 to vector<2x16x16xf32>
    %11 = arith.mulf %10, %9 : vector<2x16x16xf32>
    %12 = arith.addf %8, %11 : vector<2x16x16xf32>
    %cst_11 = arith.constant 0.000000e+00 : f32
    %13 = vector.broadcast %cst_11 : f32 to vector<2x16x1xf32>
    %cst_12 = arith.constant 0.000000e+00 : f32
    %14 = vector.broadcast %cst_12 : f32 to vector<2x16x1xf32>
    %15 = tpu.concatenate %13, %12, %14 in 2 : vector<2x16x1xf32>, vector<2x16x16xf32>, vector<2x16x1xf32> -> vector<2x16x18xf32>
    %16 = vector.extract_strided_slice %15 {offsets = [0, 0, 0], sizes = [2, 16, 16], strides = [1, 1, 1]} : vector<2x16x18xf32> to vector<2x16x16xf32>
    %cst_13 = arith.constant 2.500000e-01 : f32
    %17 = vector.broadcast %cst_13 : f32 to vector<2x16x16xf32>
    %18 = arith.mulf %17, %16 : vector<2x16x16xf32>
    %19 = vector.extract_strided_slice %15 {offsets = [0, 0, 1], sizes = [2, 16, 16], strides = [1, 1, 1]} : vector<2x16x18xf32> to vector<2x16x16xf32>
    %cst_14 = arith.constant 7.500000e-01 : f32
    %20 = vector.broadcast %cst_14 : f32 to vector<2x16x16xf32>
    %21 = arith.mulf %20, %19 : vector<2x16x16xf32>
    %22 = arith.addf %18, %21 : vector<2x16x16xf32>
    %23 = vector.extract_strided_slice %15 {offsets = [0, 0, 1], sizes = [2, 16, 16], strides = [1, 1, 1]} : vector<2x16x18xf32> to vector<2x16x16xf32>
    %cst_15 = arith.constant 7.500000e-01 : f32
    %24 = vector.broadcast %cst_15 : f32 to vector<2x16x16xf32>
    %25 = arith.mulf %24, %23 : vector<2x16x16xf32>
    %26 = vector.extract_strided_slice %15 {offsets = [0, 0, 2], sizes = [2, 16, 16], strides = [1, 1, 1]} : vector<2x16x18xf32> to vector<2x16x16xf32>
    %cst_16 = arith.constant 2.500000e-01 : f32
    %27 = vector.broadcast %cst_16 : f32 to vector<2x16x16xf32>
    %28 = arith.mulf %27, %26 : vector<2x16x16xf32>
    %29 = arith.addf %25, %28 : vector<2x16x16xf32>
    %30 = vector.shape_cast %22 : vector<2x16x16xf32> to vector<2x16x16x1xf32>
    %31 = vector.shape_cast %29 : vector<2x16x16xf32> to vector<2x16x16x1xf32>
    %32 = tpu.concatenate %30, %31 in 3 : vector<2x16x16x1xf32>, vector<2x16x16x1xf32> -> vector<2x16x16x2xf32>
    %33 = vector.shape_cast %32 : vector<2x16x16x2xf32> to vector<2x16x32xf32>
    %34 = vector.extract_strided_slice %5 {offsets = [0, 1, 0], sizes = [2, 16, 16], strides = [1, 1, 1]} : vector<2x18x16xf32> to vector<2x16x16xf32>
    %cst_17 = arith.constant 7.500000e-01 : f32
    %35 = vector.broadcast %cst_17 : f32 to vector<2x16x16xf32>
    %36 = arith.mulf %35, %34 : vector<2x16x16xf32>
    %37 = vector.extract_strided_slice %5 {offsets = [0, 2, 0], sizes = [2, 16, 16], strides = [1, 1, 1]} : vector<2x18x16xf32> to vector<2x16x16xf32>
    %cst_18 = arith.constant 2.500000e-01 : f32
    %38 = vector.broadcast %cst_18 : f32 to vector<2x16x16xf32>
    %39 = arith.mulf %38, %37 : vector<2x16x16xf32>
    %40 = arith.addf %36, %39 : vector<2x16x16xf32>
    %cst_19 = arith.constant 0.000000e+00 : f32
    %41 = vector.broadcast %cst_19 : f32 to vector<2x16x1xf32>
    %cst_20 = arith.constant 0.000000e+00 : f32
    %42 = vector.broadcast %cst_20 : f32 to vector<2x16x1xf32>
    %43 = tpu.concatenate %41, %40, %42 in 2 : vector<2x16x1xf32>, vector<2x16x16xf32>, vector<2x16x1xf32> -> vector<2x16x18xf32>
    %44 = vector.extract_strided_slice %43 {offsets = [0, 0, 0], sizes = [2, 16, 16], strides = [1, 1, 1]} : vector<2x16x18xf32> to vector<2x16x16xf32>
    %cst_21 = arith.constant 2.500000e-01 : f32
    %45 = vector.broadcast %cst_21 : f32 to vector<2x16x16xf32>
    %46 = arith.mulf %45, %44 : vector<2x16x16xf32>
    %47 = vector.extract_strided_slice %43 {offsets = [0, 0, 1], sizes = [2, 16, 16], strides = [1, 1, 1]} : vector<2x16x18xf32> to vector<2x16x16xf32>
    %cst_22 = arith.constant 7.500000e-01 : f32
    %48 = vector.broadcast %cst_22 : f32 to vector<2x16x16xf32>
    %49 = arith.mulf %48, %47 : vector<2x16x16xf32>
    %50 = arith.addf %46, %49 : vector<2x16x16xf32>
    %51 = vector.extract_strided_slice %43 {offsets = [0, 0, 1], sizes = [2, 16, 16], strides = [1, 1, 1]} : vector<2x16x18xf32> to vector<2x16x16xf32>
    %cst_23 = arith.constant 7.500000e-01 : f32
    %52 = vector.broadcast %cst_23 : f32 to vector<2x16x16xf32>
    %53 = arith.mulf %52, %51 : vector<2x16x16xf32>
    %54 = vector.extract_strided_slice %43 {offsets = [0, 0, 2], sizes = [2, 16, 16], strides = [1, 1, 1]} : vector<2x16x18xf32> to vector<2x16x16xf32>
    %cst_24 = arith.constant 2.500000e-01 : f32
    %55 = vector.broadcast %cst_24 : f32 to vector<2x16x16xf32>
    %56 = arith.mulf %55, %54 : vector<2x16x16xf32>
    %57 = arith.addf %53, %56 : vector<2x16x16xf32>
    %58 = vector.shape_cast %50 : vector<2x16x16xf32> to vector<2x16x16x1xf32>
    %59 = vector.shape_cast %57 : vector<2x16x16xf32> to vector<2x16x16x1xf32>
    %60 = tpu.concatenate %58, %59 in 3 : vector<2x16x16x1xf32>, vector<2x16x16x1xf32> -> vector<2x16x16x2xf32>
    %61 = vector.shape_cast %60 : vector<2x16x16x2xf32> to vector<2x16x32xf32>
    %62 = tpu.concatenate %33, %61 in 2 : vector<2x16x32xf32>, vector<2x16x32xf32> -> vector<2x16x64xf32>
    %c0_25 = arith.constant 0 : index
    %c0_26 = arith.constant 0 : index
    %c0_27 = arith.constant 0 : index
    %63 = vector.load %arg5[%c0_25, %c0_26, %c0_27] : memref<2x16x64xf32, #tpu.memory_space<vmem>>, vector<2x16x64xf32>
    tpu.vector_store %arg5[%c0_25, %c0_26, %c0_27], %62 {strides = array<i32>} : memref<2x16x64xf32, #tpu.memory_space<vmem>>, vector<2x16x64xf32>,
    return
  }
  func.func @transform_0(%arg0: i32, %arg1: i32) -> (i32, i32, i32) {
    %c0_i32 = arith.constant 0 : i32
    %c0_i32_0 = arith.constant 0 : i32
    return %arg0, %arg1, %c0_i32 : i32, i32, i32
  }
  func.func @transform_1(%arg0: i32, %arg1: i32) -> (i32, i32, i32, i32) {
    %c0_i32 = arith.constant 0 : i32
    %c0_i32_0 = arith.constant 0 : i32
    %c0_i32_1 = arith.constant 0 : i32
    return %arg0, %arg1, %c0_i32, %c0_i32_0 : i32, i32, i32, i32
  }
  func.func @transform_2(%arg0: i32, %arg1: i32) -> (i32, i32, i32, i32) {
    %c0_i32 = arith.constant 0 : i32
    %c0_i32_0 = arith.constant 0 : i32
    %c0_i32_1 = arith.constant 0 : i32
    return %arg0, %arg1, %c0_i32, %c0_i32_0 : i32, i32, i32, i32
  }
  func.func @transform_3(%arg0: i32, %arg1: i32) -> (i32, i32, i32) {
    %c0_i32 = arith.constant 0 : i32
    %c0_i32_0 = arith.constant 0 : i32
    return %arg0, %arg1, %c0_i32 : i32, i32, i32
  }
}

</mosaic_0001>

<llo_original>
// kernel: tpu_custom_call.1
$region0: #{tpu_custom_call.1}
  #allocation0 [shape = 'u32[]', space=smem, size = 0x4, offset = 0x4, fixed_abs, tag = 'smem constant byte address 0x4 - core index']
  #allocation1 [shape = 'u32[72,128]{1,0:T(1,128)}', space=vmem, size = 0x9000, scoped, tag = 'internal scratch']
  %s0 = inlined_call_operand.hbm [shape: f32[8,16,16], index: 0, kind: input, shape index: {}]
  %s1 = inlined_call_operand.hbm [shape: f32[8,1,1,16], index: 1, kind: input, shape index: {}]
  %s2 = inlined_call_operand.hbm [shape: f32[8,1,1,16], index: 2, kind: input, shape index: {}]
  %s3 = inlined_call_operand.hbm [shape: f32[8,16,64], index: 3, kind: output, shape index: {}]
  %s4 = sld [smem:[#allocation0]]
  $region57: #{tpu_custom_call.1} parent=0
    _
  %s6 = ssub.s32 1, %s4
  %s7 = scalar_select 0, %s6, %s4
  $region1: #{tpu_custom_call.1} parent=0
    #allocation2 [shape = 'u8[32768]{0}', space=vmem, size = 0x8000, scoped, tag = 'input window, operand 0']
    #allocation3 [shape = 's32[2]{0}', space=sflag, size = 0x8, scoped, tag = 'scoped memory for tpu_custom_call.1']
    #allocation4 [shape = 's32[2]{0}', space=sflag, size = 0x8, scoped, tag = 'scoped memory for tpu_custom_call.1']
    #allocation5 [shape = 'u8[2048]{0}', space=vmem, size = 0x800, scoped, tag = 'input window, operand 1']
    #allocation6 [shape = 's32[2]{0}', space=sflag, size = 0x8, scoped, tag = 'scoped memory for tpu_custom_call.1']
    #allocation7 [shape = 'u8[2048]{0}', space=vmem, size = 0x800, scoped, tag = 'input window, operand 2']
    #allocation8 [shape = 'u8[32768]{0}', space=vmem, size = 0x8000, scoped, tag = 'output window, operand 0']
    %8 = vsyncpa [#allocation3], 0
    %s9 = scalar_lea.sflag [#allocation3], 1
    %10 = vsyncpa %s9, 0
    %11 = vsyncpa [#allocation6], 0
    %s12 = scalar_lea.sflag [#allocation6], 1
    %13 = vsyncpa %s12, 0
    %14 = vsyncpa [#allocation4], 0
    %s15 = scalar_lea.sflag [#allocation4], 1
    %16 = vsyncpa %s15, 0
    loop: start=0, step=1, limit=6
    $region2: #{tpu_custom_call.1} parent=1 // loop_pre_header
      _
    $region3: #{tpu_custom_call.1} parent=1 // loop_header
      %s18 = sphi 0, %s22
      %p19 = scmp.ge.s32.totalorder %s18, 6
      %s25 = sphi 0, %s37
      %s26 = sphi 0, %s33
      %s27 = sphi 0, %s25
      %s28 = sphi 0, %s26
      %s29 = sphi 0, %s27
      %s30 = sphi 0, %s28
      %s42 = sphi 0, %s44
      %s45 = sphi 0, %s42
      %s46 = sphi 0, %s45
      %s62 = sphi 0, %s46
      %s70 = sphi 0, %s72
      %s73 = sphi 0, %s70
      %s74 = sphi 0, %s73
      %s90 = sphi 0, %s74
      %s98 = sphi 0, %s100
      %s101 = sphi 0, %s98
      %s102 = sphi 0, %s101
      %s118 = sphi 0, %s102
      %s126 = sphi 0, %s128
      %s129 = sphi 0, %s126
      %s130 = sphi 0, %s129
      %s146 = sphi 0, %s130
    $region4: #{tpu_custom_call.1} parent=1 // loop_header_branch
      %21 = sbr.rel (%p19) target = $region8
    $region5: #{tpu_custom_call.1} parent=1 // loop_body
      %s23 = ssub.s32 %s18, 1
      %s24 = ssub.s32 %s18, 2
      %s31 = sadd.s32 1, %s26
      %p32 = scmp.ge.s32.totalorder %s31, 1
      %s33 = scalar_select %p32, 0, %s31
      %s34 = sadd.s32 1, %s25
      %s35 = scalar_select %p32, %s34, %s25
      %p36 = scmp.ge.s32.totalorder %s35, 4
      %s37 = scalar_select %p36, 0, %s35
      %s38 = ssub.s32 %s25, %s37
      %s39 = ssub.s32 %s26, %s33
      %s40 = sor.u32 %s38, %s39
      %p41 = scmp.eq.s32.totalorder %s40, 0
      %s43 = sadd.s32 %s42, 1
      %s44 = scalar_select %p41, %s42, %s43
      %p47 = pneg %p41
      %p48 = scmp.eq.s32.totalorder %s18, 3
      %p49 = por %p47, %p48
      %p50 = scmp.ne.s32.totalorder %s42, %s45
      %p51 = scmp.eq.s32.totalorder %s18, 0
      %p52 = por %p50, %p51
      %p53 = scmp.ne.s32.totalorder %s42, %s45
      %p54 = scmp.eq.s32.totalorder %s23, 3
      %p55 = por %p53, %p54
      %p56 = scmp.ne.s32.totalorder %s45, %s46
      %p57 = scmp.eq.s32.totalorder %s23, 0
      %p58 = por %p56, %p57
      %p59 = scmp.ne.s32.totalorder %s45, %s46
      %p60 = scmp.eq.s32.totalorder %s24, 3
      %p61 = por %p59, %p60
      %p63 = scmp.ne.s32.totalorder %s46, %s62
      %p64 = scmp.eq.s32.totalorder %s24, 0
      %p65 = por %p63, %p64
      %s66 = ssub.s32 %s25, %s37
      %s67 = ssub.s32 %s26, %s33
      %s68 = sor.u32 %s66, %s67
      %p69 = scmp.eq.s32.totalorder %s68, 0
      %s71 = sadd.s32 %s70, 1
      %s72 = scalar_select %p69, %s70, %s71
      %p75 = pneg %p69
      %p76 = scmp.eq.s32.totalorder %s18, 3
      %p77 = por %p75, %p76
      %p78 = scmp.ne.s32.totalorder %s70, %s73
      %p79 = scmp.eq.s32.totalorder %s18, 0
      %p80 = por %p78, %p79
      %p81 = scmp.ne.s32.totalorder %s70, %s73
      %p82 = scmp.eq.s32.totalorder %s23, 3
      %p83 = por %p81, %p82
      %p84 = scmp.ne.s32.totalorder %s73, %s74
      %p85 = scmp.eq.s32.totalorder %s23, 0
      %p86 = por %p84, %p85
      %p87 = scmp.ne.s32.totalorder %s73, %s74
      %p88 = scmp.eq.s32.totalorder %s24, 3
      %p89 = por %p87, %p88
      %p91 = scmp.ne.s32.totalorder %s74, %s90
      %p92 = scmp.eq.s32.totalorder %s24, 0
      %p93 = por %p91, %p92
      %s94 = ssub.s32 %s25, %s37
      %s95 = ssub.s32 %s26, %s33
      %s96 = sor.u32 %s94, %s95
      %p97 = scmp.eq.s32.totalorder %s96, 0
      %s99 = sadd.s32 %s98, 1
      %s100 = scalar_select %p97, %s98, %s99
      %p103 = pneg %p97
      %p104 = scmp.eq.s32.totalorder %s18, 3
      %p105 = por %p103, %p104
      %p106 = scmp.ne.s32.totalorder %s98, %s101
      %p107 = scmp.eq.s32.totalorder %s18, 0
      %p108 = por %p106, %p107
      %p109 = scmp.ne.s32.totalorder %s98, %s101
      %p110 = scmp.eq.s32.totalorder %s23, 3
      %p111 = por %p109, %p110
      %p112 = scmp.ne.s32.totalorder %s101, %s102
      %p113 = scmp.eq.s32.totalorder %s23, 0
      %p114 = por %p112, %p113
      %p115 = scmp.ne.s32.totalorder %s101, %s102
      %p116 = scmp.eq.s32.totalorder %s24, 3
      %p117 = por %p115, %p116
      %p119 = scmp.ne.s32.totalorder %s102, %s118
      %p120 = scmp.eq.s32.totalorder %s24, 0
      %p121 = por %p119, %p120
      %s122 = ssub.s32 %s25, %s37
      %s123 = ssub.s32 %s26, %s33
      %s124 = sor.u32 %s122, %s123
      %p125 = scmp.eq.s32.totalorder %s124, 0
      %s127 = sadd.s32 %s126, 1
      %s128 = scalar_select %p125, %s126, %s127
      %p131 = pneg %p125
      %p132 = scmp.eq.s32.totalorder %s18, 3
      %p133 = por %p131, %p132
      %p134 = scmp.ne.s32.totalorder %s126, %s129
      %p135 = scmp.eq.s32.totalorder %s18, 0
      %p136 = por %p134, %p135
      %p137 = scmp.ne.s32.totalorder %s126, %s129
      %p138 = scmp.eq.s32.totalorder %s23, 3
      %p139 = por %p137, %p138
      %p140 = scmp.ne.s32.totalorder %s129, %s130
      %p141 = scmp.eq.s32.totalorder %s23, 0
      %p142 = por %p140, %p141
      %p143 = scmp.ne.s32.totalorder %s129, %s130
      %p144 = scmp.eq.s32.totalorder %s24, 3
      %p145 = por %p143, %p144
      %p147 = scmp.ne.s32.totalorder %s130, %s146
      %p148 = scmp.eq.s32.totalorder %s24, 0
      %p149 = por %p147, %p148
      %p150 = scmp.le.s32.totalorder 1, %s18
      %p151 = scmp.lt.s32.totalorder %s18, 5
      %p152 = pnand %p150, %p151
      %p153 = pneg %p152
      // Predicated region
      $region9: #{tpu_custom_call.1} parent=5 // pred_check
        _
      $region10: #{tpu_custom_call.1} parent=5 // pred_check_branch
        %155 = sbr.rel (%p152) target = $region12
      $region11: #{tpu_custom_call.1} parent=5 // pred_region
        %s156 = ssub.s32 %s18, 1
      $region12: #{tpu_custom_call.1} parent=5 // pred_fallthru
        _
      %p157 = scmp.lt.s32.totalorder %s18, 4
      // Predicated region
      $region13: #{tpu_custom_call.1} parent=5 // pred_check
        %p158 = pneg %p157
      $region14: #{tpu_custom_call.1} parent=5 // pred_check_branch
        %160 = sbr.rel (%p158) target = $region16
      $region15: #{tpu_custom_call.1} parent=5 // pred_region
        // Predicated region
        $region17: #{tpu_custom_call.1} parent=15 // pred_check
          %p161 = pneg %p52
        $region18: #{tpu_custom_call.1} parent=15 // pred_check_branch
          %163 = sbr.rel (%p161) target = $region20
        $region19: #{tpu_custom_call.1} parent=15 // pred_region
          %s164 = sand.u32 %s42, 1
          %s165 = scalar_lea.sflag [#allocation3], %s164
          %s166 = sand.u32 %s42, 1
          %s167 = smul.addr %s166, 32
          %s168 = scalar_lea.vmem [#allocation2], %s167
          %s169 = smul.u32 2, %s25
          %s170 = smul.u32 2, %s26
          %172 = vsyncadd %s165, 0
          %s173 = smul.addr %s169, 2
          %s174 = sadd.s32 %s170, %s173
          %s175 = smul.addr %s174, 8
          %s176 = scalar_lea.hbm %s0, %s175
          %s177 = sshll.u32 %s176, 4
          %s178 = int_to_ptr.hbm [resolvable:$true] %s177
          %s179 = sshll.u32 %s168, 4
          %s180 = int_to_ptr.vmem [resolvable:$true] %s179
          %185 = dma.hbm_to_vmem [thread:$0]  %s178, 512, %s180, %s165, 128, 128, 8
        $region20: #{tpu_custom_call.1} parent=15 // pred_fallthru
          _
        // Predicated region
        $region21: #{tpu_custom_call.1} parent=15 // pred_check
          %p186 = pneg %p80
        $region22: #{tpu_custom_call.1} parent=15 // pred_check_branch
          %188 = sbr.rel (%p186) target = $region24
        $region23: #{tpu_custom_call.1} parent=15 // pred_region
          %s189 = sand.u32 %s18, 1
          %s190 = scalar_lea.sflag [#allocation6], %s189
          %s191 = sand.u32 %s70, 1
          %s192 = smul.addr %s191, 2
          %s193 = scalar_lea.vmem [#allocation5], %s192
          %s194 = smul.u32 2, %s25
          %196 = vsyncadd %s190, 0
          %s197 = sadd.s32 %s26, %s194
          %s198 = scalar_lea.hbm %s1, %s197
          %s199 = sshll.u32 %s198, 4
          %s200 = int_to_ptr.hbm [resolvable:$true] %s199
          %s201 = sshll.u32 %s193, 4
          %s202 = int_to_ptr.vmem [resolvable:$true] %s201
          %207 = dma.hbm_to_vmem [thread:$0]  %s200, 32, %s202, %s190, 16, 16, 1
        $region24: #{tpu_custom_call.1} parent=15 // pred_fallthru
          _
        // Predicated region
        $region25: #{tpu_custom_call.1} parent=15 // pred_check
          %p208 = pneg %p108
        $region26: #{tpu_custom_call.1} parent=15 // pred_check_branch
          %210 = sbr.rel (%p208) target = $region28
        $region27: #{tpu_custom_call.1} parent=15 // pred_region
          %s211 = sand.u32 %s18, 1
          %s212 = scalar_lea.sflag [#allocation6], %s211
          %s213 = sand.u32 %s98, 1
          %s214 = smul.addr %s213, 2
          %s215 = scalar_lea.vmem [#allocation7], %s214
          %s216 = smul.u32 2, %s25
          %218 = vsyncadd %s212, 0
          %s219 = sadd.s32 %s26, %s216
          %s220 = scalar_lea.hbm %s2, %s219
          %s221 = sshll.u32 %s220, 4
          %s222 = int_to_ptr.hbm [resolvable:$true] %s221
          %s223 = sshll.u32 %s215, 4
          %s224 = int_to_ptr.vmem [resolvable:$true] %s223
          %229 = dma.hbm_to_vmem [thread:$0]  %s222, 32, %s224, %s212, 16, 16, 1
        $region28: #{tpu_custom_call.1} parent=15 // pred_fallthru
          _
      $region16: #{tpu_custom_call.1} parent=5 // pred_fallthru
        _
      %p230 = scmp.le.s32.totalorder 1, %s18
      %p231 = scmp.lt.s32.totalorder %s18, 5
      %p232 = pnand %p230, %p231
      %p233 = pneg %p232
      // Predicated region
      $region29: #{tpu_custom_call.1} parent=5 // pred_check
        _
      $region30: #{tpu_custom_call.1} parent=5 // pred_check_branch
        %235 = sbr.rel (%p232) target = $region32
      $region31: #{tpu_custom_call.1} parent=5 // pred_region
        %s236 = ssub.s32 %s18, 1
        %s237 = sand.u32 %s45, 1
        %s238 = scalar_lea.sflag [#allocation3], %s237
        %s239 = sand.u32 %s45, 1
        %s240 = smul.addr %s239, 32
        %s241 = scalar_lea.vmem [#allocation2], %s240
        // Predicated region
        $region33: #{tpu_custom_call.1} parent=31 // pred_check
          %p242 = pneg %p58
        $region34: #{tpu_custom_call.1} parent=31 // pred_check_branch
          %244 = sbr.rel (%p242) target = $region36
        $region35: #{tpu_custom_call.1} parent=31 // pred_region
          %246 = dma.done %s238, 512
        $region36: #{tpu_custom_call.1} parent=31 // pred_fallthru
          _
        %s247 = sand.u32 %s23, 1
        %s248 = scalar_lea.sflag [#allocation6], %s247
        %s249 = sand.u32 %s73, 1
        %s250 = smul.addr %s249, 2
        %s251 = scalar_lea.vmem [#allocation5], %s250
        // Predicated region
        $region37: #{tpu_custom_call.1} parent=31 // pred_check
          %p252 = pneg %p86
        $region38: #{tpu_custom_call.1} parent=31 // pred_check_branch
          %254 = sbr.rel (%p252) target = $region40
        $region39: #{tpu_custom_call.1} parent=31 // pred_region
          %256 = dma.done %s248, 32
        $region40: #{tpu_custom_call.1} parent=31 // pred_fallthru
          _
        %s257 = sand.u32 %s23, 1
        %s258 = scalar_lea.sflag [#allocation6], %s257
        %s259 = sand.u32 %s101, 1
        %s260 = smul.addr %s259, 2
        %s261 = scalar_lea.vmem [#allocation7], %s260
        // Predicated region
        $region41: #{tpu_custom_call.1} parent=31 // pred_check
          %p262 = pneg %p114
        $region42: #{tpu_custom_call.1} parent=31 // pred_check_branch
          %264 = sbr.rel (%p262) target = $region44
        $region43: #{tpu_custom_call.1} parent=31 // pred_region
          %266 = dma.done %s258, 32
        $region44: #{tpu_custom_call.1} parent=31 // pred_fallthru
          _
        %s267 = sand.u32 %s45, 1
        %s268 = scalar_lea.sflag [#allocation3], %s267
        %s269 = sand.u32 %s45, 1
        %s270 = smul.addr %s269, 32
        %s271 = scalar_lea.vmem [#allocation2], %s270
        %p272 = pneg %p58
        %p273 = pneg %p55
        %s274 = sand.u32 %s23, 1
        %s275 = scalar_lea.sflag [#allocation6], %s274
        %s276 = sand.u32 %s73, 1
        %s277 = smul.addr %s276, 2
        %s278 = scalar_lea.vmem [#allocation5], %s277
        %p279 = pneg %p86
        %p280 = pneg %p83
        %s281 = sand.u32 %s23, 1
        %s282 = scalar_lea.sflag [#allocation6], %s281
        %s283 = sand.u32 %s101, 1
        %s284 = smul.addr %s283, 2
        %s285 = scalar_lea.vmem [#allocation7], %s284
        %p286 = pneg %p114
        %p287 = pneg %p111
        %p288 = pneg %p142
        %p289 = pneg %p139
        %s290 = sand.u32 %s129, 1
        %s291 = scalar_lea.sflag [#allocation4], %s290
        %s292 = sand.u32 %s129, 1
        %s293 = smul.addr %s292, 32
        %s294 = scalar_lea.vmem [#allocation8], %s293
        %s295 = smul.u32 2, %s27
        %s296 = smul.u32 2, %s28
        %s297 = smul.u32 2, %s27
        %s298 = smul.u32 2, %s27
        %s299 = smul.u32 2, %s27
        %s300 = smul.u32 2, %s28
        %v301 = vld [vmem:[%s241] sm:$0xff]
        %v302 = vld [vmem:[%s241 + $0x8] sm:$0xff]
        %v303 = vld [vmem:[%s241 + $0x10] sm:$0xff]
        %v304 = vld [vmem:[%s241 + $0x18] sm:$0xff]
        %v305 = vld [vmem:[%s251] sm:$0x1]
        %v306 = vld [vmem:[%s251 + $0x1] sm:$0x1]
        %v307 = vld [vmem:[%s261] sm:$0x1]
        %v308 = vld [vmem:[%s261 + $0x1] sm:$0x1]
        %vm313 = vcmask 1040384
        %v314 = vrot.slane %v301, 7
        %v315 = vrot.slane %v302, 7
        %v316 = vsel %vm313, %v314, %v315
        %v317 = vrot.slane %v303, 7
        %v318 = vrot.slane %v304, 7
        %v319 = vsel %vm313, %v317, %v318
        %v328 = vperm.slane %v307, 0
        %v329 = vperm.slane %v308, 0
        %v332 = vsel %vm313, %v305, %v314
        %v333 = vsel %vm313, %v306, %v317
        %v334 = vsel %vm313, %v315, %v328
        %v335 = vsel %vm313, %v318, %v329
        %v336 = vmul.f32 %v332, 0.25
        %v337 = vmul.f32 %v316, 0.25
        %v338 = vmul.f32 %v333, 0.25
        %v339 = vmul.f32 %v319, 0.25
        %v340 = vmul.f32 %v332, 0.75
        %v341 = vmul.f32 %v316, 0.75
        %v342 = vmul.f32 %v334, 0.75
        %v343 = vmul.f32 %v333, 0.75
        %v344 = vmul.f32 %v319, 0.75
        %v345 = vmul.f32 %v335, 0.75
        %vm352 = vcmask 1046528
        %v353 = vrot.slane %v340, 1
        %v354 = vrot.slane %v341, 1
        %v355 = vsel %vm352, %v353, %v354
        %v356 = vrot.slane %v342, 1
        %v357 = vsel %vm352, %v354, %v356
        %v358 = vrot.slane %v343, 1
        %v359 = vrot.slane %v344, 1
        %v360 = vsel %vm352, %v358, %v359
        %v361 = vrot.slane %v345, 1
        %v362 = vsel %vm352, %v359, %v361
        %v367 = vadd.f32 %v336, %v355
        %v368 = vadd.f32 %v337, %v357
        %v369 = vadd.f32 %v338, %v360
        %v370 = vadd.f32 %v339, %v362
        %375 = vrot.lane.b32.xlu0 %v367, 1
        %v376 = vpop.permute.xlu0 %375
        %377 = vrot.lane.b32.xlu0 %v368, 1
        %v378 = vpop.permute.xlu0 %377
        %379 = vrot.lane.b32.xlu0 %v369, 1
        %v380 = vpop.permute.xlu0 %379
        %381 = vrot.lane.b32.xlu0 %v370, 1
        %v382 = vpop.permute.xlu0 %381
        %vm387 = vcmask 7168
        %v388 = vsel %vm387, 0.0, %v376
        %v389 = vsel %vm387, 0.0, %v378
        %v390 = vsel %vm387, 0.0, %v380
        %v391 = vsel %vm387, 0.0, %v382
        %vm392 = vcmask 138240
        %v393 = vsel %vm392, %v388, 0.0
        %v394 = vsel %vm392, %v389, 0.0
        %v395 = vsel %vm392, %v390, 0.0
        %v396 = vsel %vm392, %v391, 0.0
        %v397 = vmul.f32 %v393, 0.25
        %v398 = vmul.f32 %v394, 0.25
        %v399 = vmul.f32 %v395, 0.25
        %v400 = vmul.f32 %v396, 0.25
        %v401 = vmul.f32 %v393, 0.75
        %v402 = vmul.f32 %v394, 0.75
        %v403 = vmul.f32 %v395, 0.75
        %v404 = vmul.f32 %v396, 0.75
        %409 = vrot.lane.b32.xlu0 %v401, 127
        %v410 = vpop.permute.xlu0 %409
        %411 = vrot.lane.b32.xlu0 %v402, 127
        %v412 = vpop.permute.xlu0 %411
        %413 = vrot.lane.b32.xlu0 %v403, 127
        %v414 = vpop.permute.xlu0 %413
        %415 = vrot.lane.b32.xlu0 %v404, 127
        %v416 = vpop.permute.xlu0 %415
        %v421 = vadd.f32 %v397, %v410
        %v422 = vadd.f32 %v398, %v412
        %v423 = vadd.f32 %v399, %v414
        %v424 = vadd.f32 %v400, %v416
        %429 = vrot.lane.b32.xlu0 %v397, 127
        %v430 = vpop.permute.xlu0 %429
        %431 = vrot.lane.b32.xlu0 %v398, 127
        %v432 = vpop.permute.xlu0 %431
        %433 = vrot.lane.b32.xlu0 %v399, 127
        %v434 = vpop.permute.xlu0 %433
        %435 = vrot.lane.b32.xlu0 %v400, 127
        %v436 = vpop.permute.xlu0 %435
        %v441 = vadd.f32 %v401, %v430
        %v442 = vadd.f32 %v402, %v432
        %v443 = vadd.f32 %v403, %v434
        %v444 = vadd.f32 %v404, %v436
        %v445 = vperm.slane %v421, 0
        %v446 = vlaneseq
        %v447 = vshrl.u32 %v446, 7
        %449 = vset.pattern.permute.xlu0 %v447
        %450 = vperm.xlu0 %449, %v445
        %v451 = vpop.permute.xlu0 %450
        %v452 = vlaneseq
        %v453 = vshrl.u32 %v452, 7
        %v454 = vadd.s32 %v453, 8
        %455 = vset.pattern.permute.xlu0 %v454
        %456 = vperm.xlu0 %455, %v445
        %v457 = vpop.permute.xlu0 %456
        %v458 = vperm.slane %v421, 1
        %v459 = vlaneseq
        %v460 = vshrl.u32 %v459, 7
        %462 = vset.pattern.permute.xlu0 %v460
        %463 = vperm.xlu0 %462, %v458
        %v464 = vpop.permute.xlu0 %463
        %v465 = vlaneseq
        %v466 = vshrl.u32 %v465, 7
        %v467 = vadd.s32 %v466, 8
        %468 = vset.pattern.permute.xlu0 %v467
        %469 = vperm.xlu0 %468, %v458
        %v470 = vpop.permute.xlu0 %469
        %v471 = vperm.slane %v421, 2
        %v472 = vlaneseq
        %v473 = vshrl.u32 %v472, 7
        %475 = vset.pattern.permute.xlu0 %v473
        %476 = vperm.xlu0 %475, %v471
        %v477 = vpop.permute.xlu0 %476
        %v478 = vlaneseq
        %v479 = vshrl.u32 %v478, 7
        %v480 = vadd.s32 %v479, 8
        %481 = vset.pattern.permute.xlu0 %v480
        %482 = vperm.xlu0 %481, %v471
        %v483 = vpop.permute.xlu0 %482
        %v484 = vperm.slane %v421, 3
        %v485 = vlaneseq
        %v486 = vshrl.u32 %v485, 7
        %488 = vset.pattern.permute.xlu0 %v486
        %489 = vperm.xlu0 %488, %v484
        %v490 = vpop.permute.xlu0 %489
        %v491 = vlaneseq
        %v492 = vshrl.u32 %v491, 7
        %v493 = vadd.s32 %v492, 8
        %494 = vset.pattern.permute.xlu0 %v493
        %495 = vperm.xlu0 %494, %v484
        %v496 = vpop.permute.xlu0 %495
        %v497 = vperm.slane %v421, 4
        %v498 = vlaneseq
        %v499 = vshrl.u32 %v498, 7
        %501 = vset.pattern.permute.xlu0 %v499
        %502 = vperm.xlu0 %501, %v497
        %v503 = vpop.permute.xlu0 %502
        %v504 = vlaneseq
        %v505 = vshrl.u32 %v504, 7
        %v506 = vadd.s32 %v505, 8
        %507 = vset.pattern.permute.xlu0 %v506
        %508 = vperm.xlu0 %507, %v497
        %v509 = vpop.permute.xlu0 %508
        %v510 = vperm.slane %v421, 5
        %v511 = vlaneseq
        %v512 = vshrl.u32 %v511, 7
        %514 = vset.pattern.permute.xlu0 %v512
        %515 = vperm.xlu0 %514, %v510
        %v516 = vpop.permute.xlu0 %515
        %v517 = vlaneseq
        %v518 = vshrl.u32 %v517, 7
        %v519 = vadd.s32 %v518, 8
        %520 = vset.pattern.permute.xlu0 %v519
        %521 = vperm.xlu0 %520, %v510
        %v522 = vpop.permute.xlu0 %521
        %v523 = vperm.slane %v421, 6
        %v524 = vlaneseq
        %v525 = vshrl.u32 %v524, 7
        %527 = vset.pattern.permute.xlu0 %v525
        %528 = vperm.xlu0 %527, %v523
        %v529 = vpop.permute.xlu0 %528
        %v530 = vlaneseq
        %v531 = vshrl.u32 %v530, 7
        %v532 = vadd.s32 %v531, 8
        %533 = vset.pattern.permute.xlu0 %v532
        %534 = vperm.xlu0 %533, %v523
        %v535 = vpop.permute.xlu0 %534
        %v536 = vperm.slane %v421, 7
        %v537 = vlaneseq
        %v538 = vshrl.u32 %v537, 7
        %540 = vset.pattern.permute.xlu0 %v538
        %541 = vperm.xlu0 %540, %v536
        %v542 = vpop.permute.xlu0 %541
        %v543 = vlaneseq
        %v544 = vshrl.u32 %v543, 7
        %v545 = vadd.s32 %v544, 8
        %546 = vset.pattern.permute.xlu0 %v545
        %547 = vperm.xlu0 %546, %v536
        %v548 = vpop.permute.xlu0 %547
        %v549 = vperm.slane %v422, 0
        %v550 = vlaneseq
        %v551 = vshrl.u32 %v550, 7
        %553 = vset.pattern.permute.xlu0 %v551
        %554 = vperm.xlu0 %553, %v549
        %v555 = vpop.permute.xlu0 %554
        %v556 = vlaneseq
        %v557 = vshrl.u32 %v556, 7
        %v558 = vadd.s32 %v557, 8
        %559 = vset.pattern.permute.xlu0 %v558
        %560 = vperm.xlu0 %559, %v549
        %v561 = vpop.permute.xlu0 %560
        %v562 = vperm.slane %v422, 1
        %v563 = vlaneseq
        %v564 = vshrl.u32 %v563, 7
        %566 = vset.pattern.permute.xlu0 %v564
        %567 = vperm.xlu0 %566, %v562
        %v568 = vpop.permute.xlu0 %567
        %v569 = vlaneseq
        %v570 = vshrl.u32 %v569, 7
        %v571 = vadd.s32 %v570, 8
        %572 = vset.pattern.permute.xlu0 %v571
        %573 = vperm.xlu0 %572, %v562
        %v574 = vpop.permute.xlu0 %573
        %v575 = vperm.slane %v422, 2
        %v576 = vlaneseq
        %v577 = vshrl.u32 %v576, 7
        %579 = vset.pattern.permute.xlu0 %v577
        %580 = vperm.xlu0 %579, %v575
        %v581 = vpop.permute.xlu0 %580
        %v582 = vlaneseq
        %v583 = vshrl.u32 %v582, 7
        %v584 = vadd.s32 %v583, 8
        %585 = vset.pattern.permute.xlu0 %v584
        %586 = vperm.xlu0 %585, %v575
        %v587 = vpop.permute.xlu0 %586
        %v588 = vperm.slane %v422, 3
        %v589 = vlaneseq
        %v590 = vshrl.u32 %v589, 7
        %592 = vset.pattern.permute.xlu0 %v590
        %593 = vperm.xlu0 %592, %v588
        %v594 = vpop.permute.xlu0 %593
        %v595 = vlaneseq
        %v596 = vshrl.u32 %v595, 7
        %v597 = vadd.s32 %v596, 8
        %598 = vset.pattern.permute.xlu0 %v597
        %599 = vperm.xlu0 %598, %v588
        %v600 = vpop.permute.xlu0 %599
        %v601 = vperm.slane %v422, 4
        %v602 = vlaneseq
        %v603 = vshrl.u32 %v602, 7
        %605 = vset.pattern.permute.xlu0 %v603
        %606 = vperm.xlu0 %605, %v601
        %v607 = vpop.permute.xlu0 %606
        %v608 = vlaneseq
        %v609 = vshrl.u32 %v608, 7
        %v610 = vadd.s32 %v609, 8
        %611 = vset.pattern.permute.xlu0 %v610
        %612 = vperm.xlu0 %611, %v601
        %v613 = vpop.permute.xlu0 %612
        %v614 = vperm.slane %v422, 5
        %v615 = vlaneseq
        %v616 = vshrl.u32 %v615, 7
        %618 = vset.pattern.permute.xlu0 %v616
        %619 = vperm.xlu0 %618, %v614
        %v620 = vpop.permute.xlu0 %619
        %v621 = vlaneseq
        %v622 = vshrl.u32 %v621, 7
        %v623 = vadd.s32 %v622, 8
        %624 = vset.pattern.permute.xlu0 %v623
        %625 = vperm.xlu0 %624, %v614
        %v626 = vpop.permute.xlu0 %625
        %v627 = vperm.slane %v422, 6
        %v628 = vlaneseq
        %v629 = vshrl.u32 %v628, 7
        %631 = vset.pattern.permute.xlu0 %v629
        %632 = vperm.xlu0 %631, %v627
        %v633 = vpop.permute.xlu0 %632
        %v634 = vlaneseq
        %v635 = vshrl.u32 %v634, 7
        %v636 = vadd.s32 %v635, 8
        %637 = vset.pattern.permute.xlu0 %v636
        %638 = vperm.xlu0 %637, %v627
        %v639 = vpop.permute.xlu0 %638
        %v640 = vperm.slane %v422, 7
        %v641 = vlaneseq
        %v642 = vshrl.u32 %v641, 7
        %644 = vset.pattern.permute.xlu0 %v642
        %645 = vperm.xlu0 %644, %v640
        %v646 = vpop.permute.xlu0 %645
        %v647 = vlaneseq
        %v648 = vshrl.u32 %v647, 7
        %v649 = vadd.s32 %v648, 8
        %650 = vset.pattern.permute.xlu0 %v649
        %651 = vperm.xlu0 %650, %v640
        %v652 = vpop.permute.xlu0 %651
        %v653 = vperm.slane %v423, 0
        %v654 = vlaneseq
        %v655 = vshrl.u32 %v654, 7
        %657 = vset.pattern.permute.xlu0 %v655
        %658 = vperm.xlu0 %657, %v653
        %v659 = vpop.permute.xlu0 %658
        %v660 = vlaneseq
        %v661 = vshrl.u32 %v660, 7
        %v662 = vadd.s32 %v661, 8
        %663 = vset.pattern.permute.xlu0 %v662
        %664 = vperm.xlu0 %663, %v653
        %v665 = vpop.permute.xlu0 %664
        %v666 = vperm.slane %v423, 1
        %v667 = vlaneseq
        %v668 = vshrl.u32 %v667, 7
        %670 = vset.pattern.permute.xlu0 %v668
        %671 = vperm.xlu0 %670, %v666
        %v672 = vpop.permute.xlu0 %671
        %v673 = vlaneseq
        %v674 = vshrl.u32 %v673, 7
        %v675 = vadd.s32 %v674, 8
        %676 = vset.pattern.permute.xlu0 %v675
        %677 = vperm.xlu0 %676, %v666
        %v678 = vpop.permute.xlu0 %677
        %v679 = vperm.slane %v423, 2
        %v680 = vlaneseq
        %v681 = vshrl.u32 %v680, 7
        %683 = vset.pattern.permute.xlu0 %v681
        %684 = vperm.xlu0 %683, %v679
        %v685 = vpop.permute.xlu0 %684
        %v686 = vlaneseq
        %v687 = vshrl.u32 %v686, 7
        %v688 = vadd.s32 %v687, 8
        %689 = vset.pattern.permute.xlu0 %v688
        %690 = vperm.xlu0 %689, %v679
        %v691 = vpop.permute.xlu0 %690
        %v692 = vperm.slane %v423, 3
        %v693 = vlaneseq
        %v694 = vshrl.u32 %v693, 7
        %696 = vset.pattern.permute.xlu0 %v694
        %697 = vperm.xlu0 %696, %v692
        %v698 = vpop.permute.xlu0 %697
        %v699 = vlaneseq
        %v700 = vshrl.u32 %v699, 7
        %v701 = vadd.s32 %v700, 8
        %702 = vset.pattern.permute.xlu0 %v701
        %703 = vperm.xlu0 %702, %v692
        %v704 = vpop.permute.xlu0 %703
        %v705 = vperm.slane %v423, 4
        %v706 = vlaneseq
        %v707 = vshrl.u32 %v706, 7
        %709 = vset.pattern.permute.xlu0 %v707
        %710 = vperm.xlu0 %709, %v705
        %v711 = vpop.permute.xlu0 %710
        %v712 = vlaneseq
        %v713 = vshrl.u32 %v712, 7
        %v714 = vadd.s32 %v713, 8
        %715 = vset.pattern.permute.xlu0 %v714
        %716 = vperm.xlu0 %715, %v705
        %v717 = vpop.permute.xlu0 %716
        %v718 = vperm.slane %v423, 5
        %v719 = vlaneseq
        %v720 = vshrl.u32 %v719, 7
        %722 = vset.pattern.permute.xlu0 %v720
        %723 = vperm.xlu0 %722, %v718
        %v724 = vpop.permute.xlu0 %723
        %v725 = vlaneseq
        %v726 = vshrl.u32 %v725, 7
        %v727 = vadd.s32 %v726, 8
        %728 = vset.pattern.permute.xlu0 %v727
        %729 = vperm.xlu0 %728, %v718
        %v730 = vpop.permute.xlu0 %729
        %v731 = vperm.slane %v423, 6
        %v732 = vlaneseq
        %v733 = vshrl.u32 %v732, 7
        %735 = vset.pattern.permute.xlu0 %v733
        %736 = vperm.xlu0 %735, %v731
        %v737 = vpop.permute.xlu0 %736
        %v738 = vlaneseq
        %v739 = vshrl.u32 %v738, 7
        %v740 = vadd.s32 %v739, 8
        %741 = vset.pattern.permute.xlu0 %v740
        %742 = vperm.xlu0 %741, %v731
        %v743 = vpop.permute.xlu0 %742
        %v744 = vperm.slane %v423, 7
        %v745 = vlaneseq
        %v746 = vshrl.u32 %v745, 7
        %748 = vset.pattern.permute.xlu0 %v746
        %749 = vperm.xlu0 %748, %v744
        %v750 = vpop.permute.xlu0 %749
        %v751 = vlaneseq
        %v752 = vshrl.u32 %v751, 7
        %v753 = vadd.s32 %v752, 8
        %754 = vset.pattern.permute.xlu0 %v753
        %755 = vperm.xlu0 %754, %v744
        %v756 = vpop.permute.xlu0 %755
        %v757 = vperm.slane %v424, 0
        %v758 = vlaneseq
        %v759 = vshrl.u32 %v758, 7
        %761 = vset.pattern.permute.xlu0 %v759
        %762 = vperm.xlu0 %761, %v757
        %v763 = vpop.permute.xlu0 %762
        %v764 = vlaneseq
        %v765 = vshrl.u32 %v764, 7
        %v766 = vadd.s32 %v765, 8
        %767 = vset.pattern.permute.xlu0 %v766
        %768 = vperm.xlu0 %767, %v757
        %v769 = vpop.permute.xlu0 %768
        %v770 = vperm.slane %v424, 1
        %v771 = vlaneseq
        %v772 = vshrl.u32 %v771, 7
        %774 = vset.pattern.permute.xlu0 %v772
        %775 = vperm.xlu0 %774, %v770
        %v776 = vpop.permute.xlu0 %775
        %v777 = vlaneseq
        %v778 = vshrl.u32 %v777, 7
        %v779 = vadd.s32 %v778, 8
        %780 = vset.pattern.permute.xlu0 %v779
        %781 = vperm.xlu0 %780, %v770
        %v782 = vpop.permute.xlu0 %781
        %v783 = vperm.slane %v424, 2
        %v784 = vlaneseq
        %v785 = vshrl.u32 %v784, 7
        %787 = vset.pattern.permute.xlu0 %v785
        %788 = vperm.xlu0 %787, %v783
        %v789 = vpop.permute.xlu0 %788
        %v790 = vlaneseq
        %v791 = vshrl.u32 %v790, 7
        %v792 = vadd.s32 %v791, 8
        %793 = vset.pattern.permute.xlu0 %v792
        %794 = vperm.xlu0 %793, %v783
        %v795 = vpop.permute.xlu0 %794
        %v796 = vperm.slane %v424, 3
        %v797 = vlaneseq
        %v798 = vshrl.u32 %v797, 7
        %800 = vset.pattern.permute.xlu0 %v798
        %801 = vperm.xlu0 %800, %v796
        %v802 = vpop.permute.xlu0 %801
        %v803 = vlaneseq
        %v804 = vshrl.u32 %v803, 7
        %v805 = vadd.s32 %v804, 8
        %806 = vset.pattern.permute.xlu0 %v805
        %807 = vperm.xlu0 %806, %v796
        %v808 = vpop.permute.xlu0 %807
        %v809 = vperm.slane %v424, 4
        %v810 = vlaneseq
        %v811 = vshrl.u32 %v810, 7
        %813 = vset.pattern.permute.xlu0 %v811
        %814 = vperm.xlu0 %813, %v809
        %v815 = vpop.permute.xlu0 %814
        %v816 = vlaneseq
        %v817 = vshrl.u32 %v816, 7
        %v818 = vadd.s32 %v817, 8
        %819 = vset.pattern.permute.xlu0 %v818
        %820 = vperm.xlu0 %819, %v809
        %v821 = vpop.permute.xlu0 %820
        %v822 = vperm.slane %v424, 5
        %v823 = vlaneseq
        %v824 = vshrl.u32 %v823, 7
        %826 = vset.pattern.permute.xlu0 %v824
        %827 = vperm.xlu0 %826, %v822
        %v828 = vpop.permute.xlu0 %827
        %v829 = vlaneseq
        %v830 = vshrl.u32 %v829, 7
        %v831 = vadd.s32 %v830, 8
        %832 = vset.pattern.permute.xlu0 %v831
        %833 = vperm.xlu0 %832, %v822
        %v834 = vpop.permute.xlu0 %833
        %v835 = vperm.slane %v424, 6
        %v836 = vlaneseq
        %v837 = vshrl.u32 %v836, 7
        %839 = vset.pattern.permute.xlu0 %v837
        %840 = vperm.xlu0 %839, %v835
        %v841 = vpop.permute.xlu0 %840
        %v842 = vlaneseq
        %v843 = vshrl.u32 %v842, 7
        %v844 = vadd.s32 %v843, 8
        %845 = vset.pattern.permute.xlu0 %v844
        %846 = vperm.xlu0 %845, %v835
        %v847 = vpop.permute.xlu0 %846
        %v848 = vperm.slane %v424, 7
        %v849 = vlaneseq
        %v850 = vshrl.u32 %v849, 7
        %852 = vset.pattern.permute.xlu0 %v850
        %853 = vperm.xlu0 %852, %v848
        %v854 = vpop.permute.xlu0 %853
        %v855 = vlaneseq
        %v856 = vshrl.u32 %v855, 7
        %v857 = vadd.s32 %v856, 8
        %858 = vset.pattern.permute.xlu0 %v857
        %859 = vperm.xlu0 %858, %v848
        %v860 = vpop.permute.xlu0 %859
        %v861 = vperm.slane %v441, 0
        %v862 = vlaneseq
        %v863 = vshrl.u32 %v862, 7
        %v864 = vadd.s32 %v863, 1
        %865 = vset.pattern.permute.xlu0 %v864
        %866 = vperm.xlu0 %865, %v861
        %v867 = vpop.permute.xlu0 %866
        %v868 = vlaneseq
        %v869 = vshrl.u32 %v868, 7
        %v870 = vadd.s32 %v869, 9
        %871 = vset.pattern.permute.xlu0 %v870
        %872 = vperm.xlu0 %871, %v861
        %v873 = vpop.permute.xlu0 %872
        %v874 = vperm.slane %v441, 1
        %v875 = vlaneseq
        %v876 = vshrl.u32 %v875, 7
        %v877 = vadd.s32 %v876, 1
        %878 = vset.pattern.permute.xlu0 %v877
        %879 = vperm.xlu0 %878, %v874
        %v880 = vpop.permute.xlu0 %879
        %v881 = vlaneseq
        %v882 = vshrl.u32 %v881, 7
        %v883 = vadd.s32 %v882, 9
        %884 = vset.pattern.permute.xlu0 %v883
        %885 = vperm.xlu0 %884, %v874
        %v886 = vpop.permute.xlu0 %885
        %v887 = vperm.slane %v441, 2
        %v888 = vlaneseq
        %v889 = vshrl.u32 %v888, 7
        %v890 = vadd.s32 %v889, 1
        %891 = vset.pattern.permute.xlu0 %v890
        %892 = vperm.xlu0 %891, %v887
        %v893 = vpop.permute.xlu0 %892
        %v894 = vlaneseq
        %v895 = vshrl.u32 %v894, 7
        %v896 = vadd.s32 %v895, 9
        %897 = vset.pattern.permute.xlu0 %v896
        %898 = vperm.xlu0 %897, %v887
        %v899 = vpop.permute.xlu0 %898
        %v900 = vperm.slane %v441, 3
        %v901 = vlaneseq
        %v902 = vshrl.u32 %v901, 7
        %v903 = vadd.s32 %v902, 1
        %904 = vset.pattern.permute.xlu0 %v903
        %905 = vperm.xlu0 %904, %v900
        %v906 = vpop.permute.xlu0 %905
        %v907 = vlaneseq
        %v908 = vshrl.u32 %v907, 7
        %v909 = vadd.s32 %v908, 9
        %910 = vset.pattern.permute.xlu0 %v909
        %911 = vperm.xlu0 %910, %v900
        %v912 = vpop.permute.xlu0 %911
        %v913 = vperm.slane %v441, 4
        %v914 = vlaneseq
        %v915 = vshrl.u32 %v914, 7
        %v916 = vadd.s32 %v915, 1
        %917 = vset.pattern.permute.xlu0 %v916
        %918 = vperm.xlu0 %917, %v913
        %v919 = vpop.permute.xlu0 %918
        %v920 = vlaneseq
        %v921 = vshrl.u32 %v920, 7
        %v922 = vadd.s32 %v921, 9
        %923 = vset.pattern.permute.xlu0 %v922
        %924 = vperm.xlu0 %923, %v913
        %v925 = vpop.permute.xlu0 %924
        %v926 = vperm.slane %v441, 5
        %v927 = vlaneseq
        %v928 = vshrl.u32 %v927, 7
        %v929 = vadd.s32 %v928, 1
        %930 = vset.pattern.permute.xlu0 %v929
        %931 = vperm.xlu0 %930, %v926
        %v932 = vpop.permute.xlu0 %931
        %v933 = vlaneseq
        %v934 = vshrl.u32 %v933, 7
        %v935 = vadd.s32 %v934, 9
        %936 = vset.pattern.permute.xlu0 %v935
        %937 = vperm.xlu0 %936, %v926
        %v938 = vpop.permute.xlu0 %937
        %v939 = vperm.slane %v441, 6
        %v940 = vlaneseq
        %v941 = vshrl.u32 %v940, 7
        %v942 = vadd.s32 %v941, 1
        %943 = vset.pattern.permute.xlu0 %v942
        %944 = vperm.xlu0 %943, %v939
        %v945 = vpop.permute.xlu0 %944
        %v946 = vlaneseq
        %v947 = vshrl.u32 %v946, 7
        %v948 = vadd.s32 %v947, 9
        %949 = vset.pattern.permute.xlu0 %v948
        %950 = vperm.xlu0 %949, %v939
        %v951 = vpop.permute.xlu0 %950
        %v952 = vperm.slane %v441, 7
        %v953 = vlaneseq
        %v954 = vshrl.u32 %v953, 7
        %v955 = vadd.s32 %v954, 1
        %956 = vset.pattern.permute.xlu0 %v955
        %957 = vperm.xlu0 %956, %v952
        %v958 = vpop.permute.xlu0 %957
        %v959 = vlaneseq
        %v960 = vshrl.u32 %v959, 7
        %v961 = vadd.s32 %v960, 9
        %962 = vset.pattern.permute.xlu0 %v961
        %963 = vperm.xlu0 %962, %v952
        %v964 = vpop.permute.xlu0 %963
        %v965 = vperm.slane %v442, 0
        %v966 = vlaneseq
        %v967 = vshrl.u32 %v966, 7
        %v968 = vadd.s32 %v967, 1
        %969 = vset.pattern.permute.xlu0 %v968
        %970 = vperm.xlu0 %969, %v965
        %v971 = vpop.permute.xlu0 %970
        %v972 = vlaneseq
        %v973 = vshrl.u32 %v972, 7
        %v974 = vadd.s32 %v973, 9
        %975 = vset.pattern.permute.xlu0 %v974
        %976 = vperm.xlu0 %975, %v965
        %v977 = vpop.permute.xlu0 %976
        %v978 = vperm.slane %v442, 1
        %v979 = vlaneseq
        %v980 = vshrl.u32 %v979, 7
        %v981 = vadd.s32 %v980, 1
        %982 = vset.pattern.permute.xlu0 %v981
        %983 = vperm.xlu0 %982, %v978
        %v984 = vpop.permute.xlu0 %983
        %v985 = vlaneseq
        %v986 = vshrl.u32 %v985, 7
        %v987 = vadd.s32 %v986, 9
        %988 = vset.pattern.permute.xlu0 %v987
        %989 = vperm.xlu0 %988, %v978
        %v990 = vpop.permute.xlu0 %989
        %v991 = vperm.slane %v442, 2
        %v992 = vlaneseq
        %v993 = vshrl.u32 %v992, 7
        %v994 = vadd.s32 %v993, 1
        %995 = vset.pattern.permute.xlu0 %v994
        %996 = vperm.xlu0 %995, %v991
        %v997 = vpop.permute.xlu0 %996
        %v998 = vlaneseq
        %v999 = vshrl.u32 %v998, 7
        %v1000 = vadd.s32 %v999, 9
        %1001 = vset.pattern.permute.xlu0 %v1000
        %1002 = vperm.xlu0 %1001, %v991
        %v1003 = vpop.permute.xlu0 %1002
        %v1004 = vperm.slane %v442, 3
        %v1005 = vlaneseq
        %v1006 = vshrl.u32 %v1005, 7
        %v1007 = vadd.s32 %v1006, 1
        %1008 = vset.pattern.permute.xlu0 %v1007
        %1009 = vperm.xlu0 %1008, %v1004
        %v1010 = vpop.permute.xlu0 %1009
        %v1011 = vlaneseq
        %v1012 = vshrl.u32 %v1011, 7
        %v1013 = vadd.s32 %v1012, 9
        %1014 = vset.pattern.permute.xlu0 %v1013
        %1015 = vperm.xlu0 %1014, %v1004
        %v1016 = vpop.permute.xlu0 %1015
        %v1017 = vperm.slane %v442, 4
        %v1018 = vlaneseq
        %v1019 = vshrl.u32 %v1018, 7
        %v1020 = vadd.s32 %v1019, 1
        %1021 = vset.pattern.permute.xlu0 %v1020
        %1022 = vperm.xlu0 %1021, %v1017
        %v1023 = vpop.permute.xlu0 %1022
        %v1024 = vlaneseq
        %v1025 = vshrl.u32 %v1024, 7
        %v1026 = vadd.s32 %v1025, 9
        %1027 = vset.pattern.permute.xlu0 %v1026
        %1028 = vperm.xlu0 %1027, %v1017
        %v1029 = vpop.permute.xlu0 %1028
        %v1030 = vperm.slane %v442, 5
        %v1031 = vlaneseq
        %v1032 = vshrl.u32 %v1031, 7
        %v1033 = vadd.s32 %v1032, 1
        %1034 = vset.pattern.permute.xlu0 %v1033
        %1035 = vperm.xlu0 %1034, %v1030
        %v1036 = vpop.permute.xlu0 %1035
        %v1037 = vlaneseq
        %v1038 = vshrl.u32 %v1037, 7
        %v1039 = vadd.s32 %v1038, 9
        %1040 = vset.pattern.permute.xlu0 %v1039
        %1041 = vperm.xlu0 %1040, %v1030
        %v1042 = vpop.permute.xlu0 %1041
        %v1043 = vperm.slane %v442, 6
        %v1044 = vlaneseq
        %v1045 = vshrl.u32 %v1044, 7
        %v1046 = vadd.s32 %v1045, 1
        %1047 = vset.pattern.permute.xlu0 %v1046
        %1048 = vperm.xlu0 %1047, %v1043
        %v1049 = vpop.permute.xlu0 %1048
        %v1050 = vlaneseq
        %v1051 = vshrl.u32 %v1050, 7
        %v1052 = vadd.s32 %v1051, 9
        %1053 = vset.pattern.permute.xlu0 %v1052
        %1054 = vperm.xlu0 %1053, %v1043
        %v1055 = vpop.permute.xlu0 %1054
        %v1056 = vperm.slane %v442, 7
        %v1057 = vlaneseq
        %v1058 = vshrl.u32 %v1057, 7
        %v1059 = vadd.s32 %v1058, 1
        %1060 = vset.pattern.permute.xlu0 %v1059
        %1061 = vperm.xlu0 %1060, %v1056
        %v1062 = vpop.permute.xlu0 %1061
        %v1063 = vlaneseq
        %v1064 = vshrl.u32 %v1063, 7
        %v1065 = vadd.s32 %v1064, 9
        %1066 = vset.pattern.permute.xlu0 %v1065
        %1067 = vperm.xlu0 %1066, %v1056
        %v1068 = vpop.permute.xlu0 %1067
        %v1069 = vperm.slane %v443, 0
        %v1070 = vlaneseq
        %v1071 = vshrl.u32 %v1070, 7
        %v1072 = vadd.s32 %v1071, 1
        %1073 = vset.pattern.permute.xlu0 %v1072
        %1074 = vperm.xlu0 %1073, %v1069
        %v1075 = vpop.permute.xlu0 %1074
        %v1076 = vlaneseq
        %v1077 = vshrl.u32 %v1076, 7
        %v1078 = vadd.s32 %v1077, 9
        %1079 = vset.pattern.permute.xlu0 %v1078
        %1080 = vperm.xlu0 %1079, %v1069
        %v1081 = vpop.permute.xlu0 %1080
        %v1082 = vperm.slane %v443, 1
        %v1083 = vlaneseq
        %v1084 = vshrl.u32 %v1083, 7
        %v1085 = vadd.s32 %v1084, 1
        %1086 = vset.pattern.permute.xlu0 %v1085
        %1087 = vperm.xlu0 %1086, %v1082
        %v1088 = vpop.permute.xlu0 %1087
        %v1089 = vlaneseq
        %v1090 = vshrl.u32 %v1089, 7
        %v1091 = vadd.s32 %v1090, 9
        %1092 = vset.pattern.permute.xlu0 %v1091
        %1093 = vperm.xlu0 %1092, %v1082
        %v1094 = vpop.permute.xlu0 %1093
        %v1095 = vperm.slane %v443, 2
        %v1096 = vlaneseq
        %v1097 = vshrl.u32 %v1096, 7
        %v1098 = vadd.s32 %v1097, 1
        %1099 = vset.pattern.permute.xlu0 %v1098
        %1100 = vperm.xlu0 %1099, %v1095
        %v1101 = vpop.permute.xlu0 %1100
        %v1102 = vlaneseq
        %v1103 = vshrl.u32 %v1102, 7
        %v1104 = vadd.s32 %v1103, 9
        %1105 = vset.pattern.permute.xlu0 %v1104
        %1106 = vperm.xlu0 %1105, %v1095
        %v1107 = vpop.permute.xlu0 %1106
        %v1108 = vperm.slane %v443, 3
        %v1109 = vlaneseq
        %v1110 = vshrl.u32 %v1109, 7
        %v1111 = vadd.s32 %v1110, 1
        %1112 = vset.pattern.permute.xlu0 %v1111
        %1113 = vperm.xlu0 %1112, %v1108
        %v1114 = vpop.permute.xlu0 %1113
        %v1115 = vlaneseq
        %v1116 = vshrl.u32 %v1115, 7
        %v1117 = vadd.s32 %v1116, 9
        %1118 = vset.pattern.permute.xlu0 %v1117
        %1119 = vperm.xlu0 %1118, %v1108
        %v1120 = vpop.permute.xlu0 %1119
        %v1121 = vperm.slane %v443, 4
        %v1122 = vlaneseq
        %v1123 = vshrl.u32 %v1122, 7
        %v1124 = vadd.s32 %v1123, 1
        %1125 = vset.pattern.permute.xlu0 %v1124
        %1126 = vperm.xlu0 %1125, %v1121
        %v1127 = vpop.permute.xlu0 %1126
        %v1128 = vlaneseq
        %v1129 = vshrl.u32 %v1128, 7
        %v1130 = vadd.s32 %v1129, 9
        %1131 = vset.pattern.permute.xlu0 %v1130
        %1132 = vperm.xlu0 %1131, %v1121
        %v1133 = vpop.permute.xlu0 %1132
        %v1134 = vperm.slane %v443, 5
        %v1135 = vlaneseq
        %v1136 = vshrl.u32 %v1135, 7
        %v1137 = vadd.s32 %v1136, 1
        %1138 = vset.pattern.permute.xlu0 %v1137
        %1139 = vperm.xlu0 %1138, %v1134
        %v1140 = vpop.permute.xlu0 %1139
        %v1141 = vlaneseq
        %v1142 = vshrl.u32 %v1141, 7
        %v1143 = vadd.s32 %v1142, 9
        %1144 = vset.pattern.permute.xlu0 %v1143
        %1145 = vperm.xlu0 %1144, %v1134
        %v1146 = vpop.permute.xlu0 %1145
        %v1147 = vperm.slane %v443, 6
        %v1148 = vlaneseq
        %v1149 = vshrl.u32 %v1148, 7
        %v1150 = vadd.s32 %v1149, 1
        %1151 = vset.pattern.permute.xlu0 %v1150
        %1152 = vperm.xlu0 %1151, %v1147
        %v1153 = vpop.permute.xlu0 %1152
        %v1154 = vlaneseq
        %v1155 = vshrl.u32 %v1154, 7
        %v1156 = vadd.s32 %v1155, 9
        %1157 = vset.pattern.permute.xlu0 %v1156
        %1158 = vperm.xlu0 %1157, %v1147
        %v1159 = vpop.permute.xlu0 %1158
        %v1160 = vperm.slane %v443, 7
        %v1161 = vlaneseq
        %v1162 = vshrl.u32 %v1161, 7
        %v1163 = vadd.s32 %v1162, 1
        %1164 = vset.pattern.permute.xlu0 %v1163
        %1165 = vperm.xlu0 %1164, %v1160
        %v1166 = vpop.permute.xlu0 %1165
        %v1167 = vlaneseq
        %v1168 = vshrl.u32 %v1167, 7
        %v1169 = vadd.s32 %v1168, 9
        %1170 = vset.pattern.permute.xlu0 %v1169
        %1171 = vperm.xlu0 %1170, %v1160
        %v1172 = vpop.permute.xlu0 %1171
        %v1173 = vperm.slane %v444, 0
        %v1174 = vlaneseq
        %v1175 = vshrl.u32 %v1174, 7
        %v1176 = vadd.s32 %v1175, 1
        %1177 = vset.pattern.permute.xlu0 %v1176
        %1178 = vperm.xlu0 %1177, %v1173
        %v1179 = vpop.permute.xlu0 %1178
        %v1180 = vlaneseq
        %v1181 = vshrl.u32 %v1180, 7
        %v1182 = vadd.s32 %v1181, 9
        %1183 = vset.pattern.permute.xlu0 %v1182
        %1184 = vperm.xlu0 %1183, %v1173
        %v1185 = vpop.permute.xlu0 %1184
        %v1186 = vperm.slane %v444, 1
        %v1187 = vlaneseq
        %v1188 = vshrl.u32 %v1187, 7
        %v1189 = vadd.s32 %v1188, 1
        %1190 = vset.pattern.permute.xlu0 %v1189
        %1191 = vperm.xlu0 %1190, %v1186
        %v1192 = vpop.permute.xlu0 %1191
        %v1193 = vlaneseq
        %v1194 = vshrl.u32 %v1193, 7
        %v1195 = vadd.s32 %v1194, 9
        %1196 = vset.pattern.permute.xlu0 %v1195
        %1197 = vperm.xlu0 %1196, %v1186
        %v1198 = vpop.permute.xlu0 %1197
        %v1199 = vperm.slane %v444, 2
        %v1200 = vlaneseq
        %v1201 = vshrl.u32 %v1200, 7
        %v1202 = vadd.s32 %v1201, 1
        %1203 = vset.pattern.permute.xlu0 %v1202
        %1204 = vperm.xlu0 %1203, %v1199
        %v1205 = vpop.permute.xlu0 %1204
        %v1206 = vlaneseq
        %v1207 = vshrl.u32 %v1206, 7
        %v1208 = vadd.s32 %v1207, 9
        %1209 = vset.pattern.permute.xlu0 %v1208
        %1210 = vperm.xlu0 %1209, %v1199
        %v1211 = vpop.permute.xlu0 %1210
        %v1212 = vperm.slane %v444, 3
        %v1213 = vlaneseq
        %v1214 = vshrl.u32 %v1213, 7
        %v1215 = vadd.s32 %v1214, 1
        %1216 = vset.pattern.permute.xlu0 %v1215
        %1217 = vperm.xlu0 %1216, %v1212
        %v1218 = vpop.permute.xlu0 %1217
        %v1219 = vlaneseq
        %v1220 = vshrl.u32 %v1219, 7
        %v1221 = vadd.s32 %v1220, 9
        %1222 = vset.pattern.permute.xlu0 %v1221
        %1223 = vperm.xlu0 %1222, %v1212
        %v1224 = vpop.permute.xlu0 %1223
        %v1225 = vperm.slane %v444, 4
        %v1226 = vlaneseq
        %v1227 = vshrl.u32 %v1226, 7
        %v1228 = vadd.s32 %v1227, 1
        %1229 = vset.pattern.permute.xlu0 %v1228
        %1230 = vperm.xlu0 %1229, %v1225
        %v1231 = vpop.permute.xlu0 %1230
        %v1232 = vlaneseq
        %v1233 = vshrl.u32 %v1232, 7
        %v1234 = vadd.s32 %v1233, 9
        %1235 = vset.pattern.permute.xlu0 %v1234
        %1236 = vperm.xlu0 %1235, %v1225
        %v1237 = vpop.permute.xlu0 %1236
        %v1238 = vperm.slane %v444, 5
        %v1239 = vlaneseq
        %v1240 = vshrl.u32 %v1239, 7
        %v1241 = vadd.s32 %v1240, 1
        %1242 = vset.pattern.permute.xlu0 %v1241
        %1243 = vperm.xlu0 %1242, %v1238
        %v1244 = vpop.permute.xlu0 %1243
        %v1245 = vlaneseq
        %v1246 = vshrl.u32 %v1245, 7
        %v1247 = vadd.s32 %v1246, 9
        %1248 = vset.pattern.permute.xlu0 %v1247
        %1249 = vperm.xlu0 %1248, %v1238
        %v1250 = vpop.permute.xlu0 %1249
        %v1251 = vperm.slane %v444, 6
        %v1252 = vlaneseq
        %v1253 = vshrl.u32 %v1252, 7
        %v1254 = vadd.s32 %v1253, 1
        %1255 = vset.pattern.permute.xlu0 %v1254
        %1256 = vperm.xlu0 %1255, %v1251
        %v1257 = vpop.permute.xlu0 %1256
        %v1258 = vlaneseq
        %v1259 = vshrl.u32 %v1258, 7
        %v1260 = vadd.s32 %v1259, 9
        %1261 = vset.pattern.permute.xlu0 %v1260
        %1262 = vperm.xlu0 %1261, %v1251
        %v1263 = vpop.permute.xlu0 %1262
        %v1264 = vperm.slane %v444, 7
        %v1265 = vlaneseq
        %v1266 = vshrl.u32 %v1265, 7
        %v1267 = vadd.s32 %v1266, 1
        %1268 = vset.pattern.permute.xlu0 %v1267
        %1269 = vperm.xlu0 %1268, %v1264
        %v1270 = vpop.permute.xlu0 %1269
        %v1271 = vlaneseq
        %v1272 = vshrl.u32 %v1271, 7
        %v1273 = vadd.s32 %v1272, 9
        %1274 = vset.pattern.permute.xlu0 %v1273
        %1275 = vperm.xlu0 %1274, %v1264
        %v1276 = vpop.permute.xlu0 %1275
        %v1277 = vsel %vm387, %v451, %v867
        %v1278 = vsel %vm387, %v457, %v873
        %v1279 = vsel %vm387, %v464, %v880
        %v1280 = vsel %vm387, %v470, %v886
        %v1281 = vsel %vm387, %v477, %v893
        %v1282 = vsel %vm387, %v483, %v899
        %v1283 = vsel %vm387, %v490, %v906
        %v1284 = vsel %vm387, %v496, %v912
        %v1285 = vsel %vm387, %v503, %v919
        %v1286 = vsel %vm387, %v509, %v925
        %v1287 = vsel %vm387, %v516, %v932
        %v1288 = vsel %vm387, %v522, %v938
        %v1289 = vsel %vm387, %v529, %v945
        %v1290 = vsel %vm387, %v535, %v951
        %v1291 = vsel %vm387, %v542, %v958
        %v1292 = vsel %vm387, %v548, %v964
        %v1293 = vsel %vm387, %v555, %v971
        %v1294 = vsel %vm387, %v561, %v977
        %v1295 = vsel %vm387, %v568, %v984
        %v1296 = vsel %vm387, %v574, %v990
        %v1297 = vsel %vm387, %v581, %v997
        %v1298 = vsel %vm387, %v587, %v1003
        %v1299 = vsel %vm387, %v594, %v1010
        %v1300 = vsel %vm387, %v600, %v1016
        %v1301 = vsel %vm387, %v607, %v1023
        %v1302 = vsel %vm387, %v613, %v1029
        %v1303 = vsel %vm387, %v620, %v1036
        %v1304 = vsel %vm387, %v626, %v1042
        %v1305 = vsel %vm387, %v633, %v1049
        %v1306 = vsel %vm387, %v639, %v1055
        %v1307 = vsel %vm387, %v646, %v1062
        %v1308 = vsel %vm387, %v652, %v1068
        %v1309 = vsel %vm387, %v659, %v1075
        %v1310 = vsel %vm387, %v665, %v1081
        %v1311 = vsel %vm387, %v672, %v1088
        %v1312 = vsel %vm387, %v678, %v1094
        %v1313 = vsel %vm387, %v685, %v1101
        %v1314 = vsel %vm387, %v691, %v1107
        %v1315 = vsel %vm387, %v698, %v1114
        %v1316 = vsel %vm387, %v704, %v1120
        %v1317 = vsel %vm387, %v711, %v1127
        %v1318 = vsel %vm387, %v717, %v1133
        %v1319 = vsel %vm387, %v724, %v1140
        %v1320 = vsel %vm387, %v730, %v1146
        %v1321 = vsel %vm387, %v737, %v1153
        %v1322 = vsel %vm387, %v743, %v1159
        %v1323 = vsel %vm387, %v750, %v1166
        %v1324 = vsel %vm387, %v756, %v1172
        %v1325 = vsel %vm387, %v763, %v1179
        %v1326 = vsel %vm387, %v769, %v1185
        %v1327 = vsel %vm387, %v776, %v1192
        %v1328 = vsel %vm387, %v782, %v1198
        %v1329 = vsel %vm387, %v789, %v1205
        %v1330 = vsel %vm387, %v795, %v1211
        %v1331 = vsel %vm387, %v802, %v1218
        %v1332 = vsel %vm387, %v808, %v1224
        %v1333 = vsel %vm387, %v815, %v1231
        %v1334 = vsel %vm387, %v821, %v1237
        %v1335 = vsel %vm387, %v828, %v1244
        %v1336 = vsel %vm387, %v834, %v1250
        %v1337 = vsel %vm387, %v841, %v1257
        %v1338 = vsel %vm387, %v847, %v1263
        %v1339 = vsel %vm387, %v854, %v1270
        %v1340 = vsel %vm387, %v860, %v1276
        %v1341 = vrot.slane %v1281, 4
        %vm1342 = vcmask 1047556
        %v1343 = vsel %vm1342, %v1341, %v1277
        %v1344 = vrot.slane %v1277, 4
        %v1345 = vsel %vm1342, %v1281, %v1344
        %v1347 = vunpack.c.l.s4 1983009808
        %v1348 = vunpack.c.0.s8 %v1347
        %v1349 = vperm.slane %v1343, %v1348
        %v1351 = vunpack.c.l.s4 1983009808
        %v1352 = vunpack.c.0.s8 %v1351
        %v1353 = vperm.slane %v1345, %v1352
        %v1354 = vrot.slane %v1283, 4
        %v1355 = vsel %vm1342, %v1354, %v1279
        %v1356 = vrot.slane %v1279, 4
        %v1357 = vsel %vm1342, %v1283, %v1356
        %v1359 = vunpack.c.l.s4 1983009808
        %v1360 = vunpack.c.0.s8 %v1359
        %v1361 = vperm.slane %v1355, %v1360
        %v1363 = vunpack.c.l.s4 1983009808
        %v1364 = vunpack.c.0.s8 %v1363
        %v1365 = vperm.slane %v1357, %v1364
        %v1366 = vrot.slane %v1289, 4
        %v1367 = vsel %vm1342, %v1366, %v1285
        %v1368 = vrot.slane %v1285, 4
        %v1369 = vsel %vm1342, %v1289, %v1368
        %v1371 = vunpack.c.l.s4 1983009808
        %v1372 = vunpack.c.0.s8 %v1371
        %v1373 = vperm.slane %v1367, %v1372
        %v1375 = vunpack.c.l.s4 1983009808
        %v1376 = vunpack.c.0.s8 %v1375
        %v1377 = vperm.slane %v1369, %v1376
        %v1378 = vrot.slane %v1291, 4
        %v1379 = vsel %vm1342, %v1378, %v1287
        %v1380 = vrot.slane %v1287, 4
        %v1381 = vsel %vm1342, %v1291, %v1380
        %v1383 = vunpack.c.l.s4 1983009808
        %v1384 = vunpack.c.0.s8 %v1383
        %v1385 = vperm.slane %v1379, %v1384
        %v1387 = vunpack.c.l.s4 1983009808
        %v1388 = vunpack.c.0.s8 %v1387
        %v1389 = vperm.slane %v1381, %v1388
        %v1390 = vrot.slane %v1361, 4
        %v1391 = vsel %vm1342, %v1390, %v1349
        %v1392 = vrot.slane %v1349, 4
        %v1393 = vsel %vm1342, %v1361, %v1392
        %v1395 = vunpack.c.l.s4 1934713408
        %v1396 = vunpack.c.0.s8 %v1395
        %v1397 = vperm.slane %v1391, %v1396
        %v1399 = vunpack.c.l.s4 1934713408
        %v1400 = vunpack.c.0.s8 %v1399
        %v1401 = vperm.slane %v1393, %v1400
        %v1402 = vrot.slane %v1365, 4
        %v1403 = vsel %vm1342, %v1402, %v1353
        %v1404 = vrot.slane %v1353, 4
        %v1405 = vsel %vm1342, %v1365, %v1404
        %v1407 = vunpack.c.l.s4 1934713408
        %v1408 = vunpack.c.0.s8 %v1407
        %v1409 = vperm.slane %v1403, %v1408
        %v1411 = vunpack.c.l.s4 1934713408
        %v1412 = vunpack.c.0.s8 %v1411
        %v1413 = vperm.slane %v1405, %v1412
        %v1414 = vrot.slane %v1385, 4
        %v1415 = vsel %vm1342, %v1414, %v1373
        %v1416 = vrot.slane %v1373, 4
        %v1417 = vsel %vm1342, %v1385, %v1416
        %v1419 = vunpack.c.l.s4 1934713408
        %v1420 = vunpack.c.0.s8 %v1419
        %v1421 = vperm.slane %v1415, %v1420
        %v1423 = vunpack.c.l.s4 1934713408
        %v1424 = vunpack.c.0.s8 %v1423
        %v1425 = vperm.slane %v1417, %v1424
        %v1426 = vrot.slane %v1389, 4
        %v1427 = vsel %vm1342, %v1426, %v1377
        %v1428 = vrot.slane %v1377, 4
        %v1429 = vsel %vm1342, %v1389, %v1428
        %v1431 = vunpack.c.l.s4 1934713408
        %v1432 = vunpack.c.0.s8 %v1431
        %v1433 = vperm.slane %v1427, %v1432
        %v1435 = vunpack.c.l.s4 1934713408
        %v1436 = vunpack.c.0.s8 %v1435
        %v1437 = vperm.slane %v1429, %v1436
        %v1438 = vrot.slane %v1421, 4
        %v1439 = vsel %vm1342, %v1438, %v1397
        %v1440 = vrot.slane %v1397, 4
        %v1441 = vsel %vm1342, %v1421, %v1440
        %v1442 = vrot.slane %v1425, 4
        %v1443 = vsel %vm1342, %v1442, %v1401
        %v1444 = vrot.slane %v1401, 4
        %v1445 = vsel %vm1342, %v1425, %v1444
        %v1446 = vrot.slane %v1433, 4
        %v1447 = vsel %vm1342, %v1446, %v1409
        %v1448 = vrot.slane %v1409, 4
        %v1449 = vsel %vm1342, %v1433, %v1448
        %v1450 = vrot.slane %v1437, 4
        %v1451 = vsel %vm1342, %v1450, %v1413
        %v1452 = vrot.slane %v1413, 4
        %v1453 = vsel %vm1342, %v1437, %v1452
        %v1454 = vrot.slane %v1297, 4
        %v1455 = vsel %vm1342, %v1454, %v1293
        %v1456 = vrot.slane %v1293, 4
        %v1457 = vsel %vm1342, %v1297, %v1456
        %v1459 = vunpack.c.l.s4 1983009808
        %v1460 = vunpack.c.0.s8 %v1459
        %v1461 = vperm.slane %v1455, %v1460
        %v1463 = vunpack.c.l.s4 1983009808
        %v1464 = vunpack.c.0.s8 %v1463
        %v1465 = vperm.slane %v1457, %v1464
        %v1466 = vrot.slane %v1299, 4
        %v1467 = vsel %vm1342, %v1466, %v1295
        %v1468 = vrot.slane %v1295, 4
        %v1469 = vsel %vm1342, %v1299, %v1468
        %v1471 = vunpack.c.l.s4 1983009808
        %v1472 = vunpack.c.0.s8 %v1471
        %v1473 = vperm.slane %v1467, %v1472
        %v1475 = vunpack.c.l.s4 1983009808
        %v1476 = vunpack.c.0.s8 %v1475
        %v1477 = vperm.slane %v1469, %v1476
        %v1478 = vrot.slane %v1305, 4
        %v1479 = vsel %vm1342, %v1478, %v1301
        %v1480 = vrot.slane %v1301, 4
        %v1481 = vsel %vm1342, %v1305, %v1480
        %v1483 = vunpack.c.l.s4 1983009808
        %v1484 = vunpack.c.0.s8 %v1483
        %v1485 = vperm.slane %v1479, %v1484
        %v1487 = vunpack.c.l.s4 1983009808
        %v1488 = vunpack.c.0.s8 %v1487
        %v1489 = vperm.slane %v1481, %v1488
        %v1490 = vrot.slane %v1307, 4
        %v1491 = vsel %vm1342, %v1490, %v1303
        %v1492 = vrot.slane %v1303, 4
        %v1493 = vsel %vm1342, %v1307, %v1492
        %v1495 = vunpack.c.l.s4 1983009808
        %v1496 = vunpack.c.0.s8 %v1495
        %v1497 = vperm.slane %v1491, %v1496
        %v1499 = vunpack.c.l.s4 1983009808
        %v1500 = vunpack.c.0.s8 %v1499
        %v1501 = vperm.slane %v1493, %v1500
        %v1502 = vrot.slane %v1473, 4
        %v1503 = vsel %vm1342, %v1502, %v1461
        %v1504 = vrot.slane %v1461, 4
        %v1505 = vsel %vm1342, %v1473, %v1504
        %v1507 = vunpack.c.l.s4 1934713408
        %v1508 = vunpack.c.0.s8 %v1507
        %v1509 = vperm.slane %v1503, %v1508
        %v1511 = vunpack.c.l.s4 1934713408
        %v1512 = vunpack.c.0.s8 %v1511
        %v1513 = vperm.slane %v1505, %v1512
        %v1514 = vrot.slane %v1477, 4
        %v1515 = vsel %vm1342, %v1514, %v1465
        %v1516 = vrot.slane %v1465, 4
        %v1517 = vsel %vm1342, %v1477, %v1516
        %v1519 = vunpack.c.l.s4 1934713408
        %v1520 = vunpack.c.0.s8 %v1519
        %v1521 = vperm.slane %v1515, %v1520
        %v1523 = vunpack.c.l.s4 1934713408
        %v1524 = vunpack.c.0.s8 %v1523
        %v1525 = vperm.slane %v1517, %v1524
        %v1526 = vrot.slane %v1497, 4
        %v1527 = vsel %vm1342, %v1526, %v1485
        %v1528 = vrot.slane %v1485, 4
        %v1529 = vsel %vm1342, %v1497, %v1528
        %v1531 = vunpack.c.l.s4 1934713408
        %v1532 = vunpack.c.0.s8 %v1531
        %v1533 = vperm.slane %v1527, %v1532
        %v1535 = vunpack.c.l.s4 1934713408
        %v1536 = vunpack.c.0.s8 %v1535
        %v1537 = vperm.slane %v1529, %v1536
        %v1538 = vrot.slane %v1501, 4
        %v1539 = vsel %vm1342, %v1538, %v1489
        %v1540 = vrot.slane %v1489, 4
        %v1541 = vsel %vm1342, %v1501, %v1540
        %v1543 = vunpack.c.l.s4 1934713408
        %v1544 = vunpack.c.0.s8 %v1543
        %v1545 = vperm.slane %v1539, %v1544
        %v1547 = vunpack.c.l.s4 1934713408
        %v1548 = vunpack.c.0.s8 %v1547
        %v1549 = vperm.slane %v1541, %v1548
        %v1550 = vrot.slane %v1533, 4
        %v1551 = vsel %vm1342, %v1550, %v1509
        %v1552 = vrot.slane %v1509, 4
        %v1553 = vsel %vm1342, %v1533, %v1552
        %v1554 = vrot.slane %v1537, 4
        %v1555 = vsel %vm1342, %v1554, %v1513
        %v1556 = vrot.slane %v1513, 4
        %v1557 = vsel %vm1342, %v1537, %v1556
        %v1558 = vrot.slane %v1545, 4
        %v1559 = vsel %vm1342, %v1558, %v1521
        %v1560 = vrot.slane %v1521, 4
        %v1561 = vsel %vm1342, %v1545, %v1560
        %v1562 = vrot.slane %v1549, 4
        %v1563 = vsel %vm1342, %v1562, %v1525
        %v1564 = vrot.slane %v1525, 4
        %v1565 = vsel %vm1342, %v1549, %v1564
        %v1566 = vrot.slane %v1282, 4
        %v1567 = vsel %vm1342, %v1566, %v1278
        %v1568 = vrot.slane %v1278, 4
        %v1569 = vsel %vm1342, %v1282, %v1568
        %v1571 = vunpack.c.l.s4 1983009808
        %v1572 = vunpack.c.0.s8 %v1571
        %v1573 = vperm.slane %v1567, %v1572
        %v1575 = vunpack.c.l.s4 1983009808
        %v1576 = vunpack.c.0.s8 %v1575
        %v1577 = vperm.slane %v1569, %v1576
        %v1578 = vrot.slane %v1284, 4
        %v1579 = vsel %vm1342, %v1578, %v1280
        %v1580 = vrot.slane %v1280, 4
        %v1581 = vsel %vm1342, %v1284, %v1580
        %v1583 = vunpack.c.l.s4 1983009808
        %v1584 = vunpack.c.0.s8 %v1583
        %v1585 = vperm.slane %v1579, %v1584
        %v1587 = vunpack.c.l.s4 1983009808
        %v1588 = vunpack.c.0.s8 %v1587
        %v1589 = vperm.slane %v1581, %v1588
        %v1590 = vrot.slane %v1290, 4
        %v1591 = vsel %vm1342, %v1590, %v1286
        %v1592 = vrot.slane %v1286, 4
        %v1593 = vsel %vm1342, %v1290, %v1592
        %v1595 = vunpack.c.l.s4 1983009808
        %v1596 = vunpack.c.0.s8 %v1595
        %v1597 = vperm.slane %v1591, %v1596
        %v1599 = vunpack.c.l.s4 1983009808
        %v1600 = vunpack.c.0.s8 %v1599
        %v1601 = vperm.slane %v1593, %v1600
        %v1602 = vrot.slane %v1292, 4
        %v1603 = vsel %vm1342, %v1602, %v1288
        %v1604 = vrot.slane %v1288, 4
        %v1605 = vsel %vm1342, %v1292, %v1604
        %v1607 = vunpack.c.l.s4 1983009808
        %v1608 = vunpack.c.0.s8 %v1607
        %v1609 = vperm.slane %v1603, %v1608
        %v1611 = vunpack.c.l.s4 1983009808
        %v1612 = vunpack.c.0.s8 %v1611
        %v1613 = vperm.slane %v1605, %v1612
        %v1614 = vrot.slane %v1585, 4
        %v1615 = vsel %vm1342, %v1614, %v1573
        %v1616 = vrot.slane %v1573, 4
        %v1617 = vsel %vm1342, %v1585, %v1616
        %v1619 = vunpack.c.l.s4 1934713408
        %v1620 = vunpack.c.0.s8 %v1619
        %v1621 = vperm.slane %v1615, %v1620
        %v1623 = vunpack.c.l.s4 1934713408
        %v1624 = vunpack.c.0.s8 %v1623
        %v1625 = vperm.slane %v1617, %v1624
        %v1626 = vrot.slane %v1589, 4
        %v1627 = vsel %vm1342, %v1626, %v1577
        %v1628 = vrot.slane %v1577, 4
        %v1629 = vsel %vm1342, %v1589, %v1628
        %v1631 = vunpack.c.l.s4 1934713408
        %v1632 = vunpack.c.0.s8 %v1631
        %v1633 = vperm.slane %v1627, %v1632
        %v1635 = vunpack.c.l.s4 1934713408
        %v1636 = vunpack.c.0.s8 %v1635
        %v1637 = vperm.slane %v1629, %v1636
        %v1638 = vrot.slane %v1609, 4
        %v1639 = vsel %vm1342, %v1638, %v1597
        %v1640 = vrot.slane %v1597, 4
        %v1641 = vsel %vm1342, %v1609, %v1640
        %v1643 = vunpack.c.l.s4 1934713408
        %v1644 = vunpack.c.0.s8 %v1643
        %v1645 = vperm.slane %v1639, %v1644
        %v1647 = vunpack.c.l.s4 1934713408
        %v1648 = vunpack.c.0.s8 %v1647
        %v1649 = vperm.slane %v1641, %v1648
        %v1650 = vrot.slane %v1613, 4
        %v1651 = vsel %vm1342, %v1650, %v1601
        %v1652 = vrot.slane %v1601, 4
        %v1653 = vsel %vm1342, %v1613, %v1652
        %v1655 = vunpack.c.l.s4 1934713408
        %v1656 = vunpack.c.0.s8 %v1655
        %v1657 = vperm.slane %v1651, %v1656
        %v1659 = vunpack.c.l.s4 1934713408
        %v1660 = vunpack.c.0.s8 %v1659
        %v1661 = vperm.slane %v1653, %v1660
        %v1662 = vrot.slane %v1645, 4
        %v1663 = vsel %vm1342, %v1662, %v1621
        %v1664 = vrot.slane %v1621, 4
        %v1665 = vsel %vm1342, %v1645, %v1664
        %v1666 = vrot.slane %v1649, 4
        %v1667 = vsel %vm1342, %v1666, %v1625
        %v1668 = vrot.slane %v1625, 4
        %v1669 = vsel %vm1342, %v1649, %v1668
        %v1670 = vrot.slane %v1657, 4
        %v1671 = vsel %vm1342, %v1670, %v1633
        %v1672 = vrot.slane %v1633, 4
        %v1673 = vsel %vm1342, %v1657, %v1672
        %v1674 = vrot.slane %v1661, 4
        %v1675 = vsel %vm1342, %v1674, %v1637
        %v1676 = vrot.slane %v1637, 4
        %v1677 = vsel %vm1342, %v1661, %v1676
        %v1678 = vrot.slane %v1298, 4
        %v1679 = vsel %vm1342, %v1678, %v1294
        %v1680 = vrot.slane %v1294, 4
        %v1681 = vsel %vm1342, %v1298, %v1680
        %v1683 = vunpack.c.l.s4 1983009808
        %v1684 = vunpack.c.0.s8 %v1683
        %v1685 = vperm.slane %v1679, %v1684
        %v1687 = vunpack.c.l.s4 1983009808
        %v1688 = vunpack.c.0.s8 %v1687
        %v1689 = vperm.slane %v1681, %v1688
        %v1690 = vrot.slane %v1300, 4
        %v1691 = vsel %vm1342, %v1690, %v1296
        %v1692 = vrot.slane %v1296, 4
        %v1693 = vsel %vm1342, %v1300, %v1692
        %v1695 = vunpack.c.l.s4 1983009808
        %v1696 = vunpack.c.0.s8 %v1695
        %v1697 = vperm.slane %v1691, %v1696
        %v1699 = vunpack.c.l.s4 1983009808
        %v1700 = vunpack.c.0.s8 %v1699
        %v1701 = vperm.slane %v1693, %v1700
        %v1702 = vrot.slane %v1306, 4
        %v1703 = vsel %vm1342, %v1702, %v1302
        %v1704 = vrot.slane %v1302, 4
        %v1705 = vsel %vm1342, %v1306, %v1704
        %v1707 = vunpack.c.l.s4 1983009808
        %v1708 = vunpack.c.0.s8 %v1707
        %v1709 = vperm.slane %v1703, %v1708
        %v1711 = vunpack.c.l.s4 1983009808
        %v1712 = vunpack.c.0.s8 %v1711
        %v1713 = vperm.slane %v1705, %v1712
        %v1714 = vrot.slane %v1308, 4
        %v1715 = vsel %vm1342, %v1714, %v1304
        %v1716 = vrot.slane %v1304, 4
        %v1717 = vsel %vm1342, %v1308, %v1716
        %v1719 = vunpack.c.l.s4 1983009808
        %v1720 = vunpack.c.0.s8 %v1719
        %v1721 = vperm.slane %v1715, %v1720
        %v1723 = vunpack.c.l.s4 1983009808
        %v1724 = vunpack.c.0.s8 %v1723
        %v1725 = vperm.slane %v1717, %v1724
        %v1726 = vrot.slane %v1697, 4
        %v1727 = vsel %vm1342, %v1726, %v1685
        %v1728 = vrot.slane %v1685, 4
        %v1729 = vsel %vm1342, %v1697, %v1728
        %v1731 = vunpack.c.l.s4 1934713408
        %v1732 = vunpack.c.0.s8 %v1731
        %v1733 = vperm.slane %v1727, %v1732
        %v1735 = vunpack.c.l.s4 1934713408
        %v1736 = vunpack.c.0.s8 %v1735
        %v1737 = vperm.slane %v1729, %v1736
        %v1738 = vrot.slane %v1701, 4
        %v1739 = vsel %vm1342, %v1738, %v1689
        %v1740 = vrot.slane %v1689, 4
        %v1741 = vsel %vm1342, %v1701, %v1740
        %v1743 = vunpack.c.l.s4 1934713408
        %v1744 = vunpack.c.0.s8 %v1743
        %v1745 = vperm.slane %v1739, %v1744
        %v1747 = vunpack.c.l.s4 1934713408
        %v1748 = vunpack.c.0.s8 %v1747
        %v1749 = vperm.slane %v1741, %v1748
        %v1750 = vrot.slane %v1721, 4
        %v1751 = vsel %vm1342, %v1750, %v1709
        %v1752 = vrot.slane %v1709, 4
        %v1753 = vsel %vm1342, %v1721, %v1752
        %v1755 = vunpack.c.l.s4 1934713408
        %v1756 = vunpack.c.0.s8 %v1755
        %v1757 = vperm.slane %v1751, %v1756
        %v1759 = vunpack.c.l.s4 1934713408
        %v1760 = vunpack.c.0.s8 %v1759
        %v1761 = vperm.slane %v1753, %v1760
        %v1762 = vrot.slane %v1725, 4
        %v1763 = vsel %vm1342, %v1762, %v1713
        %v1764 = vrot.slane %v1713, 4
        %v1765 = vsel %vm1342, %v1725, %v1764
        %v1767 = vunpack.c.l.s4 1934713408
        %v1768 = vunpack.c.0.s8 %v1767
        %v1769 = vperm.slane %v1763, %v1768
        %v1771 = vunpack.c.l.s4 1934713408
        %v1772 = vunpack.c.0.s8 %v1771
        %v1773 = vperm.slane %v1765, %v1772
        %v1774 = vrot.slane %v1757, 4
        %v1775 = vsel %vm1342, %v1774, %v1733
        %v1776 = vrot.slane %v1733, 4
        %v1777 = vsel %vm1342, %v1757, %v1776
        %v1778 = vrot.slane %v1761, 4
        %v1779 = vsel %vm1342, %v1778, %v1737
        %v1780 = vrot.slane %v1737, 4
        %v1781 = vsel %vm1342, %v1761, %v1780
        %v1782 = vrot.slane %v1769, 4
        %v1783 = vsel %vm1342, %v1782, %v1745
        %v1784 = vrot.slane %v1745, 4
        %v1785 = vsel %vm1342, %v1769, %v1784
        %v1786 = vrot.slane %v1773, 4
        %v1787 = vsel %vm1342, %v1786, %v1749
        %v1788 = vrot.slane %v1749, 4
        %v1789 = vsel %vm1342, %v1773, %v1788
        %v1790 = vrot.slane %v1313, 4
        %v1791 = vsel %vm1342, %v1790, %v1309
        %v1792 = vrot.slane %v1309, 4
        %v1793 = vsel %vm1342, %v1313, %v1792
        %v1795 = vunpack.c.l.s4 1983009808
        %v1796 = vunpack.c.0.s8 %v1795
        %v1797 = vperm.slane %v1791, %v1796
        %v1799 = vunpack.c.l.s4 1983009808
        %v1800 = vunpack.c.0.s8 %v1799
        %v1801 = vperm.slane %v1793, %v1800
        %v1802 = vrot.slane %v1315, 4
        %v1803 = vsel %vm1342, %v1802, %v1311
        %v1804 = vrot.slane %v1311, 4
        %v1805 = vsel %vm1342, %v1315, %v1804
        %v1807 = vunpack.c.l.s4 1983009808
        %v1808 = vunpack.c.0.s8 %v1807
        %v1809 = vperm.slane %v1803, %v1808
        %v1811 = vunpack.c.l.s4 1983009808
        %v1812 = vunpack.c.0.s8 %v1811
        %v1813 = vperm.slane %v1805, %v1812
        %v1814 = vrot.slane %v1321, 4
        %v1815 = vsel %vm1342, %v1814, %v1317
        %v1816 = vrot.slane %v1317, 4
        %v1817 = vsel %vm1342, %v1321, %v1816
        %v1819 = vunpack.c.l.s4 1983009808
        %v1820 = vunpack.c.0.s8 %v1819
        %v1821 = vperm.slane %v1815, %v1820
        %v1823 = vunpack.c.l.s4 1983009808
        %v1824 = vunpack.c.0.s8 %v1823
        %v1825 = vperm.slane %v1817, %v1824
        %v1826 = vrot.slane %v1323, 4
        %v1827 = vsel %vm1342, %v1826, %v1319
        %v1828 = vrot.slane %v1319, 4
        %v1829 = vsel %vm1342, %v1323, %v1828
        %v1831 = vunpack.c.l.s4 1983009808
        %v1832 = vunpack.c.0.s8 %v1831
        %v1833 = vperm.slane %v1827, %v1832
        %v1835 = vunpack.c.l.s4 1983009808
        %v1836 = vunpack.c.0.s8 %v1835
        %v1837 = vperm.slane %v1829, %v1836
        %v1838 = vrot.slane %v1809, 4
        %v1839 = vsel %vm1342, %v1838, %v1797
        %v1840 = vrot.slane %v1797, 4
        %v1841 = vsel %vm1342, %v1809, %v1840
        %v1843 = vunpack.c.l.s4 1934713408
        %v1844 = vunpack.c.0.s8 %v1843
        %v1845 = vperm.slane %v1839, %v1844
        %v1847 = vunpack.c.l.s4 1934713408
        %v1848 = vunpack.c.0.s8 %v1847
        %v1849 = vperm.slane %v1841, %v1848
        %v1850 = vrot.slane %v1813, 4
        %v1851 = vsel %vm1342, %v1850, %v1801
        %v1852 = vrot.slane %v1801, 4
        %v1853 = vsel %vm1342, %v1813, %v1852
        %v1855 = vunpack.c.l.s4 1934713408
        %v1856 = vunpack.c.0.s8 %v1855
        %v1857 = vperm.slane %v1851, %v1856
        %v1859 = vunpack.c.l.s4 1934713408
        %v1860 = vunpack.c.0.s8 %v1859
        %v1861 = vperm.slane %v1853, %v1860
        %v1862 = vrot.slane %v1833, 4
        %v1863 = vsel %vm1342, %v1862, %v1821
        %v1864 = vrot.slane %v1821, 4
        %v1865 = vsel %vm1342, %v1833, %v1864
        %v1867 = vunpack.c.l.s4 1934713408
        %v1868 = vunpack.c.0.s8 %v1867
        %v1869 = vperm.slane %v1863, %v1868
        %v1871 = vunpack.c.l.s4 1934713408
        %v1872 = vunpack.c.0.s8 %v1871
        %v1873 = vperm.slane %v1865, %v1872
        %v1874 = vrot.slane %v1837, 4
        %v1875 = vsel %vm1342, %v1874, %v1825
        %v1876 = vrot.slane %v1825, 4
        %v1877 = vsel %vm1342, %v1837, %v1876
        %v1879 = vunpack.c.l.s4 1934713408
        %v1880 = vunpack.c.0.s8 %v1879
        %v1881 = vperm.slane %v1875, %v1880
        %v1883 = vunpack.c.l.s4 1934713408
        %v1884 = vunpack.c.0.s8 %v1883
        %v1885 = vperm.slane %v1877, %v1884
        %v1886 = vrot.slane %v1869, 4
        %v1887 = vsel %vm1342, %v1886, %v1845
        %v1888 = vrot.slane %v1845, 4
        %v1889 = vsel %vm1342, %v1869, %v1888
        %v1890 = vrot.slane %v1873, 4
        %v1891 = vsel %vm1342, %v1890, %v1849
        %v1892 = vrot.slane %v1849, 4
        %v1893 = vsel %vm1342, %v1873, %v1892
        %v1894 = vrot.slane %v1881, 4
        %v1895 = vsel %vm1342, %v1894, %v1857
        %v1896 = vrot.slane %v1857, 4
        %v1897 = vsel %vm1342, %v1881, %v1896
        %v1898 = vrot.slane %v1885, 4
        %v1899 = vsel %vm1342, %v1898, %v1861
        %v1900 = vrot.slane %v1861, 4
        %v1901 = vsel %vm1342, %v1885, %v1900
        %v1902 = vrot.slane %v1329, 4
        %v1903 = vsel %vm1342, %v1902, %v1325
        %v1904 = vrot.slane %v1325, 4
        %v1905 = vsel %vm1342, %v1329, %v1904
        %v1907 = vunpack.c.l.s4 1983009808
        %v1908 = vunpack.c.0.s8 %v1907
        %v1909 = vperm.slane %v1903, %v1908
        %v1911 = vunpack.c.l.s4 1983009808
        %v1912 = vunpack.c.0.s8 %v1911
        %v1913 = vperm.slane %v1905, %v1912
        %v1914 = vrot.slane %v1331, 4
        %v1915 = vsel %vm1342, %v1914, %v1327
        %v1916 = vrot.slane %v1327, 4
        %v1917 = vsel %vm1342, %v1331, %v1916
        %v1919 = vunpack.c.l.s4 1983009808
        %v1920 = vunpack.c.0.s8 %v1919
        %v1921 = vperm.slane %v1915, %v1920
        %v1923 = vunpack.c.l.s4 1983009808
        %v1924 = vunpack.c.0.s8 %v1923
        %v1925 = vperm.slane %v1917, %v1924
        %v1926 = vrot.slane %v1337, 4
        %v1927 = vsel %vm1342, %v1926, %v1333
        %v1928 = vrot.slane %v1333, 4
        %v1929 = vsel %vm1342, %v1337, %v1928
        %v1931 = vunpack.c.l.s4 1983009808
        %v1932 = vunpack.c.0.s8 %v1931
        %v1933 = vperm.slane %v1927, %v1932
        %v1935 = vunpack.c.l.s4 1983009808
        %v1936 = vunpack.c.0.s8 %v1935
        %v1937 = vperm.slane %v1929, %v1936
        %v1938 = vrot.slane %v1339, 4
        %v1939 = vsel %vm1342, %v1938, %v1335
        %v1940 = vrot.slane %v1335, 4
        %v1941 = vsel %vm1342, %v1339, %v1940
        %v1943 = vunpack.c.l.s4 1983009808
        %v1944 = vunpack.c.0.s8 %v1943
        %v1945 = vperm.slane %v1939, %v1944
        %v1947 = vunpack.c.l.s4 1983009808
        %v1948 = vunpack.c.0.s8 %v1947
        %v1949 = vperm.slane %v1941, %v1948
        %v1950 = vrot.slane %v1921, 4
        %v1951 = vsel %vm1342, %v1950, %v1909
        %v1952 = vrot.slane %v1909, 4
        %v1953 = vsel %vm1342, %v1921, %v1952
        %v1955 = vunpack.c.l.s4 1934713408
        %v1956 = vunpack.c.0.s8 %v1955
        %v1957 = vperm.slane %v1951, %v1956
        %v1959 = vunpack.c.l.s4 1934713408
        %v1960 = vunpack.c.0.s8 %v1959
        %v1961 = vperm.slane %v1953, %v1960
        %v1962 = vrot.slane %v1925, 4
        %v1963 = vsel %vm1342, %v1962, %v1913
        %v1964 = vrot.slane %v1913, 4
        %v1965 = vsel %vm1342, %v1925, %v1964
        %v1967 = vunpack.c.l.s4 1934713408
        %v1968 = vunpack.c.0.s8 %v1967
        %v1969 = vperm.slane %v1963, %v1968
        %v1971 = vunpack.c.l.s4 1934713408
        %v1972 = vunpack.c.0.s8 %v1971
        %v1973 = vperm.slane %v1965, %v1972
        %v1974 = vrot.slane %v1945, 4
        %v1975 = vsel %vm1342, %v1974, %v1933
        %v1976 = vrot.slane %v1933, 4
        %v1977 = vsel %vm1342, %v1945, %v1976
        %v1979 = vunpack.c.l.s4 1934713408
        %v1980 = vunpack.c.0.s8 %v1979
        %v1981 = vperm.slane %v1975, %v1980
        %v1983 = vunpack.c.l.s4 1934713408
        %v1984 = vunpack.c.0.s8 %v1983
        %v1985 = vperm.slane %v1977, %v1984
        %v1986 = vrot.slane %v1949, 4
        %v1987 = vsel %vm1342, %v1986, %v1937
        %v1988 = vrot.slane %v1937, 4
        %v1989 = vsel %vm1342, %v1949, %v1988
        %v1991 = vunpack.c.l.s4 1934713408
        %v1992 = vunpack.c.0.s8 %v1991
        %v1993 = vperm.slane %v1987, %v1992
        %v1995 = vunpack.c.l.s4 1934713408
        %v1996 = vunpack.c.0.s8 %v1995
        %v1997 = vperm.slane %v1989, %v1996
        %v1998 = vrot.slane %v1981, 4
        %v1999 = vsel %vm1342, %v1998, %v1957
        %v2000 = vrot.slane %v1957, 4
        %v2001 = vsel %vm1342, %v1981, %v2000
        %v2002 = vrot.slane %v1985, 4
        %v2003 = vsel %vm1342, %v2002, %v1961
        %v2004 = vrot.slane %v1961, 4
        %v2005 = vsel %vm1342, %v1985, %v2004
        %v2006 = vrot.slane %v1993, 4
        %v2007 = vsel %vm1342, %v2006, %v1969
        %v2008 = vrot.slane %v1969, 4
        %v2009 = vsel %vm1342, %v1993, %v2008
        %v2010 = vrot.slane %v1997, 4
        %v2011 = vsel %vm1342, %v2010, %v1973
        %v2012 = vrot.slane %v1973, 4
        %v2013 = vsel %vm1342, %v1997, %v2012
        %v2014 = vrot.slane %v1314, 4
        %v2015 = vsel %vm1342, %v2014, %v1310
        %v2016 = vrot.slane %v1310, 4
        %v2017 = vsel %vm1342, %v1314, %v2016
        %v2019 = vunpack.c.l.s4 1983009808
        %v2020 = vunpack.c.0.s8 %v2019
        %v2021 = vperm.slane %v2015, %v2020
        %v2023 = vunpack.c.l.s4 1983009808
        %v2024 = vunpack.c.0.s8 %v2023
        %v2025 = vperm.slane %v2017, %v2024
        %v2026 = vrot.slane %v1316, 4
        %v2027 = vsel %vm1342, %v2026, %v1312
        %v2028 = vrot.slane %v1312, 4
        %v2029 = vsel %vm1342, %v1316, %v2028
        %v2031 = vunpack.c.l.s4 1983009808
        %v2032 = vunpack.c.0.s8 %v2031
        %v2033 = vperm.slane %v2027, %v2032
        %v2035 = vunpack.c.l.s4 1983009808
        %v2036 = vunpack.c.0.s8 %v2035
        %v2037 = vperm.slane %v2029, %v2036
        %v2038 = vrot.slane %v1322, 4
        %v2039 = vsel %vm1342, %v2038, %v1318
        %v2040 = vrot.slane %v1318, 4
        %v2041 = vsel %vm1342, %v1322, %v2040
        %v2043 = vunpack.c.l.s4 1983009808
        %v2044 = vunpack.c.0.s8 %v2043
        %v2045 = vperm.slane %v2039, %v2044
        %v2047 = vunpack.c.l.s4 1983009808
        %v2048 = vunpack.c.0.s8 %v2047
        %v2049 = vperm.slane %v2041, %v2048
        %v2050 = vrot.slane %v1324, 4
        %v2051 = vsel %vm1342, %v2050, %v1320
        %v2052 = vrot.slane %v1320, 4
        %v2053 = vsel %vm1342, %v1324, %v2052
        %v2055 = vunpack.c.l.s4 1983009808
        %v2056 = vunpack.c.0.s8 %v2055
        %v2057 = vperm.slane %v2051, %v2056
        %v2059 = vunpack.c.l.s4 1983009808
        %v2060 = vunpack.c.0.s8 %v2059
        %v2061 = vperm.slane %v2053, %v2060
        %v2062 = vrot.slane %v2033, 4
        %v2063 = vsel %vm1342, %v2062, %v2021
        %v2064 = vrot.slane %v2021, 4
        %v2065 = vsel %vm1342, %v2033, %v2064
        %v2067 = vunpack.c.l.s4 1934713408
        %v2068 = vunpack.c.0.s8 %v2067
        %v2069 = vperm.slane %v2063, %v2068
        %v2071 = vunpack.c.l.s4 1934713408
        %v2072 = vunpack.c.0.s8 %v2071
        %v2073 = vperm.slane %v2065, %v2072
        %v2074 = vrot.slane %v2037, 4
        %v2075 = vsel %vm1342, %v2074, %v2025
        %v2076 = vrot.slane %v2025, 4
        %v2077 = vsel %vm1342, %v2037, %v2076
        %v2079 = vunpack.c.l.s4 1934713408
        %v2080 = vunpack.c.0.s8 %v2079
        %v2081 = vperm.slane %v2075, %v2080
        %v2083 = vunpack.c.l.s4 1934713408
        %v2084 = vunpack.c.0.s8 %v2083
        %v2085 = vperm.slane %v2077, %v2084
        %v2086 = vrot.slane %v2057, 4
        %v2087 = vsel %vm1342, %v2086, %v2045
        %v2088 = vrot.slane %v2045, 4
        %v2089 = vsel %vm1342, %v2057, %v2088
        %v2091 = vunpack.c.l.s4 1934713408
        %v2092 = vunpack.c.0.s8 %v2091
        %v2093 = vperm.slane %v2087, %v2092
        %v2095 = vunpack.c.l.s4 1934713408
        %v2096 = vunpack.c.0.s8 %v2095
        %v2097 = vperm.slane %v2089, %v2096
        %v2098 = vrot.slane %v2061, 4
        %v2099 = vsel %vm1342, %v2098, %v2049
        %v2100 = vrot.slane %v2049, 4
        %v2101 = vsel %vm1342, %v2061, %v2100
        %v2103 = vunpack.c.l.s4 1934713408
        %v2104 = vunpack.c.0.s8 %v2103
        %v2105 = vperm.slane %v2099, %v2104
        %v2107 = vunpack.c.l.s4 1934713408
        %v2108 = vunpack.c.0.s8 %v2107
        %v2109 = vperm.slane %v2101, %v2108
        %v2110 = vrot.slane %v2093, 4
        %v2111 = vsel %vm1342, %v2110, %v2069
        %v2112 = vrot.slane %v2069, 4
        %v2113 = vsel %vm1342, %v2093, %v2112
        %v2114 = vrot.slane %v2097, 4
        %v2115 = vsel %vm1342, %v2114, %v2073
        %v2116 = vrot.slane %v2073, 4
        %v2117 = vsel %vm1342, %v2097, %v2116
        %v2118 = vrot.slane %v2105, 4
        %v2119 = vsel %vm1342, %v2118, %v2081
        %v2120 = vrot.slane %v2081, 4
        %v2121 = vsel %vm1342, %v2105, %v2120
        %v2122 = vrot.slane %v2109, 4
        %v2123 = vsel %vm1342, %v2122, %v2085
        %v2124 = vrot.slane %v2085, 4
        %v2125 = vsel %vm1342, %v2109, %v2124
        %v2126 = vrot.slane %v1330, 4
        %v2127 = vsel %vm1342, %v2126, %v1326
        %v2128 = vrot.slane %v1326, 4
        %v2129 = vsel %vm1342, %v1330, %v2128
        %v2131 = vunpack.c.l.s4 1983009808
        %v2132 = vunpack.c.0.s8 %v2131
        %v2133 = vperm.slane %v2127, %v2132
        %v2135 = vunpack.c.l.s4 1983009808
        %v2136 = vunpack.c.0.s8 %v2135
        %v2137 = vperm.slane %v2129, %v2136
        %v2138 = vrot.slane %v1332, 4
        %v2139 = vsel %vm1342, %v2138, %v1328
        %v2140 = vrot.slane %v1328, 4
        %v2141 = vsel %vm1342, %v1332, %v2140
        %v2143 = vunpack.c.l.s4 1983009808
        %v2144 = vunpack.c.0.s8 %v2143
        %v2145 = vperm.slane %v2139, %v2144
        %v2147 = vunpack.c.l.s4 1983009808
        %v2148 = vunpack.c.0.s8 %v2147
        %v2149 = vperm.slane %v2141, %v2148
        %v2150 = vrot.slane %v1338, 4
        %v2151 = vsel %vm1342, %v2150, %v1334
        %v2152 = vrot.slane %v1334, 4
        %v2153 = vsel %vm1342, %v1338, %v2152
        %v2155 = vunpack.c.l.s4 1983009808
        %v2156 = vunpack.c.0.s8 %v2155
        %v2157 = vperm.slane %v2151, %v2156
        %v2159 = vunpack.c.l.s4 1983009808
        %v2160 = vunpack.c.0.s8 %v2159
        %v2161 = vperm.slane %v2153, %v2160
        %v2162 = vrot.slane %v1340, 4
        %v2163 = vsel %vm1342, %v2162, %v1336
        %v2164 = vrot.slane %v1336, 4
        %v2165 = vsel %vm1342, %v1340, %v2164
        %v2167 = vunpack.c.l.s4 1983009808
        %v2168 = vunpack.c.0.s8 %v2167
        %v2169 = vperm.slane %v2163, %v2168
        %v2171 = vunpack.c.l.s4 1983009808
        %v2172 = vunpack.c.0.s8 %v2171
        %v2173 = vperm.slane %v2165, %v2172
        %v2174 = vrot.slane %v2145, 4
        %v2175 = vsel %vm1342, %v2174, %v2133
        %v2176 = vrot.slane %v2133, 4
        %v2177 = vsel %vm1342, %v2145, %v2176
        %v2179 = vunpack.c.l.s4 1934713408
        %v2180 = vunpack.c.0.s8 %v2179
        %v2181 = vperm.slane %v2175, %v2180
        %v2183 = vunpack.c.l.s4 1934713408
        %v2184 = vunpack.c.0.s8 %v2183
        %v2185 = vperm.slane %v2177, %v2184
        %v2186 = vrot.slane %v2149, 4
        %v2187 = vsel %vm1342, %v2186, %v2137
        %v2188 = vrot.slane %v2137, 4
        %v2189 = vsel %vm1342, %v2149, %v2188
        %v2191 = vunpack.c.l.s4 1934713408
        %v2192 = vunpack.c.0.s8 %v2191
        %v2193 = vperm.slane %v2187, %v2192
        %v2195 = vunpack.c.l.s4 1934713408
        %v2196 = vunpack.c.0.s8 %v2195
        %v2197 = vperm.slane %v2189, %v2196
        %v2198 = vrot.slane %v2169, 4
        %v2199 = vsel %vm1342, %v2198, %v2157
        %v2200 = vrot.slane %v2157, 4
        %v2201 = vsel %vm1342, %v2169, %v2200
        %v2203 = vunpack.c.l.s4 1934713408
        %v2204 = vunpack.c.0.s8 %v2203
        %v2205 = vperm.slane %v2199, %v2204
        %v2207 = vunpack.c.l.s4 1934713408
        %v2208 = vunpack.c.0.s8 %v2207
        %v2209 = vperm.slane %v2201, %v2208
        %v2210 = vrot.slane %v2173, 4
        %v2211 = vsel %vm1342, %v2210, %v2161
        %v2212 = vrot.slane %v2161, 4
        %v2213 = vsel %vm1342, %v2173, %v2212
        %v2215 = vunpack.c.l.s4 1934713408
        %v2216 = vunpack.c.0.s8 %v2215
        %v2217 = vperm.slane %v2211, %v2216
        %v2219 = vunpack.c.l.s4 1934713408
        %v2220 = vunpack.c.0.s8 %v2219
        %v2221 = vperm.slane %v2213, %v2220
        %v2222 = vrot.slane %v2205, 4
        %v2223 = vsel %vm1342, %v2222, %v2181
        %v2224 = vrot.slane %v2181, 4
        %v2225 = vsel %vm1342, %v2205, %v2224
        %v2226 = vrot.slane %v2209, 4
        %v2227 = vsel %vm1342, %v2226, %v2185
        %v2228 = vrot.slane %v2185, 4
        %v2229 = vsel %vm1342, %v2209, %v2228
        %v2230 = vrot.slane %v2217, 4
        %v2231 = vsel %vm1342, %v2230, %v2193
        %v2232 = vrot.slane %v2193, 4
        %v2233 = vsel %vm1342, %v2217, %v2232
        %v2234 = vrot.slane %v2221, 4
        %v2235 = vsel %vm1342, %v2234, %v2197
        %v2236 = vrot.slane %v2197, 4
        %v2237 = vsel %vm1342, %v2221, %v2236
        %2242 = vrot.lane.b32.xlu0 %v1441, 2
        %v2243 = vpop.permute.xlu0 %2242
        %2244 = vrot.lane.b32.xlu0 %v1553, 2
        %v2245 = vpop.permute.xlu0 %2244
        %2246 = vrot.lane.b32.xlu0 %v1889, 2
        %v2247 = vpop.permute.xlu0 %2246
        %2248 = vrot.lane.b32.xlu0 %v2001, 2
        %v2249 = vpop.permute.xlu0 %2248
        %2258 = vrot.lane.b32.xlu0 %v1443, 4
        %v2259 = vpop.permute.xlu0 %2258
        %2260 = vrot.lane.b32.xlu0 %v1555, 4
        %v2261 = vpop.permute.xlu0 %2260
        %2262 = vrot.lane.b32.xlu0 %v1891, 4
        %v2263 = vpop.permute.xlu0 %2262
        %2264 = vrot.lane.b32.xlu0 %v2003, 4
        %v2265 = vpop.permute.xlu0 %2264
        %2274 = vrot.lane.b32.xlu0 %v1445, 6
        %v2275 = vpop.permute.xlu0 %2274
        %2276 = vrot.lane.b32.xlu0 %v1557, 6
        %v2277 = vpop.permute.xlu0 %2276
        %2278 = vrot.lane.b32.xlu0 %v1893, 6
        %v2279 = vpop.permute.xlu0 %2278
        %2280 = vrot.lane.b32.xlu0 %v2005, 6
        %v2281 = vpop.permute.xlu0 %2280
        %2290 = vrot.lane.b32.xlu0 %v1447, 8
        %v2291 = vpop.permute.xlu0 %2290
        %2292 = vrot.lane.b32.xlu0 %v1559, 8
        %v2293 = vpop.permute.xlu0 %2292
        %2294 = vrot.lane.b32.xlu0 %v1895, 8
        %v2295 = vpop.permute.xlu0 %2294
        %2296 = vrot.lane.b32.xlu0 %v2007, 8
        %v2297 = vpop.permute.xlu0 %2296
        %2306 = vrot.lane.b32.xlu0 %v1449, 10
        %v2307 = vpop.permute.xlu0 %2306
        %2308 = vrot.lane.b32.xlu0 %v1561, 10
        %v2309 = vpop.permute.xlu0 %2308
        %2310 = vrot.lane.b32.xlu0 %v1897, 10
        %v2311 = vpop.permute.xlu0 %2310
        %2312 = vrot.lane.b32.xlu0 %v2009, 10
        %v2313 = vpop.permute.xlu0 %2312
        %2322 = vrot.lane.b32.xlu0 %v1451, 12
        %v2323 = vpop.permute.xlu0 %2322
        %2324 = vrot.lane.b32.xlu0 %v1563, 12
        %v2325 = vpop.permute.xlu0 %2324
        %2326 = vrot.lane.b32.xlu0 %v1899, 12
        %v2327 = vpop.permute.xlu0 %2326
        %2328 = vrot.lane.b32.xlu0 %v2011, 12
        %v2329 = vpop.permute.xlu0 %2328
        %2338 = vrot.lane.b32.xlu0 %v1453, 14
        %v2339 = vpop.permute.xlu0 %2338
        %2340 = vrot.lane.b32.xlu0 %v1565, 14
        %v2341 = vpop.permute.xlu0 %2340
        %2342 = vrot.lane.b32.xlu0 %v1901, 14
        %v2343 = vpop.permute.xlu0 %2342
        %2344 = vrot.lane.b32.xlu0 %v2013, 14
        %v2345 = vpop.permute.xlu0 %2344
        %2354 = vrot.lane.b32.xlu0 %v1663, 16
        %v2355 = vpop.permute.xlu0 %2354
        %2356 = vrot.lane.b32.xlu0 %v1775, 16
        %v2357 = vpop.permute.xlu0 %2356
        %2358 = vrot.lane.b32.xlu0 %v2111, 16
        %v2359 = vpop.permute.xlu0 %2358
        %2360 = vrot.lane.b32.xlu0 %v2223, 16
        %v2361 = vpop.permute.xlu0 %2360
        %2370 = vrot.lane.b32.xlu0 %v1665, 18
        %v2371 = vpop.permute.xlu0 %2370
        %2372 = vrot.lane.b32.xlu0 %v1777, 18
        %v2373 = vpop.permute.xlu0 %2372
        %2374 = vrot.lane.b32.xlu0 %v2113, 18
        %v2375 = vpop.permute.xlu0 %2374
        %2376 = vrot.lane.b32.xlu0 %v2225, 18
        %v2377 = vpop.permute.xlu0 %2376
        %2386 = vrot.lane.b32.xlu0 %v1667, 20
        %v2387 = vpop.permute.xlu0 %2386
        %2388 = vrot.lane.b32.xlu0 %v1779, 20
        %v2389 = vpop.permute.xlu0 %2388
        %2390 = vrot.lane.b32.xlu0 %v2115, 20
        %v2391 = vpop.permute.xlu0 %2390
        %2392 = vrot.lane.b32.xlu0 %v2227, 20
        %v2393 = vpop.permute.xlu0 %2392
        %2402 = vrot.lane.b32.xlu0 %v1669, 22
        %v2403 = vpop.permute.xlu0 %2402
        %2404 = vrot.lane.b32.xlu0 %v1781, 22
        %v2405 = vpop.permute.xlu0 %2404
        %2406 = vrot.lane.b32.xlu0 %v2117, 22
        %v2407 = vpop.permute.xlu0 %2406
        %2408 = vrot.lane.b32.xlu0 %v2229, 22
        %v2409 = vpop.permute.xlu0 %2408
        %2418 = vrot.lane.b32.xlu0 %v1671, 24
        %v2419 = vpop.permute.xlu0 %2418
        %2420 = vrot.lane.b32.xlu0 %v1783, 24
        %v2421 = vpop.permute.xlu0 %2420
        %2422 = vrot.lane.b32.xlu0 %v2119, 24
        %v2423 = vpop.permute.xlu0 %2422
        %2424 = vrot.lane.b32.xlu0 %v2231, 24
        %v2425 = vpop.permute.xlu0 %2424
        %2434 = vrot.lane.b32.xlu0 %v1673, 26
        %v2435 = vpop.permute.xlu0 %2434
        %2436 = vrot.lane.b32.xlu0 %v1785, 26
        %v2437 = vpop.permute.xlu0 %2436
        %2438 = vrot.lane.b32.xlu0 %v2121, 26
        %v2439 = vpop.permute.xlu0 %2438
        %2440 = vrot.lane.b32.xlu0 %v2233, 26
        %v2441 = vpop.permute.xlu0 %2440
        %2450 = vrot.lane.b32.xlu0 %v1675, 28
        %v2451 = vpop.permute.xlu0 %2450
        %2452 = vrot.lane.b32.xlu0 %v1787, 28
        %v2453 = vpop.permute.xlu0 %2452
        %2454 = vrot.lane.b32.xlu0 %v2123, 28
        %v2455 = vpop.permute.xlu0 %2454
        %2456 = vrot.lane.b32.xlu0 %v2235, 28
        %v2457 = vpop.permute.xlu0 %2456
        %2466 = vrot.lane.b32.xlu0 %v1677, 30
        %v2467 = vpop.permute.xlu0 %2466
        %2468 = vrot.lane.b32.xlu0 %v1789, 30
        %v2469 = vpop.permute.xlu0 %2468
        %2470 = vrot.lane.b32.xlu0 %v2125, 30
        %v2471 = vpop.permute.xlu0 %2470
        %2472 = vrot.lane.b32.xlu0 %v2237, 30
        %v2473 = vpop.permute.xlu0 %2472
        %vm2478 = vcmask 15360
        %v2479 = vsel %vm2478, %v1439, %v2243
        %v2480 = vsel %vm2478, %v1551, %v2245
        %v2481 = vsel %vm2478, %v1887, %v2247
        %v2482 = vsel %vm2478, %v1999, %v2249
        %vm2483 = vcmask 31744
        %v2484 = vsel %vm2483, %v2479, %v2259
        %v2485 = vsel %vm2483, %v2480, %v2261
        %v2486 = vsel %vm2483, %v2481, %v2263
        %v2487 = vsel %vm2483, %v2482, %v2265
        %vm2488 = vcmask 48128
        %v2489 = vsel %vm2488, %v2484, %v2275
        %v2490 = vsel %vm2488, %v2485, %v2277
        %v2491 = vsel %vm2488, %v2486, %v2279
        %v2492 = vsel %vm2488, %v2487, %v2281
        %vm2493 = vcmask 64512
        %v2494 = vsel %vm2493, %v2489, %v2291
        %v2495 = vsel %vm2493, %v2490, %v2293
        %v2496 = vsel %vm2493, %v2491, %v2295
        %v2497 = vsel %vm2493, %v2492, %v2297
        %vm2498 = vcmask 80896
        %v2499 = vsel %vm2498, %v2494, %v2307
        %v2500 = vsel %vm2498, %v2495, %v2309
        %v2501 = vsel %vm2498, %v2496, %v2311
        %v2502 = vsel %vm2498, %v2497, %v2313
        %vm2503 = vcmask 97280
        %v2504 = vsel %vm2503, %v2499, %v2323
        %v2505 = vsel %vm2503, %v2500, %v2325
        %v2506 = vsel %vm2503, %v2501, %v2327
        %v2507 = vsel %vm2503, %v2502, %v2329
        %vm2508 = vcmask 113664
        %v2509 = vsel %vm2508, %v2504, %v2339
        %v2510 = vsel %vm2508, %v2505, %v2341
        %v2511 = vsel %vm2508, %v2506, %v2343
        %v2512 = vsel %vm2508, %v2507, %v2345
        %vm2513 = vcmask 130048
        %v2514 = vsel %vm2513, %v2509, %v2355
        %v2515 = vsel %vm2513, %v2510, %v2357
        %v2516 = vsel %vm2513, %v2511, %v2359
        %v2517 = vsel %vm2513, %v2512, %v2361
        %vm2518 = vcmask 146432
        %v2519 = vsel %vm2518, %v2514, %v2371
        %v2520 = vsel %vm2518, %v2515, %v2373
        %v2521 = vsel %vm2518, %v2516, %v2375
        %v2522 = vsel %vm2518, %v2517, %v2377
        %vm2523 = vcmask 162816
        %v2524 = vsel %vm2523, %v2519, %v2387
        %v2525 = vsel %vm2523, %v2520, %v2389
        %v2526 = vsel %vm2523, %v2521, %v2391
        %v2527 = vsel %vm2523, %v2522, %v2393
        %vm2528 = vcmask 179200
        %v2529 = vsel %vm2528, %v2524, %v2403
        %v2530 = vsel %vm2528, %v2525, %v2405
        %v2531 = vsel %vm2528, %v2526, %v2407
        %v2532 = vsel %vm2528, %v2527, %v2409
        %vm2533 = vcmask 195584
        %v2534 = vsel %vm2533, %v2529, %v2419
        %v2535 = vsel %vm2533, %v2530, %v2421
        %v2536 = vsel %vm2533, %v2531, %v2423
        %v2537 = vsel %vm2533, %v2532, %v2425
        %vm2538 = vcmask 211968
        %v2539 = vsel %vm2538, %v2534, %v2435
        %v2540 = vsel %vm2538, %v2535, %v2437
        %v2541 = vsel %vm2538, %v2536, %v2439
        %v2542 = vsel %vm2538, %v2537, %v2441
        %vm2543 = vcmask 228352
        %v2544 = vsel %vm2543, %v2539, %v2451
        %v2545 = vsel %vm2543, %v2540, %v2453
        %v2546 = vsel %vm2543, %v2541, %v2455
        %v2547 = vsel %vm2543, %v2542, %v2457
        %vm2548 = vcmask 244736
        %v2549 = vsel %vm2548, %v2544, %v2467
        %v2550 = vsel %vm2548, %v2545, %v2469
        %v2551 = vsel %vm2548, %v2546, %v2471
        %v2552 = vsel %vm2548, %v2547, %v2473
        %v2553 = vmul.f32 %v334, 0.25
        %v2554 = vmul.f32 %v335, 0.25
        %v2561 = vrot.slane %v336, 1
        %v2562 = vrot.slane %v337, 1
        %v2563 = vsel %vm352, %v2561, %v2562
        %v2564 = vrot.slane %v2553, 1
        %v2565 = vsel %vm352, %v2562, %v2564
        %v2566 = vrot.slane %v338, 1
        %v2567 = vrot.slane %v339, 1
        %v2568 = vsel %vm352, %v2566, %v2567
        %v2569 = vrot.slane %v2554, 1
        %v2570 = vsel %vm352, %v2567, %v2569
        %v2577 = vadd.f32 %v340, %v2563
        %v2578 = vadd.f32 %v341, %v2565
        %v2579 = vadd.f32 %v342, %v2564
        %v2580 = vadd.f32 %v343, %v2568
        %v2581 = vadd.f32 %v344, %v2570
        %v2582 = vadd.f32 %v345, %v2569
        %v2589 = vrot.slane %v2577, 1
        %v2590 = vrot.slane %v2578, 1
        %v2591 = vsel %vm352, %v2589, %v2590
        %v2592 = vrot.slane %v2579, 1
        %v2593 = vsel %vm352, %v2590, %v2592
        %v2594 = vrot.slane %v2580, 1
        %v2595 = vrot.slane %v2581, 1
        %v2596 = vsel %vm352, %v2594, %v2595
        %v2597 = vrot.slane %v2582, 1
        %v2598 = vsel %vm352, %v2595, %v2597
        %2599 = vrot.lane.b32.xlu0 %v2591, 1
        %v2600 = vpop.permute.xlu0 %2599
        %2601 = vrot.lane.b32.xlu0 %v2593, 1
        %v2602 = vpop.permute.xlu0 %2601
        %2603 = vrot.lane.b32.xlu0 %v2596, 1
        %v2604 = vpop.permute.xlu0 %2603
        %2605 = vrot.lane.b32.xlu0 %v2598, 1
        %v2606 = vpop.permute.xlu0 %2605
        %v2611 = vsel %vm387, 0.0, %v2600
        %v2612 = vsel %vm387, 0.0, %v2602
        %v2613 = vsel %vm387, 0.0, %v2604
        %v2614 = vsel %vm387, 0.0, %v2606
        %v2615 = vsel %vm392, %v2611, 0.0
        %v2616 = vsel %vm392, %v2612, 0.0
        %v2617 = vsel %vm392, %v2613, 0.0
        %v2618 = vsel %vm392, %v2614, 0.0
        %v2619 = vmul.f32 %v2615, 0.25
        %v2620 = vmul.f32 %v2616, 0.25
        %v2621 = vmul.f32 %v2617, 0.25
        %v2622 = vmul.f32 %v2618, 0.25
        %v2623 = vmul.f32 %v2615, 0.75
        %v2624 = vmul.f32 %v2616, 0.75
        %v2625 = vmul.f32 %v2617, 0.75
        %v2626 = vmul.f32 %v2618, 0.75
        %2631 = vrot.lane.b32.xlu0 %v2623, 127
        %v2632 = vpop.permute.xlu0 %2631
        %2633 = vrot.lane.b32.xlu0 %v2624, 127
        %v2634 = vpop.permute.xlu0 %2633
        %2635 = vrot.lane.b32.xlu0 %v2625, 127
        %v2636 = vpop.permute.xlu0 %2635
        %2637 = vrot.lane.b32.xlu0 %v2626, 127
        %v2638 = vpop.permute.xlu0 %2637
        %v2643 = vadd.f32 %v2619, %v2632
        %v2644 = vadd.f32 %v2620, %v2634
        %v2645 = vadd.f32 %v2621, %v2636
        %v2646 = vadd.f32 %v2622, %v2638
        %2651 = vrot.lane.b32.xlu0 %v2619, 127
        %v2652 = vpop.permute.xlu0 %2651
        %2653 = vrot.lane.b32.xlu0 %v2620, 127
        %v2654 = vpop.permute.xlu0 %2653
        %2655 = vrot.lane.b32.xlu0 %v2621, 127
        %v2656 = vpop.permute.xlu0 %2655
        %2657 = vrot.lane.b32.xlu0 %v2622, 127
        %v2658 = vpop.permute.xlu0 %2657
        %v2663 = vadd.f32 %v2623, %v2652
        %v2664 = vadd.f32 %v2624, %v2654
        %v2665 = vadd.f32 %v2625, %v2656
        %v2666 = vadd.f32 %v2626, %v2658
        %v2667 = vperm.slane %v2643, 0
        %v2668 = vlaneseq
        %v2669 = vshrl.u32 %v2668, 7
        %2671 = vset.pattern.permute.xlu0 %v2669
        %2672 = vperm.xlu0 %2671, %v2667
        %v2673 = vpop.permute.xlu0 %2672
        %v2674 = vlaneseq
        %v2675 = vshrl.u32 %v2674, 7
        %v2676 = vadd.s32 %v2675, 8
        %2677 = vset.pattern.permute.xlu0 %v2676
        %2678 = vperm.xlu0 %2677, %v2667
        %v2679 = vpop.permute.xlu0 %2678
        %v2680 = vperm.slane %v2643, 1
        %v2681 = vlaneseq
        %v2682 = vshrl.u32 %v2681, 7
        %2684 = vset.pattern.permute.xlu0 %v2682
        %2685 = vperm.xlu0 %2684, %v2680
        %v2686 = vpop.permute.xlu0 %2685
        %v2687 = vlaneseq
        %v2688 = vshrl.u32 %v2687, 7
        %v2689 = vadd.s32 %v2688, 8
        %2690 = vset.pattern.permute.xlu0 %v2689
        %2691 = vperm.xlu0 %2690, %v2680
        %v2692 = vpop.permute.xlu0 %2691
        %v2693 = vperm.slane %v2643, 2
        %v2694 = vlaneseq
        %v2695 = vshrl.u32 %v2694, 7
        %2697 = vset.pattern.permute.xlu0 %v2695
        %2698 = vperm.xlu0 %2697, %v2693
        %v2699 = vpop.permute.xlu0 %2698
        %v2700 = vlaneseq
        %v2701 = vshrl.u32 %v2700, 7
        %v2702 = vadd.s32 %v2701, 8
        %2703 = vset.pattern.permute.xlu0 %v2702
        %2704 = vperm.xlu0 %2703, %v2693
        %v2705 = vpop.permute.xlu0 %2704
        %v2706 = vperm.slane %v2643, 3
        %v2707 = vlaneseq
        %v2708 = vshrl.u32 %v2707, 7
        %2710 = vset.pattern.permute.xlu0 %v2708
        %2711 = vperm.xlu0 %2710, %v2706
        %v2712 = vpop.permute.xlu0 %2711
        %v2713 = vlaneseq
        %v2714 = vshrl.u32 %v2713, 7
        %v2715 = vadd.s32 %v2714, 8
        %2716 = vset.pattern.permute.xlu0 %v2715
        %2717 = vperm.xlu0 %2716, %v2706
        %v2718 = vpop.permute.xlu0 %2717
        %v2719 = vperm.slane %v2643, 4
        %v2720 = vlaneseq
        %v2721 = vshrl.u32 %v2720, 7
        %2723 = vset.pattern.permute.xlu0 %v2721
        %2724 = vperm.xlu0 %2723, %v2719
        %v2725 = vpop.permute.xlu0 %2724
        %v2726 = vlaneseq
        %v2727 = vshrl.u32 %v2726, 7
        %v2728 = vadd.s32 %v2727, 8
        %2729 = vset.pattern.permute.xlu0 %v2728
        %2730 = vperm.xlu0 %2729, %v2719
        %v2731 = vpop.permute.xlu0 %2730
        %v2732 = vperm.slane %v2643, 5
        %v2733 = vlaneseq
        %v2734 = vshrl.u32 %v2733, 7
        %2736 = vset.pattern.permute.xlu0 %v2734
        %2737 = vperm.xlu0 %2736, %v2732
        %v2738 = vpop.permute.xlu0 %2737
        %v2739 = vlaneseq
        %v2740 = vshrl.u32 %v2739, 7
        %v2741 = vadd.s32 %v2740, 8
        %2742 = vset.pattern.permute.xlu0 %v2741
        %2743 = vperm.xlu0 %2742, %v2732
        %v2744 = vpop.permute.xlu0 %2743
        %v2745 = vperm.slane %v2643, 6
        %v2746 = vlaneseq
        %v2747 = vshrl.u32 %v2746, 7
        %2749 = vset.pattern.permute.xlu0 %v2747
        %2750 = vperm.xlu0 %2749, %v2745
        %v2751 = vpop.permute.xlu0 %2750
        %v2752 = vlaneseq
        %v2753 = vshrl.u32 %v2752, 7
        %v2754 = vadd.s32 %v2753, 8
        %2755 = vset.pattern.permute.xlu0 %v2754
        %2756 = vperm.xlu0 %2755, %v2745
        %v2757 = vpop.permute.xlu0 %2756
        %v2758 = vperm.slane %v2643, 7
        %v2759 = vlaneseq
        %v2760 = vshrl.u32 %v2759, 7
        %2762 = vset.pattern.permute.xlu0 %v2760
        %2763 = vperm.xlu0 %2762, %v2758
        %v2764 = vpop.permute.xlu0 %2763
        %v2765 = vlaneseq
        %v2766 = vshrl.u32 %v2765, 7
        %v2767 = vadd.s32 %v2766, 8
        %2768 = vset.pattern.permute.xlu0 %v2767
        %2769 = vperm.xlu0 %2768, %v2758
        %v2770 = vpop.permute.xlu0 %2769
        %v2771 = vperm.slane %v2644, 0
        %v2772 = vlaneseq
        %v2773 = vshrl.u32 %v2772, 7
        %2775 = vset.pattern.permute.xlu0 %v2773
        %2776 = vperm.xlu0 %2775, %v2771
        %v2777 = vpop.permute.xlu0 %2776
        %v2778 = vlaneseq
        %v2779 = vshrl.u32 %v2778, 7
        %v2780 = vadd.s32 %v2779, 8
        %2781 = vset.pattern.permute.xlu0 %v2780
        %2782 = vperm.xlu0 %2781, %v2771
        %v2783 = vpop.permute.xlu0 %2782
        %v2784 = vperm.slane %v2644, 1
        %v2785 = vlaneseq
        %v2786 = vshrl.u32 %v2785, 7
        %2788 = vset.pattern.permute.xlu0 %v2786
        %2789 = vperm.xlu0 %2788, %v2784
        %v2790 = vpop.permute.xlu0 %2789
        %v2791 = vlaneseq
        %v2792 = vshrl.u32 %v2791, 7
        %v2793 = vadd.s32 %v2792, 8
        %2794 = vset.pattern.permute.xlu0 %v2793
        %2795 = vperm.xlu0 %2794, %v2784
        %v2796 = vpop.permute.xlu0 %2795
        %v2797 = vperm.slane %v2644, 2
        %v2798 = vlaneseq
        %v2799 = vshrl.u32 %v2798, 7
        %2801 = vset.pattern.permute.xlu0 %v2799
        %2802 = vperm.xlu0 %2801, %v2797
        %v2803 = vpop.permute.xlu0 %2802
        %v2804 = vlaneseq
        %v2805 = vshrl.u32 %v2804, 7
        %v2806 = vadd.s32 %v2805, 8
        %2807 = vset.pattern.permute.xlu0 %v2806
        %2808 = vperm.xlu0 %2807, %v2797
        %v2809 = vpop.permute.xlu0 %2808
        %v2810 = vperm.slane %v2644, 3
        %v2811 = vlaneseq
        %v2812 = vshrl.u32 %v2811, 7
        %2814 = vset.pattern.permute.xlu0 %v2812
        %2815 = vperm.xlu0 %2814, %v2810
        %v2816 = vpop.permute.xlu0 %2815
        %v2817 = vlaneseq
        %v2818 = vshrl.u32 %v2817, 7
        %v2819 = vadd.s32 %v2818, 8
        %2820 = vset.pattern.permute.xlu0 %v2819
        %2821 = vperm.xlu0 %2820, %v2810
        %v2822 = vpop.permute.xlu0 %2821
        %v2823 = vperm.slane %v2644, 4
        %v2824 = vlaneseq
        %v2825 = vshrl.u32 %v2824, 7
        %2827 = vset.pattern.permute.xlu0 %v2825
        %2828 = vperm.xlu0 %2827, %v2823
        %v2829 = vpop.permute.xlu0 %2828
        %v2830 = vlaneseq
        %v2831 = vshrl.u32 %v2830, 7
        %v2832 = vadd.s32 %v2831, 8
        %2833 = vset.pattern.permute.xlu0 %v2832
        %2834 = vperm.xlu0 %2833, %v2823
        %v2835 = vpop.permute.xlu0 %2834
        %v2836 = vperm.slane %v2644, 5
        %v2837 = vlaneseq
        %v2838 = vshrl.u32 %v2837, 7
        %2840 = vset.pattern.permute.xlu0 %v2838
        %2841 = vperm.xlu0 %2840, %v2836
        %v2842 = vpop.permute.xlu0 %2841
        %v2843 = vlaneseq
        %v2844 = vshrl.u32 %v2843, 7
        %v2845 = vadd.s32 %v2844, 8
        %2846 = vset.pattern.permute.xlu0 %v2845
        %2847 = vperm.xlu0 %2846, %v2836
        %v2848 = vpop.permute.xlu0 %2847
        %v2849 = vperm.slane %v2644, 6
        %v2850 = vlaneseq
        %v2851 = vshrl.u32 %v2850, 7
        %2853 = vset.pattern.permute.xlu0 %v2851
        %2854 = vperm.xlu0 %2853, %v2849
        %v2855 = vpop.permute.xlu0 %2854
        %v2856 = vlaneseq
        %v2857 = vshrl.u32 %v2856, 7
        %v2858 = vadd.s32 %v2857, 8
        %2859 = vset.pattern.permute.xlu0 %v2858
        %2860 = vperm.xlu0 %2859, %v2849
        %v2861 = vpop.permute.xlu0 %2860
        %v2862 = vperm.slane %v2644, 7
        %v2863 = vlaneseq
        %v2864 = vshrl.u32 %v2863, 7
        %2866 = vset.pattern.permute.xlu0 %v2864
        %2867 = vperm.xlu0 %2866, %v2862
        %v2868 = vpop.permute.xlu0 %2867
        %v2869 = vlaneseq
        %v2870 = vshrl.u32 %v2869, 7
        %v2871 = vadd.s32 %v2870, 8
        %2872 = vset.pattern.permute.xlu0 %v2871
        %2873 = vperm.xlu0 %2872, %v2862
        %v2874 = vpop.permute.xlu0 %2873
        %v2875 = vperm.slane %v2645, 0
        %v2876 = vlaneseq
        %v2877 = vshrl.u32 %v2876, 7
        %2879 = vset.pattern.permute.xlu0 %v2877
        %2880 = vperm.xlu0 %2879, %v2875
        %v2881 = vpop.permute.xlu0 %2880
        %v2882 = vlaneseq
        %v2883 = vshrl.u32 %v2882, 7
        %v2884 = vadd.s32 %v2883, 8
        %2885 = vset.pattern.permute.xlu0 %v2884
        %2886 = vperm.xlu0 %2885, %v2875
        %v2887 = vpop.permute.xlu0 %2886
        %v2888 = vperm.slane %v2645, 1
        %v2889 = vlaneseq
        %v2890 = vshrl.u32 %v2889, 7
        %2892 = vset.pattern.permute.xlu0 %v2890
        %2893 = vperm.xlu0 %2892, %v2888
        %v2894 = vpop.permute.xlu0 %2893
        %v2895 = vlaneseq
        %v2896 = vshrl.u32 %v2895, 7
        %v2897 = vadd.s32 %v2896, 8
        %2898 = vset.pattern.permute.xlu0 %v2897
        %2899 = vperm.xlu0 %2898, %v2888
        %v2900 = vpop.permute.xlu0 %2899
        %v2901 = vperm.slane %v2645, 2
        %v2902 = vlaneseq
        %v2903 = vshrl.u32 %v2902, 7
        %2905 = vset.pattern.permute.xlu0 %v2903
        %2906 = vperm.xlu0 %2905, %v2901
        %v2907 = vpop.permute.xlu0 %2906
        %v2908 = vlaneseq
        %v2909 = vshrl.u32 %v2908, 7
        %v2910 = vadd.s32 %v2909, 8
        %2911 = vset.pattern.permute.xlu0 %v2910
        %2912 = vperm.xlu0 %2911, %v2901
        %v2913 = vpop.permute.xlu0 %2912
        %v2914 = vperm.slane %v2645, 3
        %v2915 = vlaneseq
        %v2916 = vshrl.u32 %v2915, 7
        %2918 = vset.pattern.permute.xlu0 %v2916
        %2919 = vperm.xlu0 %2918, %v2914
        %v2920 = vpop.permute.xlu0 %2919
        %v2921 = vlaneseq
        %v2922 = vshrl.u32 %v2921, 7
        %v2923 = vadd.s32 %v2922, 8
        %2924 = vset.pattern.permute.xlu0 %v2923
        %2925 = vperm.xlu0 %2924, %v2914
        %v2926 = vpop.permute.xlu0 %2925
        %v2927 = vperm.slane %v2645, 4
        %v2928 = vlaneseq
        %v2929 = vshrl.u32 %v2928, 7
        %2931 = vset.pattern.permute.xlu0 %v2929
        %2932 = vperm.xlu0 %2931, %v2927
        %v2933 = vpop.permute.xlu0 %2932
        %v2934 = vlaneseq
        %v2935 = vshrl.u32 %v2934, 7
        %v2936 = vadd.s32 %v2935, 8
        %2937 = vset.pattern.permute.xlu0 %v2936
        %2938 = vperm.xlu0 %2937, %v2927
        %v2939 = vpop.permute.xlu0 %2938
        %v2940 = vperm.slane %v2645, 5
        %v2941 = vlaneseq
        %v2942 = vshrl.u32 %v2941, 7
        %2944 = vset.pattern.permute.xlu0 %v2942
        %2945 = vperm.xlu0 %2944, %v2940
        %v2946 = vpop.permute.xlu0 %2945
        %v2947 = vlaneseq
        %v2948 = vshrl.u32 %v2947, 7
        %v2949 = vadd.s32 %v2948, 8
        %2950 = vset.pattern.permute.xlu0 %v2949
        %2951 = vperm.xlu0 %2950, %v2940
        %v2952 = vpop.permute.xlu0 %2951
        %v2953 = vperm.slane %v2645, 6
        %v2954 = vlaneseq
        %v2955 = vshrl.u32 %v2954, 7
        %2957 = vset.pattern.permute.xlu0 %v2955
        %2958 = vperm.xlu0 %2957, %v2953
        %v2959 = vpop.permute.xlu0 %2958
        %v2960 = vlaneseq
        %v2961 = vshrl.u32 %v2960, 7
        %v2962 = vadd.s32 %v2961, 8
        %2963 = vset.pattern.permute.xlu0 %v2962
        %2964 = vperm.xlu0 %2963, %v2953
        %v2965 = vpop.permute.xlu0 %2964
        %v2966 = vperm.slane %v2645, 7
        %v2967 = vlaneseq
        %v2968 = vshrl.u32 %v2967, 7
        %2970 = vset.pattern.permute.xlu0 %v2968
        %2971 = vperm.xlu0 %2970, %v2966
        %v2972 = vpop.permute.xlu0 %2971
        %v2973 = vlaneseq
        %v2974 = vshrl.u32 %v2973, 7
        %v2975 = vadd.s32 %v2974, 8
        %2976 = vset.pattern.permute.xlu0 %v2975
        %2977 = vperm.xlu0 %2976, %v2966
        %v2978 = vpop.permute.xlu0 %2977
        %v2979 = vperm.slane %v2646, 0
        %v2980 = vlaneseq
        %v2981 = vshrl.u32 %v2980, 7
        %2983 = vset.pattern.permute.xlu0 %v2981
        %2984 = vperm.xlu0 %2983, %v2979
        %v2985 = vpop.permute.xlu0 %2984
        %v2986 = vlaneseq
        %v2987 = vshrl.u32 %v2986, 7
        %v2988 = vadd.s32 %v2987, 8
        %2989 = vset.pattern.permute.xlu0 %v2988
        %2990 = vperm.xlu0 %2989, %v2979
        %v2991 = vpop.permute.xlu0 %2990
        %v2992 = vperm.slane %v2646, 1
        %v2993 = vlaneseq
        %v2994 = vshrl.u32 %v2993, 7
        %2996 = vset.pattern.permute.xlu0 %v2994
        %2997 = vperm.xlu0 %2996, %v2992
        %v2998 = vpop.permute.xlu0 %2997
        %v2999 = vlaneseq
        %v3000 = vshrl.u32 %v2999, 7
        %v3001 = vadd.s32 %v3000, 8
        %3002 = vset.pattern.permute.xlu0 %v3001
        %3003 = vperm.xlu0 %3002, %v2992
        %v3004 = vpop.permute.xlu0 %3003
        %v3005 = vperm.slane %v2646, 2
        %v3006 = vlaneseq
        %v3007 = vshrl.u32 %v3006, 7
        %3009 = vset.pattern.permute.xlu0 %v3007
        %3010 = vperm.xlu0 %3009, %v3005
        %v3011 = vpop.permute.xlu0 %3010
        %v3012 = vlaneseq
        %v3013 = vshrl.u32 %v3012, 7
        %v3014 = vadd.s32 %v3013, 8
        %3015 = vset.pattern.permute.xlu0 %v3014
        %3016 = vperm.xlu0 %3015, %v3005
        %v3017 = vpop.permute.xlu0 %3016
        %v3018 = vperm.slane %v2646, 3
        %v3019 = vlaneseq
        %v3020 = vshrl.u32 %v3019, 7
        %3022 = vset.pattern.permute.xlu0 %v3020
        %3023 = vperm.xlu0 %3022, %v3018
        %v3024 = vpop.permute.xlu0 %3023
        %v3025 = vlaneseq
        %v3026 = vshrl.u32 %v3025, 7
        %v3027 = vadd.s32 %v3026, 8
        %3028 = vset.pattern.permute.xlu0 %v3027
        %3029 = vperm.xlu0 %3028, %v3018
        %v3030 = vpop.permute.xlu0 %3029
        %v3031 = vperm.slane %v2646, 4
        %v3032 = vlaneseq
        %v3033 = vshrl.u32 %v3032, 7
        %3035 = vset.pattern.permute.xlu0 %v3033
        %3036 = vperm.xlu0 %3035, %v3031
        %v3037 = vpop.permute.xlu0 %3036
        %v3038 = vlaneseq
        %v3039 = vshrl.u32 %v3038, 7
        %v3040 = vadd.s32 %v3039, 8
        %3041 = vset.pattern.permute.xlu0 %v3040
        %3042 = vperm.xlu0 %3041, %v3031
        %v3043 = vpop.permute.xlu0 %3042
        %v3044 = vperm.slane %v2646, 5
        %v3045 = vlaneseq
        %v3046 = vshrl.u32 %v3045, 7
        %3048 = vset.pattern.permute.xlu0 %v3046
        %3049 = vperm.xlu0 %3048, %v3044
        %v3050 = vpop.permute.xlu0 %3049
        %v3051 = vlaneseq
        %v3052 = vshrl.u32 %v3051, 7
        %v3053 = vadd.s32 %v3052, 8
        %3054 = vset.pattern.permute.xlu0 %v3053
        %3055 = vperm.xlu0 %3054, %v3044
        %v3056 = vpop.permute.xlu0 %3055
        %v3057 = vperm.slane %v2646, 6
        %v3058 = vlaneseq
        %v3059 = vshrl.u32 %v3058, 7
        %3061 = vset.pattern.permute.xlu0 %v3059
        %3062 = vperm.xlu0 %3061, %v3057
        %v3063 = vpop.permute.xlu0 %3062
        %v3064 = vlaneseq
        %v3065 = vshrl.u32 %v3064, 7
        %v3066 = vadd.s32 %v3065, 8
        %3067 = vset.pattern.permute.xlu0 %v3066
        %3068 = vperm.xlu0 %3067, %v3057
        %v3069 = vpop.permute.xlu0 %3068
        %v3070 = vperm.slane %v2646, 7
        %v3071 = vlaneseq
        %v3072 = vshrl.u32 %v3071, 7
        %3074 = vset.pattern.permute.xlu0 %v3072
        %3075 = vperm.xlu0 %3074, %v3070
        %v3076 = vpop.permute.xlu0 %3075
        %v3077 = vlaneseq
        %v3078 = vshrl.u32 %v3077, 7
        %v3079 = vadd.s32 %v3078, 8
        %3080 = vset.pattern.permute.xlu0 %v3079
        %3081 = vperm.xlu0 %3080, %v3070
        %v3082 = vpop.permute.xlu0 %3081
        %v3083 = vperm.slane %v2663, 0
        %v3084 = vlaneseq
        %v3085 = vshrl.u32 %v3084, 7
        %v3086 = vadd.s32 %v3085, 1
        %3087 = vset.pattern.permute.xlu0 %v3086
        %3088 = vperm.xlu0 %3087, %v3083
        %v3089 = vpop.permute.xlu0 %3088
        %v3090 = vlaneseq
        %v3091 = vshrl.u32 %v3090, 7
        %v3092 = vadd.s32 %v3091, 9
        %3093 = vset.pattern.permute.xlu0 %v3092
        %3094 = vperm.xlu0 %3093, %v3083
        %v3095 = vpop.permute.xlu0 %3094
        %v3096 = vperm.slane %v2663, 1
        %v3097 = vlaneseq
        %v3098 = vshrl.u32 %v3097, 7
        %v3099 = vadd.s32 %v3098, 1
        %3100 = vset.pattern.permute.xlu0 %v3099
        %3101 = vperm.xlu0 %3100, %v3096
        %v3102 = vpop.permute.xlu0 %3101
        %v3103 = vlaneseq
        %v3104 = vshrl.u32 %v3103, 7
        %v3105 = vadd.s32 %v3104, 9
        %3106 = vset.pattern.permute.xlu0 %v3105
        %3107 = vperm.xlu0 %3106, %v3096
        %v3108 = vpop.permute.xlu0 %3107
        %v3109 = vperm.slane %v2663, 2
        %v3110 = vlaneseq
        %v3111 = vshrl.u32 %v3110, 7
        %v3112 = vadd.s32 %v3111, 1
        %3113 = vset.pattern.permute.xlu0 %v3112
        %3114 = vperm.xlu0 %3113, %v3109
        %v3115 = vpop.permute.xlu0 %3114
        %v3116 = vlaneseq
        %v3117 = vshrl.u32 %v3116, 7
        %v3118 = vadd.s32 %v3117, 9
        %3119 = vset.pattern.permute.xlu0 %v3118
        %3120 = vperm.xlu0 %3119, %v3109
        %v3121 = vpop.permute.xlu0 %3120
        %v3122 = vperm.slane %v2663, 3
        %v3123 = vlaneseq
        %v3124 = vshrl.u32 %v3123, 7
        %v3125 = vadd.s32 %v3124, 1
        %3126 = vset.pattern.permute.xlu0 %v3125
        %3127 = vperm.xlu0 %3126, %v3122
        %v3128 = vpop.permute.xlu0 %3127
        %v3129 = vlaneseq
        %v3130 = vshrl.u32 %v3129, 7
        %v3131 = vadd.s32 %v3130, 9
        %3132 = vset.pattern.permute.xlu0 %v3131
        %3133 = vperm.xlu0 %3132, %v3122
        %v3134 = vpop.permute.xlu0 %3133
        %v3135 = vperm.slane %v2663, 4
        %v3136 = vlaneseq
        %v3137 = vshrl.u32 %v3136, 7
        %v3138 = vadd.s32 %v3137, 1
        %3139 = vset.pattern.permute.xlu0 %v3138
        %3140 = vperm.xlu0 %3139, %v3135
        %v3141 = vpop.permute.xlu0 %3140
        %v3142 = vlaneseq
        %v3143 = vshrl.u32 %v3142, 7
        %v3144 = vadd.s32 %v3143, 9
        %3145 = vset.pattern.permute.xlu0 %v3144
        %3146 = vperm.xlu0 %3145, %v3135
        %v3147 = vpop.permute.xlu0 %3146
        %v3148 = vperm.slane %v2663, 5
        %v3149 = vlaneseq
        %v3150 = vshrl.u32 %v3149, 7
        %v3151 = vadd.s32 %v3150, 1
        %3152 = vset.pattern.permute.xlu0 %v3151
        %3153 = vperm.xlu0 %3152, %v3148
        %v3154 = vpop.permute.xlu0 %3153
        %v3155 = vlaneseq
        %v3156 = vshrl.u32 %v3155, 7
        %v3157 = vadd.s32 %v3156, 9
        %3158 = vset.pattern.permute.xlu0 %v3157
        %3159 = vperm.xlu0 %3158, %v3148
        %v3160 = vpop.permute.xlu0 %3159
        %v3161 = vperm.slane %v2663, 6
        %v3162 = vlaneseq
        %v3163 = vshrl.u32 %v3162, 7
        %v3164 = vadd.s32 %v3163, 1
        %3165 = vset.pattern.permute.xlu0 %v3164
        %3166 = vperm.xlu0 %3165, %v3161
        %v3167 = vpop.permute.xlu0 %3166
        %v3168 = vlaneseq
        %v3169 = vshrl.u32 %v3168, 7
        %v3170 = vadd.s32 %v3169, 9
        %3171 = vset.pattern.permute.xlu0 %v3170
        %3172 = vperm.xlu0 %3171, %v3161
        %v3173 = vpop.permute.xlu0 %3172
        %v3174 = vperm.slane %v2663, 7
        %v3175 = vlaneseq
        %v3176 = vshrl.u32 %v3175, 7
        %v3177 = vadd.s32 %v3176, 1
        %3178 = vset.pattern.permute.xlu0 %v3177
        %3179 = vperm.xlu0 %3178, %v3174
        %v3180 = vpop.permute.xlu0 %3179
        %v3181 = vlaneseq
        %v3182 = vshrl.u32 %v3181, 7
        %v3183 = vadd.s32 %v3182, 9
        %3184 = vset.pattern.permute.xlu0 %v3183
        %3185 = vperm.xlu0 %3184, %v3174
        %v3186 = vpop.permute.xlu0 %3185
        %v3187 = vperm.slane %v2664, 0
        %v3188 = vlaneseq
        %v3189 = vshrl.u32 %v3188, 7
        %v3190 = vadd.s32 %v3189, 1
        %3191 = vset.pattern.permute.xlu0 %v3190
        %3192 = vperm.xlu0 %3191, %v3187
        %v3193 = vpop.permute.xlu0 %3192
        %v3194 = vlaneseq
        %v3195 = vshrl.u32 %v3194, 7
        %v3196 = vadd.s32 %v3195, 9
        %3197 = vset.pattern.permute.xlu0 %v3196
        %3198 = vperm.xlu0 %3197, %v3187
        %v3199 = vpop.permute.xlu0 %3198
        %v3200 = vperm.slane %v2664, 1
        %v3201 = vlaneseq
        %v3202 = vshrl.u32 %v3201, 7
        %v3203 = vadd.s32 %v3202, 1
        %3204 = vset.pattern.permute.xlu0 %v3203
        %3205 = vperm.xlu0 %3204, %v3200
        %v3206 = vpop.permute.xlu0 %3205
        %v3207 = vlaneseq
        %v3208 = vshrl.u32 %v3207, 7
        %v3209 = vadd.s32 %v3208, 9
        %3210 = vset.pattern.permute.xlu0 %v3209
        %3211 = vperm.xlu0 %3210, %v3200
        %v3212 = vpop.permute.xlu0 %3211
        %v3213 = vperm.slane %v2664, 2
        %v3214 = vlaneseq
        %v3215 = vshrl.u32 %v3214, 7
        %v3216 = vadd.s32 %v3215, 1
        %3217 = vset.pattern.permute.xlu0 %v3216
        %3218 = vperm.xlu0 %3217, %v3213
        %v3219 = vpop.permute.xlu0 %3218
        %v3220 = vlaneseq
        %v3221 = vshrl.u32 %v3220, 7
        %v3222 = vadd.s32 %v3221, 9
        %3223 = vset.pattern.permute.xlu0 %v3222
        %3224 = vperm.xlu0 %3223, %v3213
        %v3225 = vpop.permute.xlu0 %3224
        %v3226 = vperm.slane %v2664, 3
        %v3227 = vlaneseq
        %v3228 = vshrl.u32 %v3227, 7
        %v3229 = vadd.s32 %v3228, 1
        %3230 = vset.pattern.permute.xlu0 %v3229
        %3231 = vperm.xlu0 %3230, %v3226
        %v3232 = vpop.permute.xlu0 %3231
        %v3233 = vlaneseq
        %v3234 = vshrl.u32 %v3233, 7
        %v3235 = vadd.s32 %v3234, 9
        %3236 = vset.pattern.permute.xlu0 %v3235
        %3237 = vperm.xlu0 %3236, %v3226
        %v3238 = vpop.permute.xlu0 %3237
        %v3239 = vperm.slane %v2664, 4
        %v3240 = vlaneseq
        %v3241 = vshrl.u32 %v3240, 7
        %v3242 = vadd.s32 %v3241, 1
        %3243 = vset.pattern.permute.xlu0 %v3242
        %3244 = vperm.xlu0 %3243, %v3239
        %v3245 = vpop.permute.xlu0 %3244
        %v3246 = vlaneseq
        %v3247 = vshrl.u32 %v3246, 7
        %v3248 = vadd.s32 %v3247, 9
        %3249 = vset.pattern.permute.xlu0 %v3248
        %3250 = vperm.xlu0 %3249, %v3239
        %v3251 = vpop.permute.xlu0 %3250
        %v3252 = vperm.slane %v2664, 5
        %v3253 = vlaneseq
        %v3254 = vshrl.u32 %v3253, 7
        %v3255 = vadd.s32 %v3254, 1
        %3256 = vset.pattern.permute.xlu0 %v3255
        %3257 = vperm.xlu0 %3256, %v3252
        %v3258 = vpop.permute.xlu0 %3257
        %v3259 = vlaneseq
        %v3260 = vshrl.u32 %v3259, 7
        %v3261 = vadd.s32 %v3260, 9
        %3262 = vset.pattern.permute.xlu0 %v3261
        %3263 = vperm.xlu0 %3262, %v3252
        %v3264 = vpop.permute.xlu0 %3263
        %v3265 = vperm.slane %v2664, 6
        %v3266 = vlaneseq
        %v3267 = vshrl.u32 %v3266, 7
        %v3268 = vadd.s32 %v3267, 1
        %3269 = vset.pattern.permute.xlu0 %v3268
        %3270 = vperm.xlu0 %3269, %v3265
        %v3271 = vpop.permute.xlu0 %3270
        %v3272 = vlaneseq
        %v3273 = vshrl.u32 %v3272, 7
        %v3274 = vadd.s32 %v3273, 9
        %3275 = vset.pattern.permute.xlu0 %v3274
        %3276 = vperm.xlu0 %3275, %v3265
        %v3277 = vpop.permute.xlu0 %3276
        %v3278 = vperm.slane %v2664, 7
        %v3279 = vlaneseq
        %v3280 = vshrl.u32 %v3279, 7
        %v3281 = vadd.s32 %v3280, 1
        %3282 = vset.pattern.permute.xlu0 %v3281
        %3283 = vperm.xlu0 %3282, %v3278
        %v3284 = vpop.permute.xlu0 %3283
        %v3285 = vlaneseq
        %v3286 = vshrl.u32 %v3285, 7
        %v3287 = vadd.s32 %v3286, 9
        %3288 = vset.pattern.permute.xlu0 %v3287
        %3289 = vperm.xlu0 %3288, %v3278
        %v3290 = vpop.permute.xlu0 %3289
        %v3291 = vperm.slane %v2665, 0
        %v3292 = vlaneseq
        %v3293 = vshrl.u32 %v3292, 7
        %v3294 = vadd.s32 %v3293, 1
        %3295 = vset.pattern.permute.xlu0 %v3294
        %3296 = vperm.xlu0 %3295, %v3291
        %v3297 = vpop.permute.xlu0 %3296
        %v3298 = vlaneseq
        %v3299 = vshrl.u32 %v3298, 7
        %v3300 = vadd.s32 %v3299, 9
        %3301 = vset.pattern.permute.xlu0 %v3300
        %3302 = vperm.xlu0 %3301, %v3291
        %v3303 = vpop.permute.xlu0 %3302
        %v3304 = vperm.slane %v2665, 1
        %v3305 = vlaneseq
        %v3306 = vshrl.u32 %v3305, 7
        %v3307 = vadd.s32 %v3306, 1
        %3308 = vset.pattern.permute.xlu0 %v3307
        %3309 = vperm.xlu0 %3308, %v3304
        %v3310 = vpop.permute.xlu0 %3309
        %v3311 = vlaneseq
        %v3312 = vshrl.u32 %v3311, 7
        %v3313 = vadd.s32 %v3312, 9
        %3314 = vset.pattern.permute.xlu0 %v3313
        %3315 = vperm.xlu0 %3314, %v3304
        %v3316 = vpop.permute.xlu0 %3315
        %v3317 = vperm.slane %v2665, 2
        %v3318 = vlaneseq
        %v3319 = vshrl.u32 %v3318, 7
        %v3320 = vadd.s32 %v3319, 1
        %3321 = vset.pattern.permute.xlu0 %v3320
        %3322 = vperm.xlu0 %3321, %v3317
        %v3323 = vpop.permute.xlu0 %3322
        %v3324 = vlaneseq
        %v3325 = vshrl.u32 %v3324, 7
        %v3326 = vadd.s32 %v3325, 9
        %3327 = vset.pattern.permute.xlu0 %v3326
        %3328 = vperm.xlu0 %3327, %v3317
        %v3329 = vpop.permute.xlu0 %3328
        %v3330 = vperm.slane %v2665, 3
        %v3331 = vlaneseq
        %v3332 = vshrl.u32 %v3331, 7
        %v3333 = vadd.s32 %v3332, 1
        %3334 = vset.pattern.permute.xlu0 %v3333
        %3335 = vperm.xlu0 %3334, %v3330
        %v3336 = vpop.permute.xlu0 %3335
        %v3337 = vlaneseq
        %v3338 = vshrl.u32 %v3337, 7
        %v3339 = vadd.s32 %v3338, 9
        %3340 = vset.pattern.permute.xlu0 %v3339
        %3341 = vperm.xlu0 %3340, %v3330
        %v3342 = vpop.permute.xlu0 %3341
        %v3343 = vperm.slane %v2665, 4
        %v3344 = vlaneseq
        %v3345 = vshrl.u32 %v3344, 7
        %v3346 = vadd.s32 %v3345, 1
        %3347 = vset.pattern.permute.xlu0 %v3346
        %3348 = vperm.xlu0 %3347, %v3343
        %v3349 = vpop.permute.xlu0 %3348
        %v3350 = vlaneseq
        %v3351 = vshrl.u32 %v3350, 7
        %v3352 = vadd.s32 %v3351, 9
        %3353 = vset.pattern.permute.xlu0 %v3352
        %3354 = vperm.xlu0 %3353, %v3343
        %v3355 = vpop.permute.xlu0 %3354
        %v3356 = vperm.slane %v2665, 5
        %v3357 = vlaneseq
        %v3358 = vshrl.u32 %v3357, 7
        %v3359 = vadd.s32 %v3358, 1
        %3360 = vset.pattern.permute.xlu0 %v3359
        %3361 = vperm.xlu0 %3360, %v3356
        %v3362 = vpop.permute.xlu0 %3361
        %v3363 = vlaneseq
        %v3364 = vshrl.u32 %v3363, 7
        %v3365 = vadd.s32 %v3364, 9
        %3366 = vset.pattern.permute.xlu0 %v3365
        %3367 = vperm.xlu0 %3366, %v3356
        %v3368 = vpop.permute.xlu0 %3367
        %v3369 = vperm.slane %v2665, 6
        %v3370 = vlaneseq
        %v3371 = vshrl.u32 %v3370, 7
        %v3372 = vadd.s32 %v3371, 1
        %3373 = vset.pattern.permute.xlu0 %v3372
        %3374 = vperm.xlu0 %3373, %v3369
        %v3375 = vpop.permute.xlu0 %3374
        %v3376 = vlaneseq
        %v3377 = vshrl.u32 %v3376, 7
        %v3378 = vadd.s32 %v3377, 9
        %3379 = vset.pattern.permute.xlu0 %v3378
        %3380 = vperm.xlu0 %3379, %v3369
        %v3381 = vpop.permute.xlu0 %3380
        %v3382 = vperm.slane %v2665, 7
        %v3383 = vlaneseq
        %v3384 = vshrl.u32 %v3383, 7
        %v3385 = vadd.s32 %v3384, 1
        %3386 = vset.pattern.permute.xlu0 %v3385
        %3387 = vperm.xlu0 %3386, %v3382
        %v3388 = vpop.permute.xlu0 %3387
        %v3389 = vlaneseq
        %v3390 = vshrl.u32 %v3389, 7
        %v3391 = vadd.s32 %v3390, 9
        %3392 = vset.pattern.permute.xlu0 %v3391
        %3393 = vperm.xlu0 %3392, %v3382
        %v3394 = vpop.permute.xlu0 %3393
        %v3395 = vperm.slane %v2666, 0
        %v3396 = vlaneseq
        %v3397 = vshrl.u32 %v3396, 7
        %v3398 = vadd.s32 %v3397, 1
        %3399 = vset.pattern.permute.xlu0 %v3398
        %3400 = vperm.xlu0 %3399, %v3395
        %v3401 = vpop.permute.xlu0 %3400
        %v3402 = vlaneseq
        %v3403 = vshrl.u32 %v3402, 7
        %v3404 = vadd.s32 %v3403, 9
        %3405 = vset.pattern.permute.xlu0 %v3404
        %3406 = vperm.xlu0 %3405, %v3395
        %v3407 = vpop.permute.xlu0 %3406
        %v3408 = vperm.slane %v2666, 1
        %v3409 = vlaneseq
        %v3410 = vshrl.u32 %v3409, 7
        %v3411 = vadd.s32 %v3410, 1
        %3412 = vset.pattern.permute.xlu0 %v3411
        %3413 = vperm.xlu0 %3412, %v3408
        %v3414 = vpop.permute.xlu0 %3413
        %v3415 = vlaneseq
        %v3416 = vshrl.u32 %v3415, 7
        %v3417 = vadd.s32 %v3416, 9
        %3418 = vset.pattern.permute.xlu0 %v3417
        %3419 = vperm.xlu0 %3418, %v3408
        %v3420 = vpop.permute.xlu0 %3419
        %v3421 = vperm.slane %v2666, 2
        %v3422 = vlaneseq
        %v3423 = vshrl.u32 %v3422, 7
        %v3424 = vadd.s32 %v3423, 1
        %3425 = vset.pattern.permute.xlu0 %v3424
        %3426 = vperm.xlu0 %3425, %v3421
        %v3427 = vpop.permute.xlu0 %3426
        %v3428 = vlaneseq
        %v3429 = vshrl.u32 %v3428, 7
        %v3430 = vadd.s32 %v3429, 9
        %3431 = vset.pattern.permute.xlu0 %v3430
        %3432 = vperm.xlu0 %3431, %v3421
        %v3433 = vpop.permute.xlu0 %3432
        %v3434 = vperm.slane %v2666, 3
        %v3435 = vlaneseq
        %v3436 = vshrl.u32 %v3435, 7
        %v3437 = vadd.s32 %v3436, 1
        %3438 = vset.pattern.permute.xlu0 %v3437
        %3439 = vperm.xlu0 %3438, %v3434
        %v3440 = vpop.permute.xlu0 %3439
        %v3441 = vlaneseq
        %v3442 = vshrl.u32 %v3441, 7
        %v3443 = vadd.s32 %v3442, 9
        %3444 = vset.pattern.permute.xlu0 %v3443
        %3445 = vperm.xlu0 %3444, %v3434
        %v3446 = vpop.permute.xlu0 %3445
        %v3447 = vperm.slane %v2666, 4
        %v3448 = vlaneseq
        %v3449 = vshrl.u32 %v3448, 7
        %v3450 = vadd.s32 %v3449, 1
        %3451 = vset.pattern.permute.xlu0 %v3450
        %3452 = vperm.xlu0 %3451, %v3447
        %v3453 = vpop.permute.xlu0 %3452
        %v3454 = vlaneseq
        %v3455 = vshrl.u32 %v3454, 7
        %v3456 = vadd.s32 %v3455, 9
        %3457 = vset.pattern.permute.xlu0 %v3456
        %3458 = vperm.xlu0 %3457, %v3447
        %v3459 = vpop.permute.xlu0 %3458
        %v3460 = vperm.slane %v2666, 5
        %v3461 = vlaneseq
        %v3462 = vshrl.u32 %v3461, 7
        %v3463 = vadd.s32 %v3462, 1
        %3464 = vset.pattern.permute.xlu0 %v3463
        %3465 = vperm.xlu0 %3464, %v3460
        %v3466 = vpop.permute.xlu0 %3465
        %v3467 = vlaneseq
        %v3468 = vshrl.u32 %v3467, 7
        %v3469 = vadd.s32 %v3468, 9
        %3470 = vset.pattern.permute.xlu0 %v3469
        %3471 = vperm.xlu0 %3470, %v3460
        %v3472 = vpop.permute.xlu0 %3471
        %v3473 = vperm.slane %v2666, 6
        %v3474 = vlaneseq
        %v3475 = vshrl.u32 %v3474, 7
        %v3476 = vadd.s32 %v3475, 1
        %3477 = vset.pattern.permute.xlu0 %v3476
        %3478 = vperm.xlu0 %3477, %v3473
        %v3479 = vpop.permute.xlu0 %3478
        %v3480 = vlaneseq
        %v3481 = vshrl.u32 %v3480, 7
        %v3482 = vadd.s32 %v3481, 9
        %3483 = vset.pattern.permute.xlu0 %v3482
        %3484 = vperm.xlu0 %3483, %v3473
        %v3485 = vpop.permute.xlu0 %3484
        %v3486 = vperm.slane %v2666, 7
        %v3487 = vlaneseq
        %v3488 = vshrl.u32 %v3487, 7
        %v3489 = vadd.s32 %v3488, 1
        %3490 = vset.pattern.permute.xlu0 %v3489
        %3491 = vperm.xlu0 %3490, %v3486
        %v3492 = vpop.permute.xlu0 %3491
        %v3493 = vlaneseq
        %v3494 = vshrl.u32 %v3493, 7
        %v3495 = vadd.s32 %v3494, 9
        %3496 = vset.pattern.permute.xlu0 %v3495
        %3497 = vperm.xlu0 %3496, %v3486
        %v3498 = vpop.permute.xlu0 %3497
        %v3499 = vsel %vm387, %v2673, %v3089
        %v3500 = vsel %vm387, %v2679, %v3095
        %v3501 = vsel %vm387, %v2686, %v3102
        %v3502 = vsel %vm387, %v2692, %v3108
        %v3503 = vsel %vm387, %v2699, %v3115
        %v3504 = vsel %vm387, %v2705, %v3121
        %v3505 = vsel %vm387, %v2712, %v3128
        %v3506 = vsel %vm387, %v2718, %v3134
        %v3507 = vsel %vm387, %v2725, %v3141
        %v3508 = vsel %vm387, %v2731, %v3147
        %v3509 = vsel %vm387, %v2738, %v3154
        %v3510 = vsel %vm387, %v2744, %v3160
        %v3511 = vsel %vm387, %v2751, %v3167
        %v3512 = vsel %vm387, %v2757, %v3173
        %v3513 = vsel %vm387, %v2764, %v3180
        %v3514 = vsel %vm387, %v2770, %v3186
        %v3515 = vsel %vm387, %v2777, %v3193
        %v3516 = vsel %vm387, %v2783, %v3199
        %v3517 = vsel %vm387, %v2790, %v3206
        %v3518 = vsel %vm387, %v2796, %v3212
        %v3519 = vsel %vm387, %v2803, %v3219
        %v3520 = vsel %vm387, %v2809, %v3225
        %v3521 = vsel %vm387, %v2816, %v3232
        %v3522 = vsel %vm387, %v2822, %v3238
        %v3523 = vsel %vm387, %v2829, %v3245
        %v3524 = vsel %vm387, %v2835, %v3251
        %v3525 = vsel %vm387, %v2842, %v3258
        %v3526 = vsel %vm387, %v2848, %v3264
        %v3527 = vsel %vm387, %v2855, %v3271
        %v3528 = vsel %vm387, %v2861, %v3277
        %v3529 = vsel %vm387, %v2868, %v3284
        %v3530 = vsel %vm387, %v2874, %v3290
        %v3531 = vsel %vm387, %v2881, %v3297
        %v3532 = vsel %vm387, %v2887, %v3303
        %v3533 = vsel %vm387, %v2894, %v3310
        %v3534 = vsel %vm387, %v2900, %v3316
        %v3535 = vsel %vm387, %v2907, %v3323
        %v3536 = vsel %vm387, %v2913, %v3329
        %v3537 = vsel %vm387, %v2920, %v3336
        %v3538 = vsel %vm387, %v2926, %v3342
        %v3539 = vsel %vm387, %v2933, %v3349
        %v3540 = vsel %vm387, %v2939, %v3355
        %v3541 = vsel %vm387, %v2946, %v3362
        %v3542 = vsel %vm387, %v2952, %v3368
        %v3543 = vsel %vm387, %v2959, %v3375
        %v3544 = vsel %vm387, %v2965, %v3381
        %v3545 = vsel %vm387, %v2972, %v3388
        %v3546 = vsel %vm387, %v2978, %v3394
        %v3547 = vsel %vm387, %v2985, %v3401
        %v3548 = vsel %vm387, %v2991, %v3407
        %v3549 = vsel %vm387, %v2998, %v3414
        %v3550 = vsel %vm387, %v3004, %v3420
        %v3551 = vsel %vm387, %v3011, %v3427
        %v3552 = vsel %vm387, %v3017, %v3433
        %v3553 = vsel %vm387, %v3024, %v3440
        %v3554 = vsel %vm387, %v3030, %v3446
        %v3555 = vsel %vm387, %v3037, %v3453
        %v3556 = vsel %vm387, %v3043, %v3459
        %v3557 = vsel %vm387, %v3050, %v3466
        %v3558 = vsel %vm387, %v3056, %v3472
        %v3559 = vsel %vm387, %v3063, %v3479
        %v3560 = vsel %vm387, %v3069, %v3485
        %v3561 = vsel %vm387, %v3076, %v3492
        %v3562 = vsel %vm387, %v3082, %v3498
        %v3563 = vrot.slane %v3503, 4
        %v3564 = vsel %vm1342, %v3563, %v3499
        %v3565 = vrot.slane %v3499, 4
        %v3566 = vsel %vm1342, %v3503, %v3565
        %v3568 = vunpack.c.l.s4 1983009808
        %v3569 = vunpack.c.0.s8 %v3568
        %v3570 = vperm.slane %v3564, %v3569
        %v3572 = vunpack.c.l.s4 1983009808
        %v3573 = vunpack.c.0.s8 %v3572
        %v3574 = vperm.slane %v3566, %v3573
        %v3575 = vrot.slane %v3505, 4
        %v3576 = vsel %vm1342, %v3575, %v3501
        %v3577 = vrot.slane %v3501, 4
        %v3578 = vsel %vm1342, %v3505, %v3577
        %v3580 = vunpack.c.l.s4 1983009808
        %v3581 = vunpack.c.0.s8 %v3580
        %v3582 = vperm.slane %v3576, %v3581
        %v3584 = vunpack.c.l.s4 1983009808
        %v3585 = vunpack.c.0.s8 %v3584
        %v3586 = vperm.slane %v3578, %v3585
        %v3587 = vrot.slane %v3511, 4
        %v3588 = vsel %vm1342, %v3587, %v3507
        %v3589 = vrot.slane %v3507, 4
        %v3590 = vsel %vm1342, %v3511, %v3589
        %v3592 = vunpack.c.l.s4 1983009808
        %v3593 = vunpack.c.0.s8 %v3592
        %v3594 = vperm.slane %v3588, %v3593
        %v3596 = vunpack.c.l.s4 1983009808
        %v3597 = vunpack.c.0.s8 %v3596
        %v3598 = vperm.slane %v3590, %v3597
        %v3599 = vrot.slane %v3513, 4
        %v3600 = vsel %vm1342, %v3599, %v3509
        %v3601 = vrot.slane %v3509, 4
        %v3602 = vsel %vm1342, %v3513, %v3601
        %v3604 = vunpack.c.l.s4 1983009808
        %v3605 = vunpack.c.0.s8 %v3604
        %v3606 = vperm.slane %v3600, %v3605
        %v3608 = vunpack.c.l.s4 1983009808
        %v3609 = vunpack.c.0.s8 %v3608
        %v3610 = vperm.slane %v3602, %v3609
        %v3611 = vrot.slane %v3582, 4
        %v3612 = vsel %vm1342, %v3611, %v3570
        %v3613 = vrot.slane %v3570, 4
        %v3614 = vsel %vm1342, %v3582, %v3613
        %v3616 = vunpack.c.l.s4 1934713408
        %v3617 = vunpack.c.0.s8 %v3616
        %v3618 = vperm.slane %v3612, %v3617
        %v3620 = vunpack.c.l.s4 1934713408
        %v3621 = vunpack.c.0.s8 %v3620
        %v3622 = vperm.slane %v3614, %v3621
        %v3623 = vrot.slane %v3586, 4
        %v3624 = vsel %vm1342, %v3623, %v3574
        %v3625 = vrot.slane %v3574, 4
        %v3626 = vsel %vm1342, %v3586, %v3625
        %v3628 = vunpack.c.l.s4 1934713408
        %v3629 = vunpack.c.0.s8 %v3628
        %v3630 = vperm.slane %v3624, %v3629
        %v3632 = vunpack.c.l.s4 1934713408
        %v3633 = vunpack.c.0.s8 %v3632
        %v3634 = vperm.slane %v3626, %v3633
        %v3635 = vrot.slane %v3606, 4
        %v3636 = vsel %vm1342, %v3635, %v3594
        %v3637 = vrot.slane %v3594, 4
        %v3638 = vsel %vm1342, %v3606, %v3637
        %v3640 = vunpack.c.l.s4 1934713408
        %v3641 = vunpack.c.0.s8 %v3640
        %v3642 = vperm.slane %v3636, %v3641
        %v3644 = vunpack.c.l.s4 1934713408
        %v3645 = vunpack.c.0.s8 %v3644
        %v3646 = vperm.slane %v3638, %v3645
        %v3647 = vrot.slane %v3610, 4
        %v3648 = vsel %vm1342, %v3647, %v3598
        %v3649 = vrot.slane %v3598, 4
        %v3650 = vsel %vm1342, %v3610, %v3649
        %v3652 = vunpack.c.l.s4 1934713408
        %v3653 = vunpack.c.0.s8 %v3652
        %v3654 = vperm.slane %v3648, %v3653
        %v3656 = vunpack.c.l.s4 1934713408
        %v3657 = vunpack.c.0.s8 %v3656
        %v3658 = vperm.slane %v3650, %v3657
        %v3659 = vrot.slane %v3642, 4
        %v3660 = vsel %vm1342, %v3659, %v3618
        %v3661 = vrot.slane %v3618, 4
        %v3662 = vsel %vm1342, %v3642, %v3661
        %v3663 = vrot.slane %v3646, 4
        %v3664 = vsel %vm1342, %v3663, %v3622
        %v3665 = vrot.slane %v3622, 4
        %v3666 = vsel %vm1342, %v3646, %v3665
        %v3667 = vrot.slane %v3654, 4
        %v3668 = vsel %vm1342, %v3667, %v3630
        %v3669 = vrot.slane %v3630, 4
        %v3670 = vsel %vm1342, %v3654, %v3669
        %v3671 = vrot.slane %v3658, 4
        %v3672 = vsel %vm1342, %v3671, %v3634
        %v3673 = vrot.slane %v3634, 4
        %v3674 = vsel %vm1342, %v3658, %v3673
        %v3675 = vrot.slane %v3519, 4
        %v3676 = vsel %vm1342, %v3675, %v3515
        %v3677 = vrot.slane %v3515, 4
        %v3678 = vsel %vm1342, %v3519, %v3677
        %v3680 = vunpack.c.l.s4 1983009808
        %v3681 = vunpack.c.0.s8 %v3680
        %v3682 = vperm.slane %v3676, %v3681
        %v3684 = vunpack.c.l.s4 1983009808
        %v3685 = vunpack.c.0.s8 %v3684
        %v3686 = vperm.slane %v3678, %v3685
        %v3687 = vrot.slane %v3521, 4
        %v3688 = vsel %vm1342, %v3687, %v3517
        %v3689 = vrot.slane %v3517, 4
        %v3690 = vsel %vm1342, %v3521, %v3689
        %v3692 = vunpack.c.l.s4 1983009808
        %v3693 = vunpack.c.0.s8 %v3692
        %v3694 = vperm.slane %v3688, %v3693
        %v3696 = vunpack.c.l.s4 1983009808
        %v3697 = vunpack.c.0.s8 %v3696
        %v3698 = vperm.slane %v3690, %v3697
        %v3699 = vrot.slane %v3527, 4
        %v3700 = vsel %vm1342, %v3699, %v3523
        %v3701 = vrot.slane %v3523, 4
        %v3702 = vsel %vm1342, %v3527, %v3701
        %v3704 = vunpack.c.l.s4 1983009808
        %v3705 = vunpack.c.0.s8 %v3704
        %v3706 = vperm.slane %v3700, %v3705
        %v3708 = vunpack.c.l.s4 1983009808
        %v3709 = vunpack.c.0.s8 %v3708
        %v3710 = vperm.slane %v3702, %v3709
        %v3711 = vrot.slane %v3529, 4
        %v3712 = vsel %vm1342, %v3711, %v3525
        %v3713 = vrot.slane %v3525, 4
        %v3714 = vsel %vm1342, %v3529, %v3713
        %v3716 = vunpack.c.l.s4 1983009808
        %v3717 = vunpack.c.0.s8 %v3716
        %v3718 = vperm.slane %v3712, %v3717
        %v3720 = vunpack.c.l.s4 1983009808
        %v3721 = vunpack.c.0.s8 %v3720
        %v3722 = vperm.slane %v3714, %v3721
        %v3723 = vrot.slane %v3694, 4
        %v3724 = vsel %vm1342, %v3723, %v3682
        %v3725 = vrot.slane %v3682, 4
        %v3726 = vsel %vm1342, %v3694, %v3725
        %v3728 = vunpack.c.l.s4 1934713408
        %v3729 = vunpack.c.0.s8 %v3728
        %v3730 = vperm.slane %v3724, %v3729
        %v3732 = vunpack.c.l.s4 1934713408
        %v3733 = vunpack.c.0.s8 %v3732
        %v3734 = vperm.slane %v3726, %v3733
        %v3735 = vrot.slane %v3698, 4
        %v3736 = vsel %vm1342, %v3735, %v3686
        %v3737 = vrot.slane %v3686, 4
        %v3738 = vsel %vm1342, %v3698, %v3737
        %v3740 = vunpack.c.l.s4 1934713408
        %v3741 = vunpack.c.0.s8 %v3740
        %v3742 = vperm.slane %v3736, %v3741
        %v3744 = vunpack.c.l.s4 1934713408
        %v3745 = vunpack.c.0.s8 %v3744
        %v3746 = vperm.slane %v3738, %v3745
        %v3747 = vrot.slane %v3718, 4
        %v3748 = vsel %vm1342, %v3747, %v3706
        %v3749 = vrot.slane %v3706, 4
        %v3750 = vsel %vm1342, %v3718, %v3749
        %v3752 = vunpack.c.l.s4 1934713408
        %v3753 = vunpack.c.0.s8 %v3752
        %v3754 = vperm.slane %v3748, %v3753
        %v3756 = vunpack.c.l.s4 1934713408
        %v3757 = vunpack.c.0.s8 %v3756
        %v3758 = vperm.slane %v3750, %v3757
        %v3759 = vrot.slane %v3722, 4
        %v3760 = vsel %vm1342, %v3759, %v3710
        %v3761 = vrot.slane %v3710, 4
        %v3762 = vsel %vm1342, %v3722, %v3761
        %v3764 = vunpack.c.l.s4 1934713408
        %v3765 = vunpack.c.0.s8 %v3764
        %v3766 = vperm.slane %v3760, %v3765
        %v3768 = vunpack.c.l.s4 1934713408
        %v3769 = vunpack.c.0.s8 %v3768
        %v3770 = vperm.slane %v3762, %v3769
        %v3771 = vrot.slane %v3754, 4
        %v3772 = vsel %vm1342, %v3771, %v3730
        %v3773 = vrot.slane %v3730, 4
        %v3774 = vsel %vm1342, %v3754, %v3773
        %v3775 = vrot.slane %v3758, 4
        %v3776 = vsel %vm1342, %v3775, %v3734
        %v3777 = vrot.slane %v3734, 4
        %v3778 = vsel %vm1342, %v3758, %v3777
        %v3779 = vrot.slane %v3766, 4
        %v3780 = vsel %vm1342, %v3779, %v3742
        %v3781 = vrot.slane %v3742, 4
        %v3782 = vsel %vm1342, %v3766, %v3781
        %v3783 = vrot.slane %v3770, 4
        %v3784 = vsel %vm1342, %v3783, %v3746
        %v3785 = vrot.slane %v3746, 4
        %v3786 = vsel %vm1342, %v3770, %v3785
        %v3787 = vrot.slane %v3504, 4
        %v3788 = vsel %vm1342, %v3787, %v3500
        %v3789 = vrot.slane %v3500, 4
        %v3790 = vsel %vm1342, %v3504, %v3789
        %v3792 = vunpack.c.l.s4 1983009808
        %v3793 = vunpack.c.0.s8 %v3792
        %v3794 = vperm.slane %v3788, %v3793
        %v3796 = vunpack.c.l.s4 1983009808
        %v3797 = vunpack.c.0.s8 %v3796
        %v3798 = vperm.slane %v3790, %v3797
        %v3799 = vrot.slane %v3506, 4
        %v3800 = vsel %vm1342, %v3799, %v3502
        %v3801 = vrot.slane %v3502, 4
        %v3802 = vsel %vm1342, %v3506, %v3801
        %v3804 = vunpack.c.l.s4 1983009808
        %v3805 = vunpack.c.0.s8 %v3804
        %v3806 = vperm.slane %v3800, %v3805
        %v3808 = vunpack.c.l.s4 1983009808
        %v3809 = vunpack.c.0.s8 %v3808
        %v3810 = vperm.slane %v3802, %v3809
        %v3811 = vrot.slane %v3512, 4
        %v3812 = vsel %vm1342, %v3811, %v3508
        %v3813 = vrot.slane %v3508, 4
        %v3814 = vsel %vm1342, %v3512, %v3813
        %v3816 = vunpack.c.l.s4 1983009808
        %v3817 = vunpack.c.0.s8 %v3816
        %v3818 = vperm.slane %v3812, %v3817
        %v3820 = vunpack.c.l.s4 1983009808
        %v3821 = vunpack.c.0.s8 %v3820
        %v3822 = vperm.slane %v3814, %v3821
        %v3823 = vrot.slane %v3514, 4
        %v3824 = vsel %vm1342, %v3823, %v3510
        %v3825 = vrot.slane %v3510, 4
        %v3826 = vsel %vm1342, %v3514, %v3825
        %v3828 = vunpack.c.l.s4 1983009808
        %v3829 = vunpack.c.0.s8 %v3828
        %v3830 = vperm.slane %v3824, %v3829
        %v3832 = vunpack.c.l.s4 1983009808
        %v3833 = vunpack.c.0.s8 %v3832
        %v3834 = vperm.slane %v3826, %v3833
        %v3835 = vrot.slane %v3806, 4
        %v3836 = vsel %vm1342, %v3835, %v3794
        %v3837 = vrot.slane %v3794, 4
        %v3838 = vsel %vm1342, %v3806, %v3837
        %v3840 = vunpack.c.l.s4 1934713408
        %v3841 = vunpack.c.0.s8 %v3840
        %v3842 = vperm.slane %v3836, %v3841
        %v3844 = vunpack.c.l.s4 1934713408
        %v3845 = vunpack.c.0.s8 %v3844
        %v3846 = vperm.slane %v3838, %v3845
        %v3847 = vrot.slane %v3810, 4
        %v3848 = vsel %vm1342, %v3847, %v3798
        %v3849 = vrot.slane %v3798, 4
        %v3850 = vsel %vm1342, %v3810, %v3849
        %v3852 = vunpack.c.l.s4 1934713408
        %v3853 = vunpack.c.0.s8 %v3852
        %v3854 = vperm.slane %v3848, %v3853
        %v3856 = vunpack.c.l.s4 1934713408
        %v3857 = vunpack.c.0.s8 %v3856
        %v3858 = vperm.slane %v3850, %v3857
        %v3859 = vrot.slane %v3830, 4
        %v3860 = vsel %vm1342, %v3859, %v3818
        %v3861 = vrot.slane %v3818, 4
        %v3862 = vsel %vm1342, %v3830, %v3861
        %v3864 = vunpack.c.l.s4 1934713408
        %v3865 = vunpack.c.0.s8 %v3864
        %v3866 = vperm.slane %v3860, %v3865
        %v3868 = vunpack.c.l.s4 1934713408
        %v3869 = vunpack.c.0.s8 %v3868
        %v3870 = vperm.slane %v3862, %v3869
        %v3871 = vrot.slane %v3834, 4
        %v3872 = vsel %vm1342, %v3871, %v3822
        %v3873 = vrot.slane %v3822, 4
        %v3874 = vsel %vm1342, %v3834, %v3873
        %v3876 = vunpack.c.l.s4 1934713408
        %v3877 = vunpack.c.0.s8 %v3876
        %v3878 = vperm.slane %v3872, %v3877
        %v3880 = vunpack.c.l.s4 1934713408
        %v3881 = vunpack.c.0.s8 %v3880
        %v3882 = vperm.slane %v3874, %v3881
        %v3883 = vrot.slane %v3866, 4
        %v3884 = vsel %vm1342, %v3883, %v3842
        %v3885 = vrot.slane %v3842, 4
        %v3886 = vsel %vm1342, %v3866, %v3885
        %v3887 = vrot.slane %v3870, 4
        %v3888 = vsel %vm1342, %v3887, %v3846
        %v3889 = vrot.slane %v3846, 4
        %v3890 = vsel %vm1342, %v3870, %v3889
        %v3891 = vrot.slane %v3878, 4
        %v3892 = vsel %vm1342, %v3891, %v3854
        %v3893 = vrot.slane %v3854, 4
        %v3894 = vsel %vm1342, %v3878, %v3893
        %v3895 = vrot.slane %v3882, 4
        %v3896 = vsel %vm1342, %v3895, %v3858
        %v3897 = vrot.slane %v3858, 4
        %v3898 = vsel %vm1342, %v3882, %v3897
        %v3899 = vrot.slane %v3520, 4
        %v3900 = vsel %vm1342, %v3899, %v3516
        %v3901 = vrot.slane %v3516, 4
        %v3902 = vsel %vm1342, %v3520, %v3901
        %v3904 = vunpack.c.l.s4 1983009808
        %v3905 = vunpack.c.0.s8 %v3904
        %v3906 = vperm.slane %v3900, %v3905
        %v3908 = vunpack.c.l.s4 1983009808
        %v3909 = vunpack.c.0.s8 %v3908
        %v3910 = vperm.slane %v3902, %v3909
        %v3911 = vrot.slane %v3522, 4
        %v3912 = vsel %vm1342, %v3911, %v3518
        %v3913 = vrot.slane %v3518, 4
        %v3914 = vsel %vm1342, %v3522, %v3913
        %v3916 = vunpack.c.l.s4 1983009808
        %v3917 = vunpack.c.0.s8 %v3916
        %v3918 = vperm.slane %v3912, %v3917
        %v3920 = vunpack.c.l.s4 1983009808
        %v3921 = vunpack.c.0.s8 %v3920
        %v3922 = vperm.slane %v3914, %v3921
        %v3923 = vrot.slane %v3528, 4
        %v3924 = vsel %vm1342, %v3923, %v3524
        %v3925 = vrot.slane %v3524, 4
        %v3926 = vsel %vm1342, %v3528, %v3925
        %v3928 = vunpack.c.l.s4 1983009808
        %v3929 = vunpack.c.0.s8 %v3928
        %v3930 = vperm.slane %v3924, %v3929
        %v3932 = vunpack.c.l.s4 1983009808
        %v3933 = vunpack.c.0.s8 %v3932
        %v3934 = vperm.slane %v3926, %v3933
        %v3935 = vrot.slane %v3530, 4
        %v3936 = vsel %vm1342, %v3935, %v3526
        %v3937 = vrot.slane %v3526, 4
        %v3938 = vsel %vm1342, %v3530, %v3937
        %v3940 = vunpack.c.l.s4 1983009808
        %v3941 = vunpack.c.0.s8 %v3940
        %v3942 = vperm.slane %v3936, %v3941
        %v3944 = vunpack.c.l.s4 1983009808
        %v3945 = vunpack.c.0.s8 %v3944
        %v3946 = vperm.slane %v3938, %v3945
        %v3947 = vrot.slane %v3918, 4
        %v3948 = vsel %vm1342, %v3947, %v3906
        %v3949 = vrot.slane %v3906, 4
        %v3950 = vsel %vm1342, %v3918, %v3949
        %v3952 = vunpack.c.l.s4 1934713408
        %v3953 = vunpack.c.0.s8 %v3952
        %v3954 = vperm.slane %v3948, %v3953
        %v3956 = vunpack.c.l.s4 1934713408
        %v3957 = vunpack.c.0.s8 %v3956
        %v3958 = vperm.slane %v3950, %v3957
        %v3959 = vrot.slane %v3922, 4
        %v3960 = vsel %vm1342, %v3959, %v3910
        %v3961 = vrot.slane %v3910, 4
        %v3962 = vsel %vm1342, %v3922, %v3961
        %v3964 = vunpack.c.l.s4 1934713408
        %v3965 = vunpack.c.0.s8 %v3964
        %v3966 = vperm.slane %v3960, %v3965
        %v3968 = vunpack.c.l.s4 1934713408
        %v3969 = vunpack.c.0.s8 %v3968
        %v3970 = vperm.slane %v3962, %v3969
        %v3971 = vrot.slane %v3942, 4
        %v3972 = vsel %vm1342, %v3971, %v3930
        %v3973 = vrot.slane %v3930, 4
        %v3974 = vsel %vm1342, %v3942, %v3973
        %v3976 = vunpack.c.l.s4 1934713408
        %v3977 = vunpack.c.0.s8 %v3976
        %v3978 = vperm.slane %v3972, %v3977
        %v3980 = vunpack.c.l.s4 1934713408
        %v3981 = vunpack.c.0.s8 %v3980
        %v3982 = vperm.slane %v3974, %v3981
        %v3983 = vrot.slane %v3946, 4
        %v3984 = vsel %vm1342, %v3983, %v3934
        %v3985 = vrot.slane %v3934, 4
        %v3986 = vsel %vm1342, %v3946, %v3985
        %v3988 = vunpack.c.l.s4 1934713408
        %v3989 = vunpack.c.0.s8 %v3988
        %v3990 = vperm.slane %v3984, %v3989
        %v3992 = vunpack.c.l.s4 1934713408
        %v3993 = vunpack.c.0.s8 %v3992
        %v3994 = vperm.slane %v3986, %v3993
        %v3995 = vrot.slane %v3978, 4
        %v3996 = vsel %vm1342, %v3995, %v3954
        %v3997 = vrot.slane %v3954, 4
        %v3998 = vsel %vm1342, %v3978, %v3997
        %v3999 = vrot.slane %v3982, 4
        %v4000 = vsel %vm1342, %v3999, %v3958
        %v4001 = vrot.slane %v3958, 4
        %v4002 = vsel %vm1342, %v3982, %v4001
        %v4003 = vrot.slane %v3990, 4
        %v4004 = vsel %vm1342, %v4003, %v3966
        %v4005 = vrot.slane %v3966, 4
        %v4006 = vsel %vm1342, %v3990, %v4005
        %v4007 = vrot.slane %v3994, 4
        %v4008 = vsel %vm1342, %v4007, %v3970
        %v4009 = vrot.slane %v3970, 4
        %v4010 = vsel %vm1342, %v3994, %v4009
        %v4011 = vrot.slane %v3535, 4
        %v4012 = vsel %vm1342, %v4011, %v3531
        %v4013 = vrot.slane %v3531, 4
        %v4014 = vsel %vm1342, %v3535, %v4013
        %v4016 = vunpack.c.l.s4 1983009808
        %v4017 = vunpack.c.0.s8 %v4016
        %v4018 = vperm.slane %v4012, %v4017
        %v4020 = vunpack.c.l.s4 1983009808
        %v4021 = vunpack.c.0.s8 %v4020
        %v4022 = vperm.slane %v4014, %v4021
        %v4023 = vrot.slane %v3537, 4
        %v4024 = vsel %vm1342, %v4023, %v3533
        %v4025 = vrot.slane %v3533, 4
        %v4026 = vsel %vm1342, %v3537, %v4025
        %v4028 = vunpack.c.l.s4 1983009808
        %v4029 = vunpack.c.0.s8 %v4028
        %v4030 = vperm.slane %v4024, %v4029
        %v4032 = vunpack.c.l.s4 1983009808
        %v4033 = vunpack.c.0.s8 %v4032
        %v4034 = vperm.slane %v4026, %v4033
        %v4035 = vrot.slane %v3543, 4
        %v4036 = vsel %vm1342, %v4035, %v3539
        %v4037 = vrot.slane %v3539, 4
        %v4038 = vsel %vm1342, %v3543, %v4037
        %v4040 = vunpack.c.l.s4 1983009808
        %v4041 = vunpack.c.0.s8 %v4040
        %v4042 = vperm.slane %v4036, %v4041
        %v4044 = vunpack.c.l.s4 1983009808
        %v4045 = vunpack.c.0.s8 %v4044
        %v4046 = vperm.slane %v4038, %v4045
        %v4047 = vrot.slane %v3545, 4
        %v4048 = vsel %vm1342, %v4047, %v3541
        %v4049 = vrot.slane %v3541, 4
        %v4050 = vsel %vm1342, %v3545, %v4049
        %v4052 = vunpack.c.l.s4 1983009808
        %v4053 = vunpack.c.0.s8 %v4052
        %v4054 = vperm.slane %v4048, %v4053
        %v4056 = vunpack.c.l.s4 1983009808
        %v4057 = vunpack.c.0.s8 %v4056
        %v4058 = vperm.slane %v4050, %v4057
        %v4059 = vrot.slane %v4030, 4
        %v4060 = vsel %vm1342, %v4059, %v4018
        %v4061 = vrot.slane %v4018, 4
        %v4062 = vsel %vm1342, %v4030, %v4061
        %v4064 = vunpack.c.l.s4 1934713408
        %v4065 = vunpack.c.0.s8 %v4064
        %v4066 = vperm.slane %v4060, %v4065
        %v4068 = vunpack.c.l.s4 1934713408
        %v4069 = vunpack.c.0.s8 %v4068
        %v4070 = vperm.slane %v4062, %v4069
        %v4071 = vrot.slane %v4034, 4
        %v4072 = vsel %vm1342, %v4071, %v4022
        %v4073 = vrot.slane %v4022, 4
        %v4074 = vsel %vm1342, %v4034, %v4073
        %v4076 = vunpack.c.l.s4 1934713408
        %v4077 = vunpack.c.0.s8 %v4076
        %v4078 = vperm.slane %v4072, %v4077
        %v4080 = vunpack.c.l.s4 1934713408
        %v4081 = vunpack.c.0.s8 %v4080
        %v4082 = vperm.slane %v4074, %v4081
        %v4083 = vrot.slane %v4054, 4
        %v4084 = vsel %vm1342, %v4083, %v4042
        %v4085 = vrot.slane %v4042, 4
        %v4086 = vsel %vm1342, %v4054, %v4085
        %v4088 = vunpack.c.l.s4 1934713408
        %v4089 = vunpack.c.0.s8 %v4088
        %v4090 = vperm.slane %v4084, %v4089
        %v4092 = vunpack.c.l.s4 1934713408
        %v4093 = vunpack.c.0.s8 %v4092
        %v4094 = vperm.slane %v4086, %v4093
        %v4095 = vrot.slane %v4058, 4
        %v4096 = vsel %vm1342, %v4095, %v4046
        %v4097 = vrot.slane %v4046, 4
        %v4098 = vsel %vm1342, %v4058, %v4097
        %v4100 = vunpack.c.l.s4 1934713408
        %v4101 = vunpack.c.0.s8 %v4100
        %v4102 = vperm.slane %v4096, %v4101
        %v4104 = vunpack.c.l.s4 1934713408
        %v4105 = vunpack.c.0.s8 %v4104
        %v4106 = vperm.slane %v4098, %v4105
        %v4107 = vrot.slane %v4090, 4
        %v4108 = vsel %vm1342, %v4107, %v4066
        %v4109 = vrot.slane %v4066, 4
        %v4110 = vsel %vm1342, %v4090, %v4109
        %v4111 = vrot.slane %v4094, 4
        %v4112 = vsel %vm1342, %v4111, %v4070
        %v4113 = vrot.slane %v4070, 4
        %v4114 = vsel %vm1342, %v4094, %v4113
        %v4115 = vrot.slane %v4102, 4
        %v4116 = vsel %vm1342, %v4115, %v4078
        %v4117 = vrot.slane %v4078, 4
        %v4118 = vsel %vm1342, %v4102, %v4117
        %v4119 = vrot.slane %v4106, 4
        %v4120 = vsel %vm1342, %v4119, %v4082
        %v4121 = vrot.slane %v4082, 4
        %v4122 = vsel %vm1342, %v4106, %v4121
        %v4123 = vrot.slane %v3551, 4
        %v4124 = vsel %vm1342, %v4123, %v3547
        %v4125 = vrot.slane %v3547, 4
        %v4126 = vsel %vm1342, %v3551, %v4125
        %v4128 = vunpack.c.l.s4 1983009808
        %v4129 = vunpack.c.0.s8 %v4128
        %v4130 = vperm.slane %v4124, %v4129
        %v4132 = vunpack.c.l.s4 1983009808
        %v4133 = vunpack.c.0.s8 %v4132
        %v4134 = vperm.slane %v4126, %v4133
        %v4135 = vrot.slane %v3553, 4
        %v4136 = vsel %vm1342, %v4135, %v3549
        %v4137 = vrot.slane %v3549, 4
        %v4138 = vsel %vm1342, %v3553, %v4137
        %v4140 = vunpack.c.l.s4 1983009808
        %v4141 = vunpack.c.0.s8 %v4140
        %v4142 = vperm.slane %v4136, %v4141
        %v4144 = vunpack.c.l.s4 1983009808
        %v4145 = vunpack.c.0.s8 %v4144
        %v4146 = vperm.slane %v4138, %v4145
        %v4147 = vrot.slane %v3559, 4
        %v4148 = vsel %vm1342, %v4147, %v3555
        %v4149 = vrot.slane %v3555, 4
        %v4150 = vsel %vm1342, %v3559, %v4149
        %v4152 = vunpack.c.l.s4 1983009808
        %v4153 = vunpack.c.0.s8 %v4152
        %v4154 = vperm.slane %v4148, %v4153
        %v4156 = vunpack.c.l.s4 1983009808
        %v4157 = vunpack.c.0.s8 %v4156
        %v4158 = vperm.slane %v4150, %v4157
        %v4159 = vrot.slane %v3561, 4
        %v4160 = vsel %vm1342, %v4159, %v3557
        %v4161 = vrot.slane %v3557, 4
        %v4162 = vsel %vm1342, %v3561, %v4161
        %v4164 = vunpack.c.l.s4 1983009808
        %v4165 = vunpack.c.0.s8 %v4164
        %v4166 = vperm.slane %v4160, %v4165
        %v4168 = vunpack.c.l.s4 1983009808
        %v4169 = vunpack.c.0.s8 %v4168
        %v4170 = vperm.slane %v4162, %v4169
        %v4171 = vrot.slane %v4142, 4
        %v4172 = vsel %vm1342, %v4171, %v4130
        %v4173 = vrot.slane %v4130, 4
        %v4174 = vsel %vm1342, %v4142, %v4173
        %v4176 = vunpack.c.l.s4 1934713408
        %v4177 = vunpack.c.0.s8 %v4176
        %v4178 = vperm.slane %v4172, %v4177
        %v4180 = vunpack.c.l.s4 1934713408
        %v4181 = vunpack.c.0.s8 %v4180
        %v4182 = vperm.slane %v4174, %v4181
        %v4183 = vrot.slane %v4146, 4
        %v4184 = vsel %vm1342, %v4183, %v4134
        %v4185 = vrot.slane %v4134, 4
        %v4186 = vsel %vm1342, %v4146, %v4185
        %v4188 = vunpack.c.l.s4 1934713408
        %v4189 = vunpack.c.0.s8 %v4188
        %v4190 = vperm.slane %v4184, %v4189
        %v4192 = vunpack.c.l.s4 1934713408
        %v4193 = vunpack.c.0.s8 %v4192
        %v4194 = vperm.slane %v4186, %v4193
        %v4195 = vrot.slane %v4166, 4
        %v4196 = vsel %vm1342, %v4195, %v4154
        %v4197 = vrot.slane %v4154, 4
        %v4198 = vsel %vm1342, %v4166, %v4197
        %v4200 = vunpack.c.l.s4 1934713408
        %v4201 = vunpack.c.0.s8 %v4200
        %v4202 = vperm.slane %v4196, %v4201
        %v4204 = vunpack.c.l.s4 1934713408
        %v4205 = vunpack.c.0.s8 %v4204
        %v4206 = vperm.slane %v4198, %v4205
        %v4207 = vrot.slane %v4170, 4
        %v4208 = vsel %vm1342, %v4207, %v4158
        %v4209 = vrot.slane %v4158, 4
        %v4210 = vsel %vm1342, %v4170, %v4209
        %v4212 = vunpack.c.l.s4 1934713408
        %v4213 = vunpack.c.0.s8 %v4212
        %v4214 = vperm.slane %v4208, %v4213
        %v4216 = vunpack.c.l.s4 1934713408
        %v4217 = vunpack.c.0.s8 %v4216
        %v4218 = vperm.slane %v4210, %v4217
        %v4219 = vrot.slane %v4202, 4
        %v4220 = vsel %vm1342, %v4219, %v4178
        %v4221 = vrot.slane %v4178, 4
        %v4222 = vsel %vm1342, %v4202, %v4221
        %v4223 = vrot.slane %v4206, 4
        %v4224 = vsel %vm1342, %v4223, %v4182
        %v4225 = vrot.slane %v4182, 4
        %v4226 = vsel %vm1342, %v4206, %v4225
        %v4227 = vrot.slane %v4214, 4
        %v4228 = vsel %vm1342, %v4227, %v4190
        %v4229 = vrot.slane %v4190, 4
        %v4230 = vsel %vm1342, %v4214, %v4229
        %v4231 = vrot.slane %v4218, 4
        %v4232 = vsel %vm1342, %v4231, %v4194
        %v4233 = vrot.slane %v4194, 4
        %v4234 = vsel %vm1342, %v4218, %v4233
        %v4235 = vrot.slane %v3536, 4
        %v4236 = vsel %vm1342, %v4235, %v3532
        %v4237 = vrot.slane %v3532, 4
        %v4238 = vsel %vm1342, %v3536, %v4237
        %v4240 = vunpack.c.l.s4 1983009808
        %v4241 = vunpack.c.0.s8 %v4240
        %v4242 = vperm.slane %v4236, %v4241
        %v4244 = vunpack.c.l.s4 1983009808
        %v4245 = vunpack.c.0.s8 %v4244
        %v4246 = vperm.slane %v4238, %v4245
        %v4247 = vrot.slane %v3538, 4
        %v4248 = vsel %vm1342, %v4247, %v3534
        %v4249 = vrot.slane %v3534, 4
        %v4250 = vsel %vm1342, %v3538, %v4249
        %v4252 = vunpack.c.l.s4 1983009808
        %v4253 = vunpack.c.0.s8 %v4252
        %v4254 = vperm.slane %v4248, %v4253
        %v4256 = vunpack.c.l.s4 1983009808
        %v4257 = vunpack.c.0.s8 %v4256
        %v4258 = vperm.slane %v4250, %v4257
        %v4259 = vrot.slane %v3544, 4
        %v4260 = vsel %vm1342, %v4259, %v3540
        %v4261 = vrot.slane %v3540, 4
        %v4262 = vsel %vm1342, %v3544, %v4261
        %v4264 = vunpack.c.l.s4 1983009808
        %v4265 = vunpack.c.0.s8 %v4264
        %v4266 = vperm.slane %v4260, %v4265
        %v4268 = vunpack.c.l.s4 1983009808
        %v4269 = vunpack.c.0.s8 %v4268
        %v4270 = vperm.slane %v4262, %v4269
        %v4271 = vrot.slane %v3546, 4
        %v4272 = vsel %vm1342, %v4271, %v3542
        %v4273 = vrot.slane %v3542, 4
        %v4274 = vsel %vm1342, %v3546, %v4273
        %v4276 = vunpack.c.l.s4 1983009808
        %v4277 = vunpack.c.0.s8 %v4276
        %v4278 = vperm.slane %v4272, %v4277
        %v4280 = vunpack.c.l.s4 1983009808
        %v4281 = vunpack.c.0.s8 %v4280
        %v4282 = vperm.slane %v4274, %v4281
        %v4283 = vrot.slane %v4254, 4
        %v4284 = vsel %vm1342, %v4283, %v4242
        %v4285 = vrot.slane %v4242, 4
        %v4286 = vsel %vm1342, %v4254, %v4285
        %v4288 = vunpack.c.l.s4 1934713408
        %v4289 = vunpack.c.0.s8 %v4288
        %v4290 = vperm.slane %v4284, %v4289
        %v4292 = vunpack.c.l.s4 1934713408
        %v4293 = vunpack.c.0.s8 %v4292
        %v4294 = vperm.slane %v4286, %v4293
        %v4295 = vrot.slane %v4258, 4
        %v4296 = vsel %vm1342, %v4295, %v4246
        %v4297 = vrot.slane %v4246, 4
        %v4298 = vsel %vm1342, %v4258, %v4297
        %v4300 = vunpack.c.l.s4 1934713408
        %v4301 = vunpack.c.0.s8 %v4300
        %v4302 = vperm.slane %v4296, %v4301
        %v4304 = vunpack.c.l.s4 1934713408
        %v4305 = vunpack.c.0.s8 %v4304
        %v4306 = vperm.slane %v4298, %v4305
        %v4307 = vrot.slane %v4278, 4
        %v4308 = vsel %vm1342, %v4307, %v4266
        %v4309 = vrot.slane %v4266, 4
        %v4310 = vsel %vm1342, %v4278, %v4309
        %v4312 = vunpack.c.l.s4 1934713408
        %v4313 = vunpack.c.0.s8 %v4312
        %v4314 = vperm.slane %v4308, %v4313
        %v4316 = vunpack.c.l.s4 1934713408
        %v4317 = vunpack.c.0.s8 %v4316
        %v4318 = vperm.slane %v4310, %v4317
        %v4319 = vrot.slane %v4282, 4
        %v4320 = vsel %vm1342, %v4319, %v4270
        %v4321 = vrot.slane %v4270, 4
        %v4322 = vsel %vm1342, %v4282, %v4321
        %v4324 = vunpack.c.l.s4 1934713408
        %v4325 = vunpack.c.0.s8 %v4324
        %v4326 = vperm.slane %v4320, %v4325
        %v4328 = vunpack.c.l.s4 1934713408
        %v4329 = vunpack.c.0.s8 %v4328
        %v4330 = vperm.slane %v4322, %v4329
        %v4331 = vrot.slane %v4314, 4
        %v4332 = vsel %vm1342, %v4331, %v4290
        %v4333 = vrot.slane %v4290, 4
        %v4334 = vsel %vm1342, %v4314, %v4333
        %v4335 = vrot.slane %v4318, 4
        %v4336 = vsel %vm1342, %v4335, %v4294
        %v4337 = vrot.slane %v4294, 4
        %v4338 = vsel %vm1342, %v4318, %v4337
        %v4339 = vrot.slane %v4326, 4
        %v4340 = vsel %vm1342, %v4339, %v4302
        %v4341 = vrot.slane %v4302, 4
        %v4342 = vsel %vm1342, %v4326, %v4341
        %v4343 = vrot.slane %v4330, 4
        %v4344 = vsel %vm1342, %v4343, %v4306
        %v4345 = vrot.slane %v4306, 4
        %v4346 = vsel %vm1342, %v4330, %v4345
        %v4347 = vrot.slane %v3552, 4
        %v4348 = vsel %vm1342, %v4347, %v3548
        %v4349 = vrot.slane %v3548, 4
        %v4350 = vsel %vm1342, %v3552, %v4349
        %v4352 = vunpack.c.l.s4 1983009808
        %v4353 = vunpack.c.0.s8 %v4352
        %v4354 = vperm.slane %v4348, %v4353
        %v4356 = vunpack.c.l.s4 1983009808
        %v4357 = vunpack.c.0.s8 %v4356
        %v4358 = vperm.slane %v4350, %v4357
        %v4359 = vrot.slane %v3554, 4
        %v4360 = vsel %vm1342, %v4359, %v3550
        %v4361 = vrot.slane %v3550, 4
        %v4362 = vsel %vm1342, %v3554, %v4361
        %v4364 = vunpack.c.l.s4 1983009808
        %v4365 = vunpack.c.0.s8 %v4364
        %v4366 = vperm.slane %v4360, %v4365
        %v4368 = vunpack.c.l.s4 1983009808
        %v4369 = vunpack.c.0.s8 %v4368
        %v4370 = vperm.slane %v4362, %v4369
        %v4371 = vrot.slane %v3560, 4
        %v4372 = vsel %vm1342, %v4371, %v3556
        %v4373 = vrot.slane %v3556, 4
        %v4374 = vsel %vm1342, %v3560, %v4373
        %v4376 = vunpack.c.l.s4 1983009808
        %v4377 = vunpack.c.0.s8 %v4376
        %v4378 = vperm.slane %v4372, %v4377
        %v4380 = vunpack.c.l.s4 1983009808
        %v4381 = vunpack.c.0.s8 %v4380
        %v4382 = vperm.slane %v4374, %v4381
        %v4383 = vrot.slane %v3562, 4
        %v4384 = vsel %vm1342, %v4383, %v3558
        %v4385 = vrot.slane %v3558, 4
        %v4386 = vsel %vm1342, %v3562, %v4385
        %v4388 = vunpack.c.l.s4 1983009808
        %v4389 = vunpack.c.0.s8 %v4388
        %v4390 = vperm.slane %v4384, %v4389
        %v4392 = vunpack.c.l.s4 1983009808
        %v4393 = vunpack.c.0.s8 %v4392
        %v4394 = vperm.slane %v4386, %v4393
        %v4395 = vrot.slane %v4366, 4
        %v4396 = vsel %vm1342, %v4395, %v4354
        %v4397 = vrot.slane %v4354, 4
        %v4398 = vsel %vm1342, %v4366, %v4397
        %v4400 = vunpack.c.l.s4 1934713408
        %v4401 = vunpack.c.0.s8 %v4400
        %v4402 = vperm.slane %v4396, %v4401
        %v4404 = vunpack.c.l.s4 1934713408
        %v4405 = vunpack.c.0.s8 %v4404
        %v4406 = vperm.slane %v4398, %v4405
        %v4407 = vrot.slane %v4370, 4
        %v4408 = vsel %vm1342, %v4407, %v4358
        %v4409 = vrot.slane %v4358, 4
        %v4410 = vsel %vm1342, %v4370, %v4409
        %v4412 = vunpack.c.l.s4 1934713408
        %v4413 = vunpack.c.0.s8 %v4412
        %v4414 = vperm.slane %v4408, %v4413
        %v4416 = vunpack.c.l.s4 1934713408
        %v4417 = vunpack.c.0.s8 %v4416
        %v4418 = vperm.slane %v4410, %v4417
        %v4419 = vrot.slane %v4390, 4
        %v4420 = vsel %vm1342, %v4419, %v4378
        %v4421 = vrot.slane %v4378, 4
        %v4422 = vsel %vm1342, %v4390, %v4421
        %v4424 = vunpack.c.l.s4 1934713408
        %v4425 = vunpack.c.0.s8 %v4424
        %v4426 = vperm.slane %v4420, %v4425
        %v4428 = vunpack.c.l.s4 1934713408
        %v4429 = vunpack.c.0.s8 %v4428
        %v4430 = vperm.slane %v4422, %v4429
        %v4431 = vrot.slane %v4394, 4
        %v4432 = vsel %vm1342, %v4431, %v4382
        %v4433 = vrot.slane %v4382, 4
        %v4434 = vsel %vm1342, %v4394, %v4433
        %v4436 = vunpack.c.l.s4 1934713408
        %v4437 = vunpack.c.0.s8 %v4436
        %v4438 = vperm.slane %v4432, %v4437
        %v4440 = vunpack.c.l.s4 1934713408
        %v4441 = vunpack.c.0.s8 %v4440
        %v4442 = vperm.slane %v4434, %v4441
        %v4443 = vrot.slane %v4426, 4
        %v4444 = vsel %vm1342, %v4443, %v4402
        %v4445 = vrot.slane %v4402, 4
        %v4446 = vsel %vm1342, %v4426, %v4445
        %v4447 = vrot.slane %v4430, 4
        %v4448 = vsel %vm1342, %v4447, %v4406
        %v4449 = vrot.slane %v4406, 4
        %v4450 = vsel %vm1342, %v4430, %v4449
        %v4451 = vrot.slane %v4438, 4
        %v4452 = vsel %vm1342, %v4451, %v4414
        %v4453 = vrot.slane %v4414, 4
        %v4454 = vsel %vm1342, %v4438, %v4453
        %v4455 = vrot.slane %v4442, 4
        %v4456 = vsel %vm1342, %v4455, %v4418
        %v4457 = vrot.slane %v4418, 4
        %v4458 = vsel %vm1342, %v4442, %v4457
        %4463 = vrot.lane.b32.xlu0 %v3662, 2
        %v4464 = vpop.permute.xlu0 %4463
        %4465 = vrot.lane.b32.xlu0 %v3774, 2
        %v4466 = vpop.permute.xlu0 %4465
        %4467 = vrot.lane.b32.xlu0 %v4110, 2
        %v4468 = vpop.permute.xlu0 %4467
        %4469 = vrot.lane.b32.xlu0 %v4222, 2
        %v4470 = vpop.permute.xlu0 %4469
        %4479 = vrot.lane.b32.xlu0 %v3664, 4
        %v4480 = vpop.permute.xlu0 %4479
        %4481 = vrot.lane.b32.xlu0 %v3776, 4
        %v4482 = vpop.permute.xlu0 %4481
        %4483 = vrot.lane.b32.xlu0 %v4112, 4
        %v4484 = vpop.permute.xlu0 %4483
        %4485 = vrot.lane.b32.xlu0 %v4224, 4
        %v4486 = vpop.permute.xlu0 %4485
        %4495 = vrot.lane.b32.xlu0 %v3666, 6
        %v4496 = vpop.permute.xlu0 %4495
        %4497 = vrot.lane.b32.xlu0 %v3778, 6
        %v4498 = vpop.permute.xlu0 %4497
        %4499 = vrot.lane.b32.xlu0 %v4114, 6
        %v4500 = vpop.permute.xlu0 %4499
        %4501 = vrot.lane.b32.xlu0 %v4226, 6
        %v4502 = vpop.permute.xlu0 %4501
        %4511 = vrot.lane.b32.xlu0 %v3668, 8
        %v4512 = vpop.permute.xlu0 %4511
        %4513 = vrot.lane.b32.xlu0 %v3780, 8
        %v4514 = vpop.permute.xlu0 %4513
        %4515 = vrot.lane.b32.xlu0 %v4116, 8
        %v4516 = vpop.permute.xlu0 %4515
        %4517 = vrot.lane.b32.xlu0 %v4228, 8
        %v4518 = vpop.permute.xlu0 %4517
        %4527 = vrot.lane.b32.xlu0 %v3670, 10
        %v4528 = vpop.permute.xlu0 %4527
        %4529 = vrot.lane.b32.xlu0 %v3782, 10
        %v4530 = vpop.permute.xlu0 %4529
        %4531 = vrot.lane.b32.xlu0 %v4118, 10
        %v4532 = vpop.permute.xlu0 %4531
        %4533 = vrot.lane.b32.xlu0 %v4230, 10
        %v4534 = vpop.permute.xlu0 %4533
        %4543 = vrot.lane.b32.xlu0 %v3672, 12
        %v4544 = vpop.permute.xlu0 %4543
        %4545 = vrot.lane.b32.xlu0 %v3784, 12
        %v4546 = vpop.permute.xlu0 %4545
        %4547 = vrot.lane.b32.xlu0 %v4120, 12
        %v4548 = vpop.permute.xlu0 %4547
        %4549 = vrot.lane.b32.xlu0 %v4232, 12
        %v4550 = vpop.permute.xlu0 %4549
        %4559 = vrot.lane.b32.xlu0 %v3674, 14
        %v4560 = vpop.permute.xlu0 %4559
        %4561 = vrot.lane.b32.xlu0 %v3786, 14
        %v4562 = vpop.permute.xlu0 %4561
        %4563 = vrot.lane.b32.xlu0 %v4122, 14
        %v4564 = vpop.permute.xlu0 %4563
        %4565 = vrot.lane.b32.xlu0 %v4234, 14
        %v4566 = vpop.permute.xlu0 %4565
        %4575 = vrot.lane.b32.xlu0 %v3884, 16
        %v4576 = vpop.permute.xlu0 %4575
        %4577 = vrot.lane.b32.xlu0 %v3996, 16
        %v4578 = vpop.permute.xlu0 %4577
        %4579 = vrot.lane.b32.xlu0 %v4332, 16
        %v4580 = vpop.permute.xlu0 %4579
        %4581 = vrot.lane.b32.xlu0 %v4444, 16
        %v4582 = vpop.permute.xlu0 %4581
        %4591 = vrot.lane.b32.xlu0 %v3886, 18
        %v4592 = vpop.permute.xlu0 %4591
        %4593 = vrot.lane.b32.xlu0 %v3998, 18
        %v4594 = vpop.permute.xlu0 %4593
        %4595 = vrot.lane.b32.xlu0 %v4334, 18
        %v4596 = vpop.permute.xlu0 %4595
        %4597 = vrot.lane.b32.xlu0 %v4446, 18
        %v4598 = vpop.permute.xlu0 %4597
        %4607 = vrot.lane.b32.xlu0 %v3888, 20
        %v4608 = vpop.permute.xlu0 %4607
        %4609 = vrot.lane.b32.xlu0 %v4000, 20
        %v4610 = vpop.permute.xlu0 %4609
        %4611 = vrot.lane.b32.xlu0 %v4336, 20
        %v4612 = vpop.permute.xlu0 %4611
        %4613 = vrot.lane.b32.xlu0 %v4448, 20
        %v4614 = vpop.permute.xlu0 %4613
        %4623 = vrot.lane.b32.xlu0 %v3890, 22
        %v4624 = vpop.permute.xlu0 %4623
        %4625 = vrot.lane.b32.xlu0 %v4002, 22
        %v4626 = vpop.permute.xlu0 %4625
        %4627 = vrot.lane.b32.xlu0 %v4338, 22
        %v4628 = vpop.permute.xlu0 %4627
        %4629 = vrot.lane.b32.xlu0 %v4450, 22
        %v4630 = vpop.permute.xlu0 %4629
        %4639 = vrot.lane.b32.xlu0 %v3892, 24
        %v4640 = vpop.permute.xlu0 %4639
        %4641 = vrot.lane.b32.xlu0 %v4004, 24
        %v4642 = vpop.permute.xlu0 %4641
        %4643 = vrot.lane.b32.xlu0 %v4340, 24
        %v4644 = vpop.permute.xlu0 %4643
        %4645 = vrot.lane.b32.xlu0 %v4452, 24
        %v4646 = vpop.permute.xlu0 %4645
        %4655 = vrot.lane.b32.xlu0 %v3894, 26
        %v4656 = vpop.permute.xlu0 %4655
        %4657 = vrot.lane.b32.xlu0 %v4006, 26
        %v4658 = vpop.permute.xlu0 %4657
        %4659 = vrot.lane.b32.xlu0 %v4342, 26
        %v4660 = vpop.permute.xlu0 %4659
        %4661 = vrot.lane.b32.xlu0 %v4454, 26
        %v4662 = vpop.permute.xlu0 %4661
        %4671 = vrot.lane.b32.xlu0 %v3896, 28
        %v4672 = vpop.permute.xlu0 %4671
        %4673 = vrot.lane.b32.xlu0 %v4008, 28
        %v4674 = vpop.permute.xlu0 %4673
        %4675 = vrot.lane.b32.xlu0 %v4344, 28
        %v4676 = vpop.permute.xlu0 %4675
        %4677 = vrot.lane.b32.xlu0 %v4456, 28
        %v4678 = vpop.permute.xlu0 %4677
        %4687 = vrot.lane.b32.xlu0 %v3898, 30
        %v4688 = vpop.permute.xlu0 %4687
        %4689 = vrot.lane.b32.xlu0 %v4010, 30
        %v4690 = vpop.permute.xlu0 %4689
        %4691 = vrot.lane.b32.xlu0 %v4346, 30
        %v4692 = vpop.permute.xlu0 %4691
        %4693 = vrot.lane.b32.xlu0 %v4458, 30
        %v4694 = vpop.permute.xlu0 %4693
        %v4699 = vsel %vm2478, %v3660, %v4464
        %v4700 = vsel %vm2478, %v3772, %v4466
        %v4701 = vsel %vm2478, %v4108, %v4468
        %v4702 = vsel %vm2478, %v4220, %v4470
        %v4703 = vsel %vm2483, %v4699, %v4480
        %v4704 = vsel %vm2483, %v4700, %v4482
        %v4705 = vsel %vm2483, %v4701, %v4484
        %v4706 = vsel %vm2483, %v4702, %v4486
        %v4707 = vsel %vm2488, %v4703, %v4496
        %v4708 = vsel %vm2488, %v4704, %v4498
        %v4709 = vsel %vm2488, %v4705, %v4500
        %v4710 = vsel %vm2488, %v4706, %v4502
        %v4711 = vsel %vm2493, %v4707, %v4512
        %v4712 = vsel %vm2493, %v4708, %v4514
        %v4713 = vsel %vm2493, %v4709, %v4516
        %v4714 = vsel %vm2493, %v4710, %v4518
        %v4715 = vsel %vm2498, %v4711, %v4528
        %v4716 = vsel %vm2498, %v4712, %v4530
        %v4717 = vsel %vm2498, %v4713, %v4532
        %v4718 = vsel %vm2498, %v4714, %v4534
        %v4719 = vsel %vm2503, %v4715, %v4544
        %v4720 = vsel %vm2503, %v4716, %v4546
        %v4721 = vsel %vm2503, %v4717, %v4548
        %v4722 = vsel %vm2503, %v4718, %v4550
        %v4723 = vsel %vm2508, %v4719, %v4560
        %v4724 = vsel %vm2508, %v4720, %v4562
        %v4725 = vsel %vm2508, %v4721, %v4564
        %v4726 = vsel %vm2508, %v4722, %v4566
        %v4727 = vsel %vm2513, %v4723, %v4576
        %v4728 = vsel %vm2513, %v4724, %v4578
        %v4729 = vsel %vm2513, %v4725, %v4580
        %v4730 = vsel %vm2513, %v4726, %v4582
        %v4731 = vsel %vm2518, %v4727, %v4592
        %v4732 = vsel %vm2518, %v4728, %v4594
        %v4733 = vsel %vm2518, %v4729, %v4596
        %v4734 = vsel %vm2518, %v4730, %v4598
        %v4735 = vsel %vm2523, %v4731, %v4608
        %v4736 = vsel %vm2523, %v4732, %v4610
        %v4737 = vsel %vm2523, %v4733, %v4612
        %v4738 = vsel %vm2523, %v4734, %v4614
        %v4739 = vsel %vm2528, %v4735, %v4624
        %v4740 = vsel %vm2528, %v4736, %v4626
        %v4741 = vsel %vm2528, %v4737, %v4628
        %v4742 = vsel %vm2528, %v4738, %v4630
        %v4743 = vsel %vm2533, %v4739, %v4640
        %v4744 = vsel %vm2533, %v4740, %v4642
        %v4745 = vsel %vm2533, %v4741, %v4644
        %v4746 = vsel %vm2533, %v4742, %v4646
        %v4747 = vsel %vm2538, %v4743, %v4656
        %v4748 = vsel %vm2538, %v4744, %v4658
        %v4749 = vsel %vm2538, %v4745, %v4660
        %v4750 = vsel %vm2538, %v4746, %v4662
        %v4751 = vsel %vm2543, %v4747, %v4672
        %v4752 = vsel %vm2543, %v4748, %v4674
        %v4753 = vsel %vm2543, %v4749, %v4676
        %v4754 = vsel %vm2543, %v4750, %v4678
        %v4755 = vsel %vm2548, %v4751, %v4688
        %v4756 = vsel %vm2548, %v4752, %v4690
        %v4757 = vsel %vm2548, %v4753, %v4692
        %v4758 = vsel %vm2548, %v4754, %v4694
        %4763 = vrot.lane.b32.xlu0 %v4755, 32
        %v4764 = vpop.permute.xlu0 %4763
        %4765 = vrot.lane.b32.xlu0 %v4756, 32
        %v4766 = vpop.permute.xlu0 %4765
        %4767 = vrot.lane.b32.xlu0 %v4757, 32
        %v4768 = vpop.permute.xlu0 %4767
        %4769 = vrot.lane.b32.xlu0 %v4758, 32
        %v4770 = vpop.permute.xlu0 %4769
        %vm4775 = vcmask 261120
        %v4776 = vsel %vm4775, %v2549, %v4764
        %v4777 = vsel %vm4775, %v2550, %v4766
        %v4778 = vsel %vm4775, %v2551, %v4768
        %v4779 = vsel %vm4775, %v2552, %v4770
        %vm4780 = vcmask 523264
        %4781 = vst.msk [vmem:[%s294] sm:$0xff] %vm4780, %v4776
        %4782 = vst.msk [vmem:[%s294 + $0x8] sm:$0xff] %vm4780, %v4777
        %4783 = vst.msk [vmem:[%s294 + $0x10] sm:$0xff] %vm4780, %v4778
        %4784 = vst.msk [vmem:[%s294 + $0x18] sm:$0xff] %vm4780, %v4779
        %s4785 = sand.u32 %s129, 1
        %s4786 = scalar_lea.sflag [#allocation4], %s4785
        %s4787 = sand.u32 %s129, 1
        %s4788 = smul.addr %s4787, 32
        %s4789 = scalar_lea.vmem [#allocation8], %s4788
        // Predicated region
        $region45: #{tpu_custom_call.1} parent=31 // pred_check
          %p4790 = pneg %p139
        $region46: #{tpu_custom_call.1} parent=31 // pred_check_branch
          %4792 = sbr.rel (%p4790) target = $region48
        $region47: #{tpu_custom_call.1} parent=31 // pred_region
          %s4793 = smul.u32 2, %s27
          %s4794 = smul.u32 2, %s28
          %4796 = vsyncadd %s4786, 0
          %s4797 = smul.addr %s4793, 2
          %s4798 = sadd.s32 %s4794, %s4797
          %s4799 = smul.addr %s4798, 8
          %s4800 = scalar_lea.hbm %s3, %s4799
          %s4801 = sshll.u32 %s4789, 4
          %s4802 = int_to_ptr.vmem [resolvable:$true] %s4801
          %s4803 = sshll.u32 %s4800, 4
          %s4804 = int_to_ptr.hbm [resolvable:$true] %s4803
          %4809 = dma.vmem_to_hbm [thread:$0]  %s4802, 512, %s4804, %s4786, 128, 128, 8
        $region48: #{tpu_custom_call.1} parent=31 // pred_fallthru
          _
      $region32: #{tpu_custom_call.1} parent=5 // pred_fallthru
        _
      %p4810 = scmp.le.s32.totalorder 2, %s18
      // Predicated region
      $region49: #{tpu_custom_call.1} parent=5 // pred_check
        %p4811 = pneg %p4810
      $region50: #{tpu_custom_call.1} parent=5 // pred_check_branch
        %4813 = sbr.rel (%p4811) target = $region52
      $region51: #{tpu_custom_call.1} parent=5 // pred_region
        %s4814 = ssub.s32 %s18, 2
        // Predicated region
        $region53: #{tpu_custom_call.1} parent=51 // pred_check
          %p4815 = pneg %p145
        $region54: #{tpu_custom_call.1} parent=51 // pred_check_branch
          %4817 = sbr.rel (%p4815) target = $region56
        $region55: #{tpu_custom_call.1} parent=51 // pred_region
          %s4818 = sand.u32 %s130, 1
          %s4819 = scalar_lea.sflag [#allocation4], %s4818
          %s4820 = sand.u32 %s130, 1
          %s4821 = smul.addr %s4820, 32
          %s4822 = scalar_lea.vmem [#allocation8], %s4821
          %4824 = dma.done %s4819, 512
        $region56: #{tpu_custom_call.1} parent=51 // pred_fallthru
          _
      $region52: #{tpu_custom_call.1} parent=5 // pred_fallthru
        _
    $region6: #{tpu_custom_call.1} parent=1 // loop_footer
      %s22 = sadd.s32 1, %s18
    $region7: #{tpu_custom_call.1} parent=1 // loop_footer_branch
      %17 = sbr.rel target = $region3
    $region8: #{tpu_custom_call.1} parent=1 // loop_exit
      _
    %4825 = vsyncpa [#allocation3], 1
    %s4826 = scalar_lea.sflag [#allocation3], 1
    %4827 = vsyncpa %s4826, 1
    %4828 = vsyncpa [#allocation6], 1
    %s4829 = scalar_lea.sflag [#allocation6], 1
    %4830 = vsyncpa %s4829, 1
    %4831 = vsyncpa [#allocation4], 1
    %s4832 = scalar_lea.sflag [#allocation4], 1
    %4833 = vsyncpa %s4832, 1

</llo_original>
